<compile_context>
chip_gen: v7x
topology: tpu7x:2x2x1
jax: 0.10.0
libtpu: 0.0.40
codegen_flags: <defaults>
</compile_context>

<pallas_src>
import jax
import jax.numpy as jnp
from jax.experimental import pallas as pl
from jax.experimental.pallas import tpu as pltpu

# ---------------- synthetic "args" configuration ----------------
HIDDEN = 48          # hidden_dim (divisible by 3 and 2)
N_LAYERS = 2
N_TEST = 10
N_QUESTIONS = 20
N_TAG = 7
N_BIG = 5
N_CATE = 5           # 5 categorical embeddings concatenated
N_CONT = 4
EMB = HIDDEN // 3    # 16
HALF = HIDDEN // 2   # 24
EPS = 1e-5
GATE = 128           # lane-aligned gate stride (each gate starts on a 128-lane boundary)

B = 2                # batch
S = 8                # sequence length


# ---------------- Pallas kernel ----------------
def _layernorm(x, gamma, beta):
    mu = jnp.mean(x, axis=-1, keepdims=True)
    var = jnp.mean((x - mu) ** 2, axis=-1, keepdims=True)
    return (x - mu) * jax.lax.rsqrt(var + EPS) * gamma + beta


def fused_forward_kernel(embed_ref, cont_ref,
                         w1_ref, b1_ref, g1_ref, be1_ref,
                         w2_ref, b2_ref, g2_ref, be2_ref,
                         w_ih_ref, w_hh_ref, b_ref, wf_ref, bf_ref,
                         preds_ref):
    """comb_proj + cont_embed + multi-layer LSTM (zero init state) + fc + sigmoid."""
    S_, B_, CF = embed_ref.shape
    H = HIDDEN
    G = GATE

    # ---- categorical projection: Linear(5*EMB -> HALF) + LayerNorm (one MXU matmul) ----
    embed2 = embed_ref[...].reshape(S_ * B_, CF)               # time-major rows t*B + b
    cate = jnp.dot(embed2, w1_ref[...],
                   preferred_element_type=jnp.float32) + b1_ref[...]
    cate = _layernorm(cate, g1_ref[...], be1_ref[...])

    # ---- continuous projection: Linear(N_CONT -> HALF) + LayerNorm on the VPU ----
    # K=4 is too small to be worth an MXU pass; broadcast multiply-add instead.
    cont2 = cont_ref[...].reshape(S_ * B_, N_CONT)
    w2 = w2_ref[...]                                           # (N_CONT, HALF)
    cont_p = b2_ref[...] + cont2[:, 0:1] * w2[0:1, :]
    for k in range(1, N_CONT):
        cont_p = cont_p + cont2[:, k:k + 1] * w2[k:k + 1, :]
    cont_p = _layernorm(cont_p, g2_ref[...], be2_ref[...])

    # layer-0 LSTM input X, time-major (S*B, H)
    layer_in = jnp.concatenate([cate, cont_p], axis=-1)

    # ---- multi-layer LSTM, gate order i, f, g, o (PyTorch), zero initial state ----
    hs = []
    for l in range(N_LAYERS):                                  # static layer loop
        w_hh = w_hh_ref[l]                                     # (H, 4*G), lane-aligned gates
        # hoisted input projection + combined bias: ONE matmul per layer
        xp = jnp.dot(layer_in, w_ih_ref[l],
                     preferred_element_type=jnp.float32) + b_ref[l]     # (S*B, 4*G)
        xp = xp.reshape(S_, B_, 4 * G)

        h = jnp.zeros((B_, H), jnp.float32)                    # state stays in vregs
        c = jnp.zeros((B_, H), jnp.float32)
        hs = []
        for t in range(S_):                                    # fully unrolled (S is static)
            gates = xp[t] + jnp.dot(h, w_hh,
                                    preferred_element_type=jnp.float32)   # (B, 4*G)
            i_g = jax.nn.sigmoid(gates[:, 0 * G:0 * G + H])    # lane-aligned gate slices
            f_g = jax.nn.sigmoid(gates[:, 1 * G:1 * G + H])
            g_g = jnp.tanh(gates[:, 2 * G:2 * G + H])
            o_g = jax.nn.sigmoid(gates[:, 3 * G:3 * G + H])
            c = f_g * c + i_g * g_g
            h = o_g * jnp.tanh(c)
            hs.append(h)

        if l + 1 < N_LAYERS:                                   # next layer's input (time-major)
            layer_in = jnp.concatenate(hs, axis=0)

    # ---- fc + sigmoid, hoisted out of the time loop; single (B, S) store ----
    hs_b = jnp.stack(hs, axis=1)                               # (B, S, H)
    logits = jnp.sum(hs_b * wf_ref[...].reshape(1, 1, H), axis=-1) + bf_ref[...]
    preds_ref[...] = jax.nn.sigmoid(logits)                    # (B, S)


# ---------------- wrapper ----------------
def _full_spec(shape):
    nd = len(shape)
    return pl.BlockSpec(shape, lambda i, _nd=nd: (0,) * _nd)


def _pad_gate_lanes(w):
    """(..., 4*HIDDEN) -> (..., 4*GATE): gate g at lanes [g*GATE, g*GATE+HIDDEN), zeros elsewhere."""
    pad = [(0, 0)] * (w.ndim - 1) + [(0, GATE - HIDDEN)]
    parts = [jnp.pad(w[..., g * HIDDEN:(g + 1) * HIDDEN], pad) for g in range(4)]
    return jnp.concatenate(parts, axis=-1)


def custom_lstm_forward(params, test, question, tag, interaction,
                        big_features, cont_features):
    Bz, Sz = interaction.shape

    # embedding lookups (plain-JAX glue)
    e_int = jnp.take(params["emb_interaction"], interaction, axis=0)
    e_test = jnp.take(params["emb_test"], test, axis=0)
    e_q = jnp.take(params["emb_question"], question, axis=0)
    e_tag = jnp.take(params["emb_tag"], tag, axis=0)
    e_big = jnp.take(params["emb_big"], big_features, axis=0)
    # torch concat order: [interaction, test, question, big, tag]
    embed = jnp.concatenate([e_int, e_test, e_q, e_big, e_tag], axis=-1)

    # time-major layouts for the fused kernel
    embed_tm = embed.transpose(1, 0, 2).astype(jnp.float32)          # (S, B, 5*EMB)
    cont_tm = cont_features.transpose(1, 0, 2).astype(jnp.float32)   # (S, B, N_CONT)

    # lane-aligned LSTM weight layout (zero padded columns are never read)
    w_ih_p = _pad_gate_lanes(params["w_ih"])       # (L, H, 4*GATE)
    w_hh_p = _pad_gate_lanes(params["w_hh"])       # (L, H, 4*GATE)
    b_p = _pad_gate_lanes(params["b_lstm"])        # (L, 1, 4*GATE)

    inputs = [embed_tm, cont_tm,
              params["w1"], params["b1"], params["g1"], params["be1"],
              params["w2"], params["b2"], params["g2"], params["be2"],
              w_ih_p, w_hh_p, b_p, params["wf"], params["bf"]]

    preds = pl.pallas_call(
        fused_forward_kernel,
        out_shape=jax.ShapeDtypeStruct((Bz, Sz), jnp.float32),
        grid=(1,),
        in_specs=[_full_spec(a.shape) for a in inputs],
        out_specs=_full_spec((Bz, Sz)),
        compiler_params=pltpu.CompilerParams(
            dimension_semantics=("arbitrary",)),
    )(*inputs)
    return preds                                               # (B, S)


# ---------------- deterministic parameter init ----------------
def init_params(key):
    ks = jax.random.split(key, 16)

    def u(k, shape, fan_in):
        s = 1.0 / float(fan_in) ** 0.5
        return jax.random.uniform(k, shape, jnp.float32, -s, s)

    p = {}
    p["emb_interaction"] = jax.random.normal(ks[0], (3, EMB), jnp.float32)
    p["emb_test"] = jax.random.normal(ks[1], (N_TEST + 1, EMB), jnp.float32)
    p["emb_question"] = jax.random.normal(ks[2], (N_QUESTIONS + 1, EMB), jnp.float32)
    p["emb_tag"] = jax.random.normal(ks[3], (N_TAG + 1, EMB), jnp.float32)
    p["emb_big"] = jax.random.normal(ks[4], (N_BIG + 1, EMB), jnp.float32)
    # comb_proj: Linear(5*EMB -> HALF) + LayerNorm(HALF)   (weights stored transposed: x @ W)
    p["w1"] = u(ks[5], (N_CATE * EMB, HALF), N_CATE * EMB)
    p["b1"] = u(ks[6], (1, HALF), N_CATE * EMB)
    p["g1"] = jnp.ones((1, HALF), jnp.float32)
    p["be1"] = jnp.zeros((1, HALF), jnp.float32)
    # cont_embed: Linear(N_CONT -> HALF) + LayerNorm(HALF)
    p["w2"] = u(ks[7], (N_CONT, HALF), N_CONT)
    p["b2"] = u(ks[8], (1, HALF), N_CONT)
    p["g2"] = jnp.ones((1, HALF), jnp.float32)
    p["be2"] = jnp.zeros((1, HALF), jnp.float32)
    # LSTM (input size == hidden size for all layers); gate order i,f,g,o
    p["w_ih"] = u(ks[9], (N_LAYERS, HIDDEN, 4 * HIDDEN), HIDDEN)
    p["w_hh"] = u(ks[10], (N_LAYERS, HIDDEN, 4 * HIDDEN), HIDDEN)
    p["b_lstm"] = (u(ks[11], (N_LAYERS, 1, 4 * HIDDEN), HIDDEN)
                   + u(ks[12], (N_LAYERS, 1, 4 * HIDDEN), HIDDEN))   # b_ih + b_hh
    # fc: Linear(HIDDEN -> 1), stored as a (1, HIDDEN) row for the VPU reduce
    p["wf"] = u(ks[13], (1, HIDDEN), HIDDEN)
    p["bf"] = u(ks[14], (1, 1), HIDDEN)
    return p


if __name__ == "__main__":
    key = jax.random.PRNGKey(0)
    pkey, dkey = jax.random.split(key)
    params = init_params(pkey)

    dks = jax.random.split(dkey, 6)
    test = jax.random.randint(dks[0], (B, S), 0, N_TEST + 1, jnp.int32)
    question = jax.random.randint(dks[1], (B, S), 0, N_QUESTIONS + 1, jnp.int32)
    tag = jax.random.randint(dks[2], (B, S), 0, N_TAG + 1, jnp.int32)
    interaction = jax.random.randint(dks[3], (B, S), 0, 3, jnp.int32)
    big_features = jax.random.randint(dks[4], (B, S), 0, N_BIG + 1, jnp.int32)
    cont_features = jax.random.normal(dks[5], (B, S, N_CONT), jnp.float32)
    # NOTE: `mask` and `index` from the PyTorch input tuple are unused in forward().

    forward = jax.jit(custom_lstm_forward)
    preds = forward(params, test, question, tag, interaction,
                    big_features, cont_features)
    preds = jax.block_until_ready(preds)
    assert preds.shape == (B, S), preds.shape
    assert bool(jnp.all(jnp.isfinite(preds)))
    assert bool(jnp.all((preds >= 0.0) & (preds <= 1.0)))
    print("KERNEL_OK")
</pallas_src>

<mosaic_0001>
module attributes {stable_mosaic.version = 11 : i64} {
  func.func @fused_forward_kernel(%arg0: i32, %arg1: memref<8x2x80xf32, #tpu.memory_space<vmem>>, %arg2: memref<8x2x4xf32, #tpu.memory_space<vmem>>, %arg3: memref<80x24xf32, #tpu.memory_space<vmem>>, %arg4: memref<1x24xf32, #tpu.memory_space<vmem>>, %arg5: memref<1x24xf32, #tpu.memory_space<vmem>>, %arg6: memref<1x24xf32, #tpu.memory_space<vmem>>, %arg7: memref<4x24xf32, #tpu.memory_space<vmem>>, %arg8: memref<1x24xf32, #tpu.memory_space<vmem>>, %arg9: memref<1x24xf32, #tpu.memory_space<vmem>>, %arg10: memref<1x24xf32, #tpu.memory_space<vmem>>, %arg11: memref<2x48x512xf32, #tpu.memory_space<vmem>>, %arg12: memref<2x48x512xf32, #tpu.memory_space<vmem>>, %arg13: memref<2x1x512xf32, #tpu.memory_space<vmem>>, %arg14: memref<1x48xf32, #tpu.memory_space<vmem>>, %arg15: memref<1x1xf32, #tpu.memory_space<vmem>>, %arg16: memref<2x8xf32, #tpu.memory_space<vmem>>) attributes {dimension_semantics = [#tpu.dimension_semantics<arbitrary>], iteration_bounds = array<i64: 1>, scalar_prefetch = 0 : i64, scratch_operands = 0 : i64, tpu.core_type = #tpu.core_type<tc>, window_params = [{pipeline_mode = #tpu.pipeline_mode<synchronous>, transform_indices = @transform_0, window_bounds = array<i64: 8, 2, 80>}, {pipeline_mode = #tpu.pipeline_mode<synchronous>, transform_indices = @transform_1, window_bounds = array<i64: 8, 2, 4>}, {pipeline_mode = #tpu.pipeline_mode<synchronous>, transform_indices = @transform_2, window_bounds = array<i64: 80, 24>}, {pipeline_mode = #tpu.pipeline_mode<synchronous>, transform_indices = @transform_3, window_bounds = array<i64: 1, 24>}, {pipeline_mode = #tpu.pipeline_mode<synchronous>, transform_indices = @transform_4, window_bounds = array<i64: 1, 24>}, {pipeline_mode = #tpu.pipeline_mode<synchronous>, transform_indices = @transform_5, window_bounds = array<i64: 1, 24>}, {pipeline_mode = #tpu.pipeline_mode<synchronous>, transform_indices = @transform_6, window_bounds = array<i64: 4, 24>}, {pipeline_mode = #tpu.pipeline_mode<synchronous>, transform_indices = @transform_7, window_bounds = array<i64: 1, 24>}, {pipeline_mode = #tpu.pipeline_mode<synchronous>, transform_indices = @transform_8, window_bounds = array<i64: 1, 24>}, {pipeline_mode = #tpu.pipeline_mode<synchronous>, transform_indices = @transform_9, window_bounds = array<i64: 1, 24>}, {pipeline_mode = #tpu.pipeline_mode<synchronous>, transform_indices = @transform_10, window_bounds = array<i64: 2, 48, 512>}, {pipeline_mode = #tpu.pipeline_mode<synchronous>, transform_indices = @transform_11, window_bounds = array<i64: 2, 48, 512>}, {pipeline_mode = #tpu.pipeline_mode<synchronous>, transform_indices = @transform_12, window_bounds = array<i64: 2, 1, 512>}, {pipeline_mode = #tpu.pipeline_mode<synchronous>, transform_indices = @transform_13, window_bounds = array<i64: 1, 48>}, {pipeline_mode = #tpu.pipeline_mode<synchronous>, transform_indices = @transform_14, window_bounds = array<i64: 1, 1>}, {pipeline_mode = #tpu.pipeline_mode<synchronous>, transform_indices = @transform_15, window_bounds = array<i64: 2, 8>}]} {
    %c0 = arith.constant 0 : index
    %c0_0 = arith.constant 0 : index
    %c0_1 = arith.constant 0 : index
    %0 = vector.load %arg1[%c0, %c0_0, %c0_1] : memref<8x2x80xf32, #tpu.memory_space<vmem>>, vector<8x2x80xf32>
    %1 = vector.shape_cast %0 : vector<8x2x80xf32> to vector<16x80xf32>
    %c0_2 = arith.constant 0 : index
    %c0_3 = arith.constant 0 : index
    %2 = vector.load %arg3[%c0_2, %c0_3] : memref<80x24xf32, #tpu.memory_space<vmem>>, vector<80x24xf32>
    %cst = arith.constant dense<0.000000e+00> : vector<16x24xf32>
    %3 = tpu.matmul %1, %2, %cst {dimension_numbers = #tpu.dot_dimension_numbers<[1], [0], [0], [1], [0, 0, 1, 1], [], []>} : vector<16x80xf32>, vector<80x24xf32>, vector<16x24xf32> -> vector<16x24xf32>
    %c0_4 = arith.constant 0 : index
    %c0_5 = arith.constant 0 : index
    %4 = vector.load %arg4[%c0_4, %c0_5] : memref<1x24xf32, #tpu.memory_space<vmem>>, vector<1x24xf32>
    %5 = vector.broadcast %4 : vector<1x24xf32> to vector<16x24xf32>
    %6 = arith.addf %3, %5 : vector<16x24xf32>
    %c0_6 = arith.constant 0 : index
    %c0_7 = arith.constant 0 : index
    %7 = vector.load %arg5[%c0_6, %c0_7] : memref<1x24xf32, #tpu.memory_space<vmem>>, vector<1x24xf32>
    %c0_8 = arith.constant 0 : index
    %c0_9 = arith.constant 0 : index
    %8 = vector.load %arg6[%c0_8, %c0_9] : memref<1x24xf32, #tpu.memory_space<vmem>>, vector<1x24xf32>
    %cst_10 = arith.constant dense<0.000000e+00> : vector<16xf32>
    %9 = vector.multi_reduction <add>, %6, %cst_10 [1] : vector<16x24xf32> to vector<16xf32>
    %10 = vector.shape_cast %9 : vector<16xf32> to vector<16x1xf32>
    %cst_11 = arith.constant 2.400000e+01 : f32
    %11 = vector.broadcast %cst_11 : f32 to vector<16x1xf32>
    %12 = arith.divf %10, %11 : vector<16x1xf32>
    %13 = vector.broadcast %12 : vector<16x1xf32> to vector<16x24xf32>
    %14 = arith.subf %6, %13 : vector<16x24xf32>
    %15 = arith.mulf %14, %14 : vector<16x24xf32>
    %cst_12 = arith.constant dense<0.000000e+00> : vector<16xf32>
    %16 = vector.multi_reduction <add>, %15, %cst_12 [1] : vector<16x24xf32> to vector<16xf32>
    %17 = vector.shape_cast %16 : vector<16xf32> to vector<16x1xf32>
    %cst_13 = arith.constant 2.400000e+01 : f32
    %18 = vector.broadcast %cst_13 : f32 to vector<16x1xf32>
    %19 = arith.divf %17, %18 : vector<16x1xf32>
    %20 = vector.broadcast %12 : vector<16x1xf32> to vector<16x24xf32>
    %21 = arith.subf %6, %20 : vector<16x24xf32>
    %cst_14 = arith.constant 9.99999974E-6 : f32
    %22 = vector.broadcast %cst_14 : f32 to vector<16x1xf32>
    %23 = arith.addf %19, %22 : vector<16x1xf32>
    %24 = math.rsqrt %23 : vector<16x1xf32>
    %25 = vector.broadcast %24 : vector<16x1xf32> to vector<16x24xf32>
    %26 = arith.mulf %21, %25 : vector<16x24xf32>
    %27 = vector.broadcast %7 : vector<1x24xf32> to vector<16x24xf32>
    %28 = arith.mulf %26, %27 : vector<16x24xf32>
    %29 = vector.broadcast %8 : vector<1x24xf32> to vector<16x24xf32>
    %30 = arith.addf %28, %29 : vector<16x24xf32>
    %c0_15 = arith.constant 0 : index
    %c0_16 = arith.constant 0 : index
    %c0_17 = arith.constant 0 : index
    %31 = vector.load %arg2[%c0_15, %c0_16, %c0_17] : memref<8x2x4xf32, #tpu.memory_space<vmem>>, vector<8x2x4xf32>
    %32 = vector.shape_cast %31 : vector<8x2x4xf32> to vector<16x4xf32>
    %c0_18 = arith.constant 0 : index
    %c0_19 = arith.constant 0 : index
    %33 = vector.load %arg7[%c0_18, %c0_19] : memref<4x24xf32, #tpu.memory_space<vmem>>, vector<4x24xf32>
    %c0_20 = arith.constant 0 : index
    %c0_21 = arith.constant 0 : index
    %34 = vector.load %arg8[%c0_20, %c0_21] : memref<1x24xf32, #tpu.memory_space<vmem>>, vector<1x24xf32>
    %35 = vector.extract_strided_slice %32 {offsets = [0, 0], sizes = [16, 1], strides = [1, 1]} : vector<16x4xf32> to vector<16x1xf32>
    %36 = vector.extract_strided_slice %33 {offsets = [0, 0], sizes = [1, 24], strides = [1, 1]} : vector<4x24xf32> to vector<1x24xf32>
    %37 = vector.broadcast %35 : vector<16x1xf32> to vector<16x24xf32>
    %38 = vector.broadcast %36 : vector<1x24xf32> to vector<16x24xf32>
    %39 = arith.mulf %37, %38 : vector<16x24xf32>
    %40 = vector.broadcast %34 : vector<1x24xf32> to vector<16x24xf32>
    %41 = arith.addf %40, %39 : vector<16x24xf32>
    %42 = vector.extract_strided_slice %32 {offsets = [0, 1], sizes = [16, 1], strides = [1, 1]} : vector<16x4xf32> to vector<16x1xf32>
    %43 = vector.extract_strided_slice %33 {offsets = [1, 0], sizes = [1, 24], strides = [1, 1]} : vector<4x24xf32> to vector<1x24xf32>
    %44 = vector.broadcast %42 : vector<16x1xf32> to vector<16x24xf32>
    %45 = vector.broadcast %43 : vector<1x24xf32> to vector<16x24xf32>
    %46 = arith.mulf %44, %45 : vector<16x24xf32>
    %47 = arith.addf %41, %46 : vector<16x24xf32>
    %48 = vector.extract_strided_slice %32 {offsets = [0, 2], sizes = [16, 1], strides = [1, 1]} : vector<16x4xf32> to vector<16x1xf32>
    %49 = vector.extract_strided_slice %33 {offsets = [2, 0], sizes = [1, 24], strides = [1, 1]} : vector<4x24xf32> to vector<1x24xf32>
    %50 = vector.broadcast %48 : vector<16x1xf32> to vector<16x24xf32>
    %51 = vector.broadcast %49 : vector<1x24xf32> to vector<16x24xf32>
    %52 = arith.mulf %50, %51 : vector<16x24xf32>
    %53 = arith.addf %47, %52 : vector<16x24xf32>
    %54 = vector.extract_strided_slice %32 {offsets = [0, 3], sizes = [16, 1], strides = [1, 1]} : vector<16x4xf32> to vector<16x1xf32>
    %55 = vector.extract_strided_slice %33 {offsets = [3, 0], sizes = [1, 24], strides = [1, 1]} : vector<4x24xf32> to vector<1x24xf32>
    %56 = vector.broadcast %54 : vector<16x1xf32> to vector<16x24xf32>
    %57 = vector.broadcast %55 : vector<1x24xf32> to vector<16x24xf32>
    %58 = arith.mulf %56, %57 : vector<16x24xf32>
    %59 = arith.addf %53, %58 : vector<16x24xf32>
    %c0_22 = arith.constant 0 : index
    %c0_23 = arith.constant 0 : index
    %60 = vector.load %arg9[%c0_22, %c0_23] : memref<1x24xf32, #tpu.memory_space<vmem>>, vector<1x24xf32>
    %c0_24 = arith.constant 0 : index
    %c0_25 = arith.constant 0 : index
    %61 = vector.load %arg10[%c0_24, %c0_25] : memref<1x24xf32, #tpu.memory_space<vmem>>, vector<1x24xf32>
    %cst_26 = arith.constant dense<0.000000e+00> : vector<16xf32>
    %62 = vector.multi_reduction <add>, %59, %cst_26 [1] : vector<16x24xf32> to vector<16xf32>
    %63 = vector.shape_cast %62 : vector<16xf32> to vector<16x1xf32>
    %cst_27 = arith.constant 2.400000e+01 : f32
    %64 = vector.broadcast %cst_27 : f32 to vector<16x1xf32>
    %65 = arith.divf %63, %64 : vector<16x1xf32>
    %66 = vector.broadcast %65 : vector<16x1xf32> to vector<16x24xf32>
    %67 = arith.subf %59, %66 : vector<16x24xf32>
    %68 = arith.mulf %67, %67 : vector<16x24xf32>
    %cst_28 = arith.constant dense<0.000000e+00> : vector<16xf32>
    %69 = vector.multi_reduction <add>, %68, %cst_28 [1] : vector<16x24xf32> to vector<16xf32>
    %70 = vector.shape_cast %69 : vector<16xf32> to vector<16x1xf32>
    %cst_29 = arith.constant 2.400000e+01 : f32
    %71 = vector.broadcast %cst_29 : f32 to vector<16x1xf32>
    %72 = arith.divf %70, %71 : vector<16x1xf32>
    %73 = vector.broadcast %65 : vector<16x1xf32> to vector<16x24xf32>
    %74 = arith.subf %59, %73 : vector<16x24xf32>
    %cst_30 = arith.constant 9.99999974E-6 : f32
    %75 = vector.broadcast %cst_30 : f32 to vector<16x1xf32>
    %76 = arith.addf %72, %75 : vector<16x1xf32>
    %77 = math.rsqrt %76 : vector<16x1xf32>
    %78 = vector.broadcast %77 : vector<16x1xf32> to vector<16x24xf32>
    %79 = arith.mulf %74, %78 : vector<16x24xf32>
    %80 = vector.broadcast %60 : vector<1x24xf32> to vector<16x24xf32>
    %81 = arith.mulf %79, %80 : vector<16x24xf32>
    %82 = vector.broadcast %61 : vector<1x24xf32> to vector<16x24xf32>
    %83 = arith.addf %81, %82 : vector<16x24xf32>
    %84 = tpu.concatenate %30, %83 in 1 : vector<16x24xf32>, vector<16x24xf32> -> vector<16x48xf32>
    %c0_31 = arith.constant 0 : index
    %c0_32 = arith.constant 0 : index
    %c0_33 = arith.constant 0 : index
    %85 = vector.load %arg12[%c0_31, %c0_32, %c0_33] : memref<2x48x512xf32, #tpu.memory_space<vmem>>, vector<1x48x512xf32>
    %86 = vector.shape_cast %85 : vector<1x48x512xf32> to vector<48x512xf32>
    %c0_34 = arith.constant 0 : index
    %c0_35 = arith.constant 0 : index
    %c0_36 = arith.constant 0 : index
    %87 = vector.load %arg11[%c0_34, %c0_35, %c0_36] : memref<2x48x512xf32, #tpu.memory_space<vmem>>, vector<1x48x512xf32>
    %88 = vector.shape_cast %87 : vector<1x48x512xf32> to vector<48x512xf32>
    %cst_37 = arith.constant dense<0.000000e+00> : vector<16x512xf32>
    %89 = tpu.matmul %84, %88, %cst_37 {dimension_numbers = #tpu.dot_dimension_numbers<[1], [0], [0], [1], [0, 0, 1, 1], [], []>} : vector<16x48xf32>, vector<48x512xf32>, vector<16x512xf32> -> vector<16x512xf32>
    %c0_38 = arith.constant 0 : index
    %c0_39 = arith.constant 0 : index
    %c0_40 = arith.constant 0 : index
    %90 = vector.load %arg13[%c0_38, %c0_39, %c0_40] : memref<2x1x512xf32, #tpu.memory_space<vmem>>, vector<1x1x512xf32>
    %91 = vector.shape_cast %90 : vector<1x1x512xf32> to vector<1x512xf32>
    %92 = vector.broadcast %91 : vector<1x512xf32> to vector<16x512xf32>
    %93 = arith.addf %89, %92 : vector<16x512xf32>
    %94 = vector.shape_cast %93 : vector<16x512xf32> to vector<8x2x512xf32>
    %cst_41 = arith.constant 0.000000e+00 : f32
    %95 = vector.broadcast %cst_41 : f32 to vector<2x48xf32>
    %cst_42 = arith.constant 0.000000e+00 : f32
    %96 = vector.broadcast %cst_42 : f32 to vector<2x48xf32>
    %97 = vector.extract_strided_slice %94 {offsets = [0, 0, 0], sizes = [1, 2, 512], strides = [1, 1, 1]} : vector<8x2x512xf32> to vector<1x2x512xf32>
    %98 = vector.shape_cast %97 : vector<1x2x512xf32> to vector<2x512xf32>
    %cst_43 = arith.constant dense<0.000000e+00> : vector<2x512xf32>
    %99 = tpu.matmul %95, %86, %cst_43 {dimension_numbers = #tpu.dot_dimension_numbers<[1], [0], [0], [1], [0, 0, 1, 1], [], []>} : vector<2x48xf32>, vector<48x512xf32>, vector<2x512xf32> -> vector<2x512xf32>
    %100 = arith.addf %98, %99 : vector<2x512xf32>
    %101 = vector.extract_strided_slice %100 {offsets = [0, 0], sizes = [2, 48], strides = [1, 1]} : vector<2x512xf32> to vector<2x48xf32>
    %102 = arith.negf %101 : vector<2x48xf32>
    %103 = math.exp %102 : vector<2x48xf32>
    %cst_44 = arith.constant 1.000000e+00 : f32
    %104 = vector.broadcast %cst_44 : f32 to vector<2x48xf32>
    %105 = arith.addf %104, %103 : vector<2x48xf32>
    %106 = arith.divf %104, %105 : vector<2x48xf32>
    %107 = vector.extract_strided_slice %100 {offsets = [0, 128], sizes = [2, 48], strides = [1, 1]} : vector<2x512xf32> to vector<2x48xf32>
    %108 = arith.negf %107 : vector<2x48xf32>
    %109 = math.exp %108 : vector<2x48xf32>
    %cst_45 = arith.constant 1.000000e+00 : f32
    %110 = vector.broadcast %cst_45 : f32 to vector<2x48xf32>
    %111 = arith.addf %110, %109 : vector<2x48xf32>
    %112 = arith.divf %110, %111 : vector<2x48xf32>
    %113 = vector.extract_strided_slice %100 {offsets = [0, 256], sizes = [2, 48], strides = [1, 1]} : vector<2x512xf32> to vector<2x48xf32>
    %114 = math.tanh %113 : vector<2x48xf32>
    %115 = vector.extract_strided_slice %100 {offsets = [0, 384], sizes = [2, 48], strides = [1, 1]} : vector<2x512xf32> to vector<2x48xf32>
    %116 = arith.negf %115 : vector<2x48xf32>
    %117 = math.exp %116 : vector<2x48xf32>
    %cst_46 = arith.constant 1.000000e+00 : f32
    %118 = vector.broadcast %cst_46 : f32 to vector<2x48xf32>
    %119 = arith.addf %118, %117 : vector<2x48xf32>
    %120 = arith.divf %118, %119 : vector<2x48xf32>
    %121 = arith.mulf %112, %96 : vector<2x48xf32>
    %122 = arith.mulf %106, %114 : vector<2x48xf32>
    %123 = arith.addf %121, %122 : vector<2x48xf32>
    %124 = math.tanh %123 : vector<2x48xf32>
    %125 = arith.mulf %120, %124 : vector<2x48xf32>
    %126 = vector.extract_strided_slice %94 {offsets = [1, 0, 0], sizes = [1, 2, 512], strides = [1, 1, 1]} : vector<8x2x512xf32> to vector<1x2x512xf32>
    %127 = vector.shape_cast %126 : vector<1x2x512xf32> to vector<2x512xf32>
    %cst_47 = arith.constant dense<0.000000e+00> : vector<2x512xf32>
    %128 = tpu.matmul %125, %86, %cst_47 {dimension_numbers = #tpu.dot_dimension_numbers<[1], [0], [0], [1], [0, 0, 1, 1], [], []>} : vector<2x48xf32>, vector<48x512xf32>, vector<2x512xf32> -> vector<2x512xf32>
    %129 = arith.addf %127, %128 : vector<2x512xf32>
    %130 = vector.extract_strided_slice %129 {offsets = [0, 0], sizes = [2, 48], strides = [1, 1]} : vector<2x512xf32> to vector<2x48xf32>
    %131 = arith.negf %130 : vector<2x48xf32>
    %132 = math.exp %131 : vector<2x48xf32>
    %cst_48 = arith.constant 1.000000e+00 : f32
    %133 = vector.broadcast %cst_48 : f32 to vector<2x48xf32>
    %134 = arith.addf %133, %132 : vector<2x48xf32>
    %135 = arith.divf %133, %134 : vector<2x48xf32>
    %136 = vector.extract_strided_slice %129 {offsets = [0, 128], sizes = [2, 48], strides = [1, 1]} : vector<2x512xf32> to vector<2x48xf32>
    %137 = arith.negf %136 : vector<2x48xf32>
    %138 = math.exp %137 : vector<2x48xf32>
    %cst_49 = arith.constant 1.000000e+00 : f32
    %139 = vector.broadcast %cst_49 : f32 to vector<2x48xf32>
    %140 = arith.addf %139, %138 : vector<2x48xf32>
    %141 = arith.divf %139, %140 : vector<2x48xf32>
    %142 = vector.extract_strided_slice %129 {offsets = [0, 256], sizes = [2, 48], strides = [1, 1]} : vector<2x512xf32> to vector<2x48xf32>
    %143 = math.tanh %142 : vector<2x48xf32>
    %144 = vector.extract_strided_slice %129 {offsets = [0, 384], sizes = [2, 48], strides = [1, 1]} : vector<2x512xf32> to vector<2x48xf32>
    %145 = arith.negf %144 : vector<2x48xf32>
    %146 = math.exp %145 : vector<2x48xf32>
    %cst_50 = arith.constant 1.000000e+00 : f32
    %147 = vector.broadcast %cst_50 : f32 to vector<2x48xf32>
    %148 = arith.addf %147, %146 : vector<2x48xf32>
    %149 = arith.divf %147, %148 : vector<2x48xf32>
    %150 = arith.mulf %141, %123 : vector<2x48xf32>
    %151 = arith.mulf %135, %143 : vector<2x48xf32>
    %152 = arith.addf %150, %151 : vector<2x48xf32>
    %153 = math.tanh %152 : vector<2x48xf32>
    %154 = arith.mulf %149, %153 : vector<2x48xf32>
    %155 = vector.extract_strided_slice %94 {offsets = [2, 0, 0], sizes = [1, 2, 512], strides = [1, 1, 1]} : vector<8x2x512xf32> to vector<1x2x512xf32>
    %156 = vector.shape_cast %155 : vector<1x2x512xf32> to vector<2x512xf32>
    %cst_51 = arith.constant dense<0.000000e+00> : vector<2x512xf32>
    %157 = tpu.matmul %154, %86, %cst_51 {dimension_numbers = #tpu.dot_dimension_numbers<[1], [0], [0], [1], [0, 0, 1, 1], [], []>} : vector<2x48xf32>, vector<48x512xf32>, vector<2x512xf32> -> vector<2x512xf32>
    %158 = arith.addf %156, %157 : vector<2x512xf32>
    %159 = vector.extract_strided_slice %158 {offsets = [0, 0], sizes = [2, 48], strides = [1, 1]} : vector<2x512xf32> to vector<2x48xf32>
    %160 = arith.negf %159 : vector<2x48xf32>
    %161 = math.exp %160 : vector<2x48xf32>
    %cst_52 = arith.constant 1.000000e+00 : f32
    %162 = vector.broadcast %cst_52 : f32 to vector<2x48xf32>
    %163 = arith.addf %162, %161 : vector<2x48xf32>
    %164 = arith.divf %162, %163 : vector<2x48xf32>
    %165 = vector.extract_strided_slice %158 {offsets = [0, 128], sizes = [2, 48], strides = [1, 1]} : vector<2x512xf32> to vector<2x48xf32>
    %166 = arith.negf %165 : vector<2x48xf32>
    %167 = math.exp %166 : vector<2x48xf32>
    %cst_53 = arith.constant 1.000000e+00 : f32
    %168 = vector.broadcast %cst_53 : f32 to vector<2x48xf32>
    %169 = arith.addf %168, %167 : vector<2x48xf32>
    %170 = arith.divf %168, %169 : vector<2x48xf32>
    %171 = vector.extract_strided_slice %158 {offsets = [0, 256], sizes = [2, 48], strides = [1, 1]} : vector<2x512xf32> to vector<2x48xf32>
    %172 = math.tanh %171 : vector<2x48xf32>
    %173 = vector.extract_strided_slice %158 {offsets = [0, 384], sizes = [2, 48], strides = [1, 1]} : vector<2x512xf32> to vector<2x48xf32>
    %174 = arith.negf %173 : vector<2x48xf32>
    %175 = math.exp %174 : vector<2x48xf32>
    %cst_54 = arith.constant 1.000000e+00 : f32
    %176 = vector.broadcast %cst_54 : f32 to vector<2x48xf32>
    %177 = arith.addf %176, %175 : vector<2x48xf32>
    %178 = arith.divf %176, %177 : vector<2x48xf32>
    %179 = arith.mulf %170, %152 : vector<2x48xf32>
    %180 = arith.mulf %164, %172 : vector<2x48xf32>
    %181 = arith.addf %179, %180 : vector<2x48xf32>
    %182 = math.tanh %181 : vector<2x48xf32>
    %183 = arith.mulf %178, %182 : vector<2x48xf32>
    %184 = vector.extract_strided_slice %94 {offsets = [3, 0, 0], sizes = [1, 2, 512], strides = [1, 1, 1]} : vector<8x2x512xf32> to vector<1x2x512xf32>
    %185 = vector.shape_cast %184 : vector<1x2x512xf32> to vector<2x512xf32>
    %cst_55 = arith.constant dense<0.000000e+00> : vector<2x512xf32>
    %186 = tpu.matmul %183, %86, %cst_55 {dimension_numbers = #tpu.dot_dimension_numbers<[1], [0], [0], [1], [0, 0, 1, 1], [], []>} : vector<2x48xf32>, vector<48x512xf32>, vector<2x512xf32> -> vector<2x512xf32>
    %187 = arith.addf %185, %186 : vector<2x512xf32>
    %188 = vector.extract_strided_slice %187 {offsets = [0, 0], sizes = [2, 48], strides = [1, 1]} : vector<2x512xf32> to vector<2x48xf32>
    %189 = arith.negf %188 : vector<2x48xf32>
    %190 = math.exp %189 : vector<2x48xf32>
    %cst_56 = arith.constant 1.000000e+00 : f32
    %191 = vector.broadcast %cst_56 : f32 to vector<2x48xf32>
    %192 = arith.addf %191, %190 : vector<2x48xf32>
    %193 = arith.divf %191, %192 : vector<2x48xf32>
    %194 = vector.extract_strided_slice %187 {offsets = [0, 128], sizes = [2, 48], strides = [1, 1]} : vector<2x512xf32> to vector<2x48xf32>
    %195 = arith.negf %194 : vector<2x48xf32>
    %196 = math.exp %195 : vector<2x48xf32>
    %cst_57 = arith.constant 1.000000e+00 : f32
    %197 = vector.broadcast %cst_57 : f32 to vector<2x48xf32>
    %198 = arith.addf %197, %196 : vector<2x48xf32>
    %199 = arith.divf %197, %198 : vector<2x48xf32>
    %200 = vector.extract_strided_slice %187 {offsets = [0, 256], sizes = [2, 48], strides = [1, 1]} : vector<2x512xf32> to vector<2x48xf32>
    %201 = math.tanh %200 : vector<2x48xf32>
    %202 = vector.extract_strided_slice %187 {offsets = [0, 384], sizes = [2, 48], strides = [1, 1]} : vector<2x512xf32> to vector<2x48xf32>
    %203 = arith.negf %202 : vector<2x48xf32>
    %204 = math.exp %203 : vector<2x48xf32>
    %cst_58 = arith.constant 1.000000e+00 : f32
    %205 = vector.broadcast %cst_58 : f32 to vector<2x48xf32>
    %206 = arith.addf %205, %204 : vector<2x48xf32>
    %207 = arith.divf %205, %206 : vector<2x48xf32>
    %208 = arith.mulf %199, %181 : vector<2x48xf32>
    %209 = arith.mulf %193, %201 : vector<2x48xf32>
    %210 = arith.addf %208, %209 : vector<2x48xf32>
    %211 = math.tanh %210 : vector<2x48xf32>
    %212 = arith.mulf %207, %211 : vector<2x48xf32>
    %213 = vector.extract_strided_slice %94 {offsets = [4, 0, 0], sizes = [1, 2, 512], strides = [1, 1, 1]} : vector<8x2x512xf32> to vector<1x2x512xf32>
    %214 = vector.shape_cast %213 : vector<1x2x512xf32> to vector<2x512xf32>
    %cst_59 = arith.constant dense<0.000000e+00> : vector<2x512xf32>
    %215 = tpu.matmul %212, %86, %cst_59 {dimension_numbers = #tpu.dot_dimension_numbers<[1], [0], [0], [1], [0, 0, 1, 1], [], []>} : vector<2x48xf32>, vector<48x512xf32>, vector<2x512xf32> -> vector<2x512xf32>
    %216 = arith.addf %214, %215 : vector<2x512xf32>
    %217 = vector.extract_strided_slice %216 {offsets = [0, 0], sizes = [2, 48], strides = [1, 1]} : vector<2x512xf32> to vector<2x48xf32>
    %218 = arith.negf %217 : vector<2x48xf32>
    %219 = math.exp %218 : vector<2x48xf32>
    %cst_60 = arith.constant 1.000000e+00 : f32
    %220 = vector.broadcast %cst_60 : f32 to vector<2x48xf32>
    %221 = arith.addf %220, %219 : vector<2x48xf32>
    %222 = arith.divf %220, %221 : vector<2x48xf32>
    %223 = vector.extract_strided_slice %216 {offsets = [0, 128], sizes = [2, 48], strides = [1, 1]} : vector<2x512xf32> to vector<2x48xf32>
    %224 = arith.negf %223 : vector<2x48xf32>
    %225 = math.exp %224 : vector<2x48xf32>
    %cst_61 = arith.constant 1.000000e+00 : f32
    %226 = vector.broadcast %cst_61 : f32 to vector<2x48xf32>
    %227 = arith.addf %226, %225 : vector<2x48xf32>
    %228 = arith.divf %226, %227 : vector<2x48xf32>
    %229 = vector.extract_strided_slice %216 {offsets = [0, 256], sizes = [2, 48], strides = [1, 1]} : vector<2x512xf32> to vector<2x48xf32>
    %230 = math.tanh %229 : vector<2x48xf32>
    %231 = vector.extract_strided_slice %216 {offsets = [0, 384], sizes = [2, 48], strides = [1, 1]} : vector<2x512xf32> to vector<2x48xf32>
    %232 = arith.negf %231 : vector<2x48xf32>
    %233 = math.exp %232 : vector<2x48xf32>
    %cst_62 = arith.constant 1.000000e+00 : f32
    %234 = vector.broadcast %cst_62 : f32 to vector<2x48xf32>
    %235 = arith.addf %234, %233 : vector<2x48xf32>
    %236 = arith.divf %234, %235 : vector<2x48xf32>
    %237 = arith.mulf %228, %210 : vector<2x48xf32>
    %238 = arith.mulf %222, %230 : vector<2x48xf32>
    %239 = arith.addf %237, %238 : vector<2x48xf32>
    %240 = math.tanh %239 : vector<2x48xf32>
    %241 = arith.mulf %236, %240 : vector<2x48xf32>
    %242 = vector.extract_strided_slice %94 {offsets = [5, 0, 0], sizes = [1, 2, 512], strides = [1, 1, 1]} : vector<8x2x512xf32> to vector<1x2x512xf32>
    %243 = vector.shape_cast %242 : vector<1x2x512xf32> to vector<2x512xf32>
    %cst_63 = arith.constant dense<0.000000e+00> : vector<2x512xf32>
    %244 = tpu.matmul %241, %86, %cst_63 {dimension_numbers = #tpu.dot_dimension_numbers<[1], [0], [0], [1], [0, 0, 1, 1], [], []>} : vector<2x48xf32>, vector<48x512xf32>, vector<2x512xf32> -> vector<2x512xf32>
    %245 = arith.addf %243, %244 : vector<2x512xf32>
    %246 = vector.extract_strided_slice %245 {offsets = [0, 0], sizes = [2, 48], strides = [1, 1]} : vector<2x512xf32> to vector<2x48xf32>
    %247 = arith.negf %246 : vector<2x48xf32>
    %248 = math.exp %247 : vector<2x48xf32>
    %cst_64 = arith.constant 1.000000e+00 : f32
    %249 = vector.broadcast %cst_64 : f32 to vector<2x48xf32>
    %250 = arith.addf %249, %248 : vector<2x48xf32>
    %251 = arith.divf %249, %250 : vector<2x48xf32>
    %252 = vector.extract_strided_slice %245 {offsets = [0, 128], sizes = [2, 48], strides = [1, 1]} : vector<2x512xf32> to vector<2x48xf32>
    %253 = arith.negf %252 : vector<2x48xf32>
    %254 = math.exp %253 : vector<2x48xf32>
    %cst_65 = arith.constant 1.000000e+00 : f32
    %255 = vector.broadcast %cst_65 : f32 to vector<2x48xf32>
    %256 = arith.addf %255, %254 : vector<2x48xf32>
    %257 = arith.divf %255, %256 : vector<2x48xf32>
    %258 = vector.extract_strided_slice %245 {offsets = [0, 256], sizes = [2, 48], strides = [1, 1]} : vector<2x512xf32> to vector<2x48xf32>
    %259 = math.tanh %258 : vector<2x48xf32>
    %260 = vector.extract_strided_slice %245 {offsets = [0, 384], sizes = [2, 48], strides = [1, 1]} : vector<2x512xf32> to vector<2x48xf32>
    %261 = arith.negf %260 : vector<2x48xf32>
    %262 = math.exp %261 : vector<2x48xf32>
    %cst_66 = arith.constant 1.000000e+00 : f32
    %263 = vector.broadcast %cst_66 : f32 to vector<2x48xf32>
    %264 = arith.addf %263, %262 : vector<2x48xf32>
    %265 = arith.divf %263, %264 : vector<2x48xf32>
    %266 = arith.mulf %257, %239 : vector<2x48xf32>
    %267 = arith.mulf %251, %259 : vector<2x48xf32>
    %268 = arith.addf %266, %267 : vector<2x48xf32>
    %269 = math.tanh %268 : vector<2x48xf32>
    %270 = arith.mulf %265, %269 : vector<2x48xf32>
    %271 = vector.extract_strided_slice %94 {offsets = [6, 0, 0], sizes = [1, 2, 512], strides = [1, 1, 1]} : vector<8x2x512xf32> to vector<1x2x512xf32>
    %272 = vector.shape_cast %271 : vector<1x2x512xf32> to vector<2x512xf32>
    %cst_67 = arith.constant dense<0.000000e+00> : vector<2x512xf32>
    %273 = tpu.matmul %270, %86, %cst_67 {dimension_numbers = #tpu.dot_dimension_numbers<[1], [0], [0], [1], [0, 0, 1, 1], [], []>} : vector<2x48xf32>, vector<48x512xf32>, vector<2x512xf32> -> vector<2x512xf32>
    %274 = arith.addf %272, %273 : vector<2x512xf32>
    %275 = vector.extract_strided_slice %274 {offsets = [0, 0], sizes = [2, 48], strides = [1, 1]} : vector<2x512xf32> to vector<2x48xf32>
    %276 = arith.negf %275 : vector<2x48xf32>
    %277 = math.exp %276 : vector<2x48xf32>
    %cst_68 = arith.constant 1.000000e+00 : f32
    %278 = vector.broadcast %cst_68 : f32 to vector<2x48xf32>
    %279 = arith.addf %278, %277 : vector<2x48xf32>
    %280 = arith.divf %278, %279 : vector<2x48xf32>
    %281 = vector.extract_strided_slice %274 {offsets = [0, 128], sizes = [2, 48], strides = [1, 1]} : vector<2x512xf32> to vector<2x48xf32>
    %282 = arith.negf %281 : vector<2x48xf32>
    %283 = math.exp %282 : vector<2x48xf32>
    %cst_69 = arith.constant 1.000000e+00 : f32
    %284 = vector.broadcast %cst_69 : f32 to vector<2x48xf32>
    %285 = arith.addf %284, %283 : vector<2x48xf32>
    %286 = arith.divf %284, %285 : vector<2x48xf32>
    %287 = vector.extract_strided_slice %274 {offsets = [0, 256], sizes = [2, 48], strides = [1, 1]} : vector<2x512xf32> to vector<2x48xf32>
    %288 = math.tanh %287 : vector<2x48xf32>
    %289 = vector.extract_strided_slice %274 {offsets = [0, 384], sizes = [2, 48], strides = [1, 1]} : vector<2x512xf32> to vector<2x48xf32>
    %290 = arith.negf %289 : vector<2x48xf32>
    %291 = math.exp %290 : vector<2x48xf32>
    %cst_70 = arith.constant 1.000000e+00 : f32
    %292 = vector.broadcast %cst_70 : f32 to vector<2x48xf32>
    %293 = arith.addf %292, %291 : vector<2x48xf32>
    %294 = arith.divf %292, %293 : vector<2x48xf32>
    %295 = arith.mulf %286, %268 : vector<2x48xf32>
    %296 = arith.mulf %280, %288 : vector<2x48xf32>
    %297 = arith.addf %295, %296 : vector<2x48xf32>
    %298 = math.tanh %297 : vector<2x48xf32>
    %299 = arith.mulf %294, %298 : vector<2x48xf32>
    %300 = vector.extract_strided_slice %94 {offsets = [7, 0, 0], sizes = [1, 2, 512], strides = [1, 1, 1]} : vector<8x2x512xf32> to vector<1x2x512xf32>
    %301 = vector.shape_cast %300 : vector<1x2x512xf32> to vector<2x512xf32>
    %cst_71 = arith.constant dense<0.000000e+00> : vector<2x512xf32>
    %302 = tpu.matmul %299, %86, %cst_71 {dimension_numbers = #tpu.dot_dimension_numbers<[1], [0], [0], [1], [0, 0, 1, 1], [], []>} : vector<2x48xf32>, vector<48x512xf32>, vector<2x512xf32> -> vector<2x512xf32>
    %303 = arith.addf %301, %302 : vector<2x512xf32>
    %304 = vector.extract_strided_slice %303 {offsets = [0, 0], sizes = [2, 48], strides = [1, 1]} : vector<2x512xf32> to vector<2x48xf32>
    %305 = arith.negf %304 : vector<2x48xf32>
    %306 = math.exp %305 : vector<2x48xf32>
    %cst_72 = arith.constant 1.000000e+00 : f32
    %307 = vector.broadcast %cst_72 : f32 to vector<2x48xf32>
    %308 = arith.addf %307, %306 : vector<2x48xf32>
    %309 = arith.divf %307, %308 : vector<2x48xf32>
    %310 = vector.extract_strided_slice %303 {offsets = [0, 128], sizes = [2, 48], strides = [1, 1]} : vector<2x512xf32> to vector<2x48xf32>
    %311 = arith.negf %310 : vector<2x48xf32>
    %312 = math.exp %311 : vector<2x48xf32>
    %cst_73 = arith.constant 1.000000e+00 : f32
    %313 = vector.broadcast %cst_73 : f32 to vector<2x48xf32>
    %314 = arith.addf %313, %312 : vector<2x48xf32>
    %315 = arith.divf %313, %314 : vector<2x48xf32>
    %316 = vector.extract_strided_slice %303 {offsets = [0, 256], sizes = [2, 48], strides = [1, 1]} : vector<2x512xf32> to vector<2x48xf32>
    %317 = math.tanh %316 : vector<2x48xf32>
    %318 = vector.extract_strided_slice %303 {offsets = [0, 384], sizes = [2, 48], strides = [1, 1]} : vector<2x512xf32> to vector<2x48xf32>
    %319 = arith.negf %318 : vector<2x48xf32>
    %320 = math.exp %319 : vector<2x48xf32>
    %cst_74 = arith.constant 1.000000e+00 : f32
    %321 = vector.broadcast %cst_74 : f32 to vector<2x48xf32>
    %322 = arith.addf %321, %320 : vector<2x48xf32>
    %323 = arith.divf %321, %322 : vector<2x48xf32>
    %324 = arith.mulf %315, %297 : vector<2x48xf32>
    %325 = arith.mulf %309, %317 : vector<2x48xf32>
    %326 = arith.addf %324, %325 : vector<2x48xf32>
    %327 = math.tanh %326 : vector<2x48xf32>
    %328 = arith.mulf %323, %327 : vector<2x48xf32>
    %329 = tpu.concatenate %125, %154, %183, %212, %241, %270, %299, %328 in 0 : vector<2x48xf32>, vector<2x48xf32>, vector<2x48xf32>, vector<2x48xf32>, vector<2x48xf32>, vector<2x48xf32>, vector<2x48xf32>, vector<2x48xf32> -> vector<16x48xf32>
    %c1 = arith.constant 1 : index
    %c0_75 = arith.constant 0 : index
    %c0_76 = arith.constant 0 : index
    %330 = vector.load %arg12[%c1, %c0_75, %c0_76] : memref<2x48x512xf32, #tpu.memory_space<vmem>>, vector<1x48x512xf32>
    %331 = vector.shape_cast %330 : vector<1x48x512xf32> to vector<48x512xf32>
    %c1_77 = arith.constant 1 : index
    %c0_78 = arith.constant 0 : index
    %c0_79 = arith.constant 0 : index
    %332 = vector.load %arg11[%c1_77, %c0_78, %c0_79] : memref<2x48x512xf32, #tpu.memory_space<vmem>>, vector<1x48x512xf32>
    %333 = vector.shape_cast %332 : vector<1x48x512xf32> to vector<48x512xf32>
    %cst_80 = arith.constant dense<0.000000e+00> : vector<16x512xf32>
    %334 = tpu.matmul %329, %333, %cst_80 {dimension_numbers = #tpu.dot_dimension_numbers<[1], [0], [0], [1], [0, 0, 1, 1], [], []>} : vector<16x48xf32>, vector<48x512xf32>, vector<16x512xf32> -> vector<16x512xf32>
    %c1_81 = arith.constant 1 : index
    %c0_82 = arith.constant 0 : index
    %c0_83 = arith.constant 0 : index
    %335 = vector.load %arg13[%c1_81, %c0_82, %c0_83] : memref<2x1x512xf32, #tpu.memory_space<vmem>>, vector<1x1x512xf32>
    %336 = vector.shape_cast %335 : vector<1x1x512xf32> to vector<1x512xf32>
    %337 = vector.broadcast %336 : vector<1x512xf32> to vector<16x512xf32>
    %338 = arith.addf %334, %337 : vector<16x512xf32>
    %339 = vector.shape_cast %338 : vector<16x512xf32> to vector<8x2x512xf32>
    %cst_84 = arith.constant 0.000000e+00 : f32
    %340 = vector.broadcast %cst_84 : f32 to vector<2x48xf32>
    %cst_85 = arith.constant 0.000000e+00 : f32
    %341 = vector.broadcast %cst_85 : f32 to vector<2x48xf32>
    %342 = vector.extract_strided_slice %339 {offsets = [0, 0, 0], sizes = [1, 2, 512], strides = [1, 1, 1]} : vector<8x2x512xf32> to vector<1x2x512xf32>
    %343 = vector.shape_cast %342 : vector<1x2x512xf32> to vector<2x512xf32>
    %cst_86 = arith.constant dense<0.000000e+00> : vector<2x512xf32>
    %344 = tpu.matmul %340, %331, %cst_86 {dimension_numbers = #tpu.dot_dimension_numbers<[1], [0], [0], [1], [0, 0, 1, 1], [], []>} : vector<2x48xf32>, vector<48x512xf32>, vector<2x512xf32> -> vector<2x512xf32>
    %345 = arith.addf %343, %344 : vector<2x512xf32>
    %346 = vector.extract_strided_slice %345 {offsets = [0, 0], sizes = [2, 48], strides = [1, 1]} : vector<2x512xf32> to vector<2x48xf32>
    %347 = arith.negf %346 : vector<2x48xf32>
    %348 = math.exp %347 : vector<2x48xf32>
    %cst_87 = arith.constant 1.000000e+00 : f32
    %349 = vector.broadcast %cst_87 : f32 to vector<2x48xf32>
    %350 = arith.addf %349, %348 : vector<2x48xf32>
    %351 = arith.divf %349, %350 : vector<2x48xf32>
    %352 = vector.extract_strided_slice %345 {offsets = [0, 128], sizes = [2, 48], strides = [1, 1]} : vector<2x512xf32> to vector<2x48xf32>
    %353 = arith.negf %352 : vector<2x48xf32>
    %354 = math.exp %353 : vector<2x48xf32>
    %cst_88 = arith.constant 1.000000e+00 : f32
    %355 = vector.broadcast %cst_88 : f32 to vector<2x48xf32>
    %356 = arith.addf %355, %354 : vector<2x48xf32>
    %357 = arith.divf %355, %356 : vector<2x48xf32>
    %358 = vector.extract_strided_slice %345 {offsets = [0, 256], sizes = [2, 48], strides = [1, 1]} : vector<2x512xf32> to vector<2x48xf32>
    %359 = math.tanh %358 : vector<2x48xf32>
    %360 = vector.extract_strided_slice %345 {offsets = [0, 384], sizes = [2, 48], strides = [1, 1]} : vector<2x512xf32> to vector<2x48xf32>
    %361 = arith.negf %360 : vector<2x48xf32>
    %362 = math.exp %361 : vector<2x48xf32>
    %cst_89 = arith.constant 1.000000e+00 : f32
    %363 = vector.broadcast %cst_89 : f32 to vector<2x48xf32>
    %364 = arith.addf %363, %362 : vector<2x48xf32>
    %365 = arith.divf %363, %364 : vector<2x48xf32>
    %366 = arith.mulf %357, %341 : vector<2x48xf32>
    %367 = arith.mulf %351, %359 : vector<2x48xf32>
    %368 = arith.addf %366, %367 : vector<2x48xf32>
    %369 = math.tanh %368 : vector<2x48xf32>
    %370 = arith.mulf %365, %369 : vector<2x48xf32>
    %371 = vector.extract_strided_slice %339 {offsets = [1, 0, 0], sizes = [1, 2, 512], strides = [1, 1, 1]} : vector<8x2x512xf32> to vector<1x2x512xf32>
    %372 = vector.shape_cast %371 : vector<1x2x512xf32> to vector<2x512xf32>
    %cst_90 = arith.constant dense<0.000000e+00> : vector<2x512xf32>
    %373 = tpu.matmul %370, %331, %cst_90 {dimension_numbers = #tpu.dot_dimension_numbers<[1], [0], [0], [1], [0, 0, 1, 1], [], []>} : vector<2x48xf32>, vector<48x512xf32>, vector<2x512xf32> -> vector<2x512xf32>
    %374 = arith.addf %372, %373 : vector<2x512xf32>
    %375 = vector.extract_strided_slice %374 {offsets = [0, 0], sizes = [2, 48], strides = [1, 1]} : vector<2x512xf32> to vector<2x48xf32>
    %376 = arith.negf %375 : vector<2x48xf32>
    %377 = math.exp %376 : vector<2x48xf32>
    %cst_91 = arith.constant 1.000000e+00 : f32
    %378 = vector.broadcast %cst_91 : f32 to vector<2x48xf32>
    %379 = arith.addf %378, %377 : vector<2x48xf32>
    %380 = arith.divf %378, %379 : vector<2x48xf32>
    %381 = vector.extract_strided_slice %374 {offsets = [0, 128], sizes = [2, 48], strides = [1, 1]} : vector<2x512xf32> to vector<2x48xf32>
    %382 = arith.negf %381 : vector<2x48xf32>
    %383 = math.exp %382 : vector<2x48xf32>
    %cst_92 = arith.constant 1.000000e+00 : f32
    %384 = vector.broadcast %cst_92 : f32 to vector<2x48xf32>
    %385 = arith.addf %384, %383 : vector<2x48xf32>
    %386 = arith.divf %384, %385 : vector<2x48xf32>
    %387 = vector.extract_strided_slice %374 {offsets = [0, 256], sizes = [2, 48], strides = [1, 1]} : vector<2x512xf32> to vector<2x48xf32>
    %388 = math.tanh %387 : vector<2x48xf32>
    %389 = vector.extract_strided_slice %374 {offsets = [0, 384], sizes = [2, 48], strides = [1, 1]} : vector<2x512xf32> to vector<2x48xf32>
    %390 = arith.negf %389 : vector<2x48xf32>
    %391 = math.exp %390 : vector<2x48xf32>
    %cst_93 = arith.constant 1.000000e+00 : f32
    %392 = vector.broadcast %cst_93 : f32 to vector<2x48xf32>
    %393 = arith.addf %392, %391 : vector<2x48xf32>
    %394 = arith.divf %392, %393 : vector<2x48xf32>
    %395 = arith.mulf %386, %368 : vector<2x48xf32>
    %396 = arith.mulf %380, %388 : vector<2x48xf32>
    %397 = arith.addf %395, %396 : vector<2x48xf32>
    %398 = math.tanh %397 : vector<2x48xf32>
    %399 = arith.mulf %394, %398 : vector<2x48xf32>
    %400 = vector.extract_strided_slice %339 {offsets = [2, 0, 0], sizes = [1, 2, 512], strides = [1, 1, 1]} : vector<8x2x512xf32> to vector<1x2x512xf32>
    %401 = vector.shape_cast %400 : vector<1x2x512xf32> to vector<2x512xf32>
    %cst_94 = arith.constant dense<0.000000e+00> : vector<2x512xf32>
    %402 = tpu.matmul %399, %331, %cst_94 {dimension_numbers = #tpu.dot_dimension_numbers<[1], [0], [0], [1], [0, 0, 1, 1], [], []>} : vector<2x48xf32>, vector<48x512xf32>, vector<2x512xf32> -> vector<2x512xf32>
    %403 = arith.addf %401, %402 : vector<2x512xf32>
    %404 = vector.extract_strided_slice %403 {offsets = [0, 0], sizes = [2, 48], strides = [1, 1]} : vector<2x512xf32> to vector<2x48xf32>
    %405 = arith.negf %404 : vector<2x48xf32>
    %406 = math.exp %405 : vector<2x48xf32>
    %cst_95 = arith.constant 1.000000e+00 : f32
    %407 = vector.broadcast %cst_95 : f32 to vector<2x48xf32>
    %408 = arith.addf %407, %406 : vector<2x48xf32>
    %409 = arith.divf %407, %408 : vector<2x48xf32>
    %410 = vector.extract_strided_slice %403 {offsets = [0, 128], sizes = [2, 48], strides = [1, 1]} : vector<2x512xf32> to vector<2x48xf32>
    %411 = arith.negf %410 : vector<2x48xf32>
    %412 = math.exp %411 : vector<2x48xf32>
    %cst_96 = arith.constant 1.000000e+00 : f32
    %413 = vector.broadcast %cst_96 : f32 to vector<2x48xf32>
    %414 = arith.addf %413, %412 : vector<2x48xf32>
    %415 = arith.divf %413, %414 : vector<2x48xf32>
    %416 = vector.extract_strided_slice %403 {offsets = [0, 256], sizes = [2, 48], strides = [1, 1]} : vector<2x512xf32> to vector<2x48xf32>
    %417 = math.tanh %416 : vector<2x48xf32>
    %418 = vector.extract_strided_slice %403 {offsets = [0, 384], sizes = [2, 48], strides = [1, 1]} : vector<2x512xf32> to vector<2x48xf32>
    %419 = arith.negf %418 : vector<2x48xf32>
    %420 = math.exp %419 : vector<2x48xf32>
    %cst_97 = arith.constant 1.000000e+00 : f32
    %421 = vector.broadcast %cst_97 : f32 to vector<2x48xf32>
    %422 = arith.addf %421, %420 : vector<2x48xf32>
    %423 = arith.divf %421, %422 : vector<2x48xf32>
    %424 = arith.mulf %415, %397 : vector<2x48xf32>
    %425 = arith.mulf %409, %417 : vector<2x48xf32>
    %426 = arith.addf %424, %425 : vector<2x48xf32>
    %427 = math.tanh %426 : vector<2x48xf32>
    %428 = arith.mulf %423, %427 : vector<2x48xf32>
    %429 = vector.extract_strided_slice %339 {offsets = [3, 0, 0], sizes = [1, 2, 512], strides = [1, 1, 1]} : vector<8x2x512xf32> to vector<1x2x512xf32>
    %430 = vector.shape_cast %429 : vector<1x2x512xf32> to vector<2x512xf32>
    %cst_98 = arith.constant dense<0.000000e+00> : vector<2x512xf32>
    %431 = tpu.matmul %428, %331, %cst_98 {dimension_numbers = #tpu.dot_dimension_numbers<[1], [0], [0], [1], [0, 0, 1, 1], [], []>} : vector<2x48xf32>, vector<48x512xf32>, vector<2x512xf32> -> vector<2x512xf32>
    %432 = arith.addf %430, %431 : vector<2x512xf32>
    %433 = vector.extract_strided_slice %432 {offsets = [0, 0], sizes = [2, 48], strides = [1, 1]} : vector<2x512xf32> to vector<2x48xf32>
    %434 = arith.negf %433 : vector<2x48xf32>
    %435 = math.exp %434 : vector<2x48xf32>
    %cst_99 = arith.constant 1.000000e+00 : f32
    %436 = vector.broadcast %cst_99 : f32 to vector<2x48xf32>
    %437 = arith.addf %436, %435 : vector<2x48xf32>
    %438 = arith.divf %436, %437 : vector<2x48xf32>
    %439 = vector.extract_strided_slice %432 {offsets = [0, 128], sizes = [2, 48], strides = [1, 1]} : vector<2x512xf32> to vector<2x48xf32>
    %440 = arith.negf %439 : vector<2x48xf32>
    %441 = math.exp %440 : vector<2x48xf32>
    %cst_100 = arith.constant 1.000000e+00 : f32
    %442 = vector.broadcast %cst_100 : f32 to vector<2x48xf32>
    %443 = arith.addf %442, %441 : vector<2x48xf32>
    %444 = arith.divf %442, %443 : vector<2x48xf32>
    %445 = vector.extract_strided_slice %432 {offsets = [0, 256], sizes = [2, 48], strides = [1, 1]} : vector<2x512xf32> to vector<2x48xf32>
    %446 = math.tanh %445 : vector<2x48xf32>
    %447 = vector.extract_strided_slice %432 {offsets = [0, 384], sizes = [2, 48], strides = [1, 1]} : vector<2x512xf32> to vector<2x48xf32>
    %448 = arith.negf %447 : vector<2x48xf32>
    %449 = math.exp %448 : vector<2x48xf32>
    %cst_101 = arith.constant 1.000000e+00 : f32
    %450 = vector.broadcast %cst_101 : f32 to vector<2x48xf32>
    %451 = arith.addf %450, %449 : vector<2x48xf32>
    %452 = arith.divf %450, %451 : vector<2x48xf32>
    %453 = arith.mulf %444, %426 : vector<2x48xf32>
    %454 = arith.mulf %438, %446 : vector<2x48xf32>
    %455 = arith.addf %453, %454 : vector<2x48xf32>
    %456 = math.tanh %455 : vector<2x48xf32>
    %457 = arith.mulf %452, %456 : vector<2x48xf32>
    %458 = vector.extract_strided_slice %339 {offsets = [4, 0, 0], sizes = [1, 2, 512], strides = [1, 1, 1]} : vector<8x2x512xf32> to vector<1x2x512xf32>
    %459 = vector.shape_cast %458 : vector<1x2x512xf32> to vector<2x512xf32>
    %cst_102 = arith.constant dense<0.000000e+00> : vector<2x512xf32>
    %460 = tpu.matmul %457, %331, %cst_102 {dimension_numbers = #tpu.dot_dimension_numbers<[1], [0], [0], [1], [0, 0, 1, 1], [], []>} : vector<2x48xf32>, vector<48x512xf32>, vector<2x512xf32> -> vector<2x512xf32>
    %461 = arith.addf %459, %460 : vector<2x512xf32>
    %462 = vector.extract_strided_slice %461 {offsets = [0, 0], sizes = [2, 48], strides = [1, 1]} : vector<2x512xf32> to vector<2x48xf32>
    %463 = arith.negf %462 : vector<2x48xf32>
    %464 = math.exp %463 : vector<2x48xf32>
    %cst_103 = arith.constant 1.000000e+00 : f32
    %465 = vector.broadcast %cst_103 : f32 to vector<2x48xf32>
    %466 = arith.addf %465, %464 : vector<2x48xf32>
    %467 = arith.divf %465, %466 : vector<2x48xf32>
    %468 = vector.extract_strided_slice %461 {offsets = [0, 128], sizes = [2, 48], strides = [1, 1]} : vector<2x512xf32> to vector<2x48xf32>
    %469 = arith.negf %468 : vector<2x48xf32>
    %470 = math.exp %469 : vector<2x48xf32>
    %cst_104 = arith.constant 1.000000e+00 : f32
    %471 = vector.broadcast %cst_104 : f32 to vector<2x48xf32>
    %472 = arith.addf %471, %470 : vector<2x48xf32>
    %473 = arith.divf %471, %472 : vector<2x48xf32>
    %474 = vector.extract_strided_slice %461 {offsets = [0, 256], sizes = [2, 48], strides = [1, 1]} : vector<2x512xf32> to vector<2x48xf32>
    %475 = math.tanh %474 : vector<2x48xf32>
    %476 = vector.extract_strided_slice %461 {offsets = [0, 384], sizes = [2, 48], strides = [1, 1]} : vector<2x512xf32> to vector<2x48xf32>
    %477 = arith.negf %476 : vector<2x48xf32>
    %478 = math.exp %477 : vector<2x48xf32>
    %cst_105 = arith.constant 1.000000e+00 : f32
    %479 = vector.broadcast %cst_105 : f32 to vector<2x48xf32>
    %480 = arith.addf %479, %478 : vector<2x48xf32>
    %481 = arith.divf %479, %480 : vector<2x48xf32>
    %482 = arith.mulf %473, %455 : vector<2x48xf32>
    %483 = arith.mulf %467, %475 : vector<2x48xf32>
    %484 = arith.addf %482, %483 : vector<2x48xf32>
    %485 = math.tanh %484 : vector<2x48xf32>
    %486 = arith.mulf %481, %485 : vector<2x48xf32>
    %487 = vector.extract_strided_slice %339 {offsets = [5, 0, 0], sizes = [1, 2, 512], strides = [1, 1, 1]} : vector<8x2x512xf32> to vector<1x2x512xf32>
    %488 = vector.shape_cast %487 : vector<1x2x512xf32> to vector<2x512xf32>
    %cst_106 = arith.constant dense<0.000000e+00> : vector<2x512xf32>
    %489 = tpu.matmul %486, %331, %cst_106 {dimension_numbers = #tpu.dot_dimension_numbers<[1], [0], [0], [1], [0, 0, 1, 1], [], []>} : vector<2x48xf32>, vector<48x512xf32>, vector<2x512xf32> -> vector<2x512xf32>
    %490 = arith.addf %488, %489 : vector<2x512xf32>
    %491 = vector.extract_strided_slice %490 {offsets = [0, 0], sizes = [2, 48], strides = [1, 1]} : vector<2x512xf32> to vector<2x48xf32>
    %492 = arith.negf %491 : vector<2x48xf32>
    %493 = math.exp %492 : vector<2x48xf32>
    %cst_107 = arith.constant 1.000000e+00 : f32
    %494 = vector.broadcast %cst_107 : f32 to vector<2x48xf32>
    %495 = arith.addf %494, %493 : vector<2x48xf32>
    %496 = arith.divf %494, %495 : vector<2x48xf32>
    %497 = vector.extract_strided_slice %490 {offsets = [0, 128], sizes = [2, 48], strides = [1, 1]} : vector<2x512xf32> to vector<2x48xf32>
    %498 = arith.negf %497 : vector<2x48xf32>
    %499 = math.exp %498 : vector<2x48xf32>
    %cst_108 = arith.constant 1.000000e+00 : f32
    %500 = vector.broadcast %cst_108 : f32 to vector<2x48xf32>
    %501 = arith.addf %500, %499 : vector<2x48xf32>
    %502 = arith.divf %500, %501 : vector<2x48xf32>
    %503 = vector.extract_strided_slice %490 {offsets = [0, 256], sizes = [2, 48], strides = [1, 1]} : vector<2x512xf32> to vector<2x48xf32>
    %504 = math.tanh %503 : vector<2x48xf32>
    %505 = vector.extract_strided_slice %490 {offsets = [0, 384], sizes = [2, 48], strides = [1, 1]} : vector<2x512xf32> to vector<2x48xf32>
    %506 = arith.negf %505 : vector<2x48xf32>
    %507 = math.exp %506 : vector<2x48xf32>
    %cst_109 = arith.constant 1.000000e+00 : f32
    %508 = vector.broadcast %cst_109 : f32 to vector<2x48xf32>
    %509 = arith.addf %508, %507 : vector<2x48xf32>
    %510 = arith.divf %508, %509 : vector<2x48xf32>
    %511 = arith.mulf %502, %484 : vector<2x48xf32>
    %512 = arith.mulf %496, %504 : vector<2x48xf32>
    %513 = arith.addf %511, %512 : vector<2x48xf32>
    %514 = math.tanh %513 : vector<2x48xf32>
    %515 = arith.mulf %510, %514 : vector<2x48xf32>
    %516 = vector.extract_strided_slice %339 {offsets = [6, 0, 0], sizes = [1, 2, 512], strides = [1, 1, 1]} : vector<8x2x512xf32> to vector<1x2x512xf32>
    %517 = vector.shape_cast %516 : vector<1x2x512xf32> to vector<2x512xf32>
    %cst_110 = arith.constant dense<0.000000e+00> : vector<2x512xf32>
    %518 = tpu.matmul %515, %331, %cst_110 {dimension_numbers = #tpu.dot_dimension_numbers<[1], [0], [0], [1], [0, 0, 1, 1], [], []>} : vector<2x48xf32>, vector<48x512xf32>, vector<2x512xf32> -> vector<2x512xf32>
    %519 = arith.addf %517, %518 : vector<2x512xf32>
    %520 = vector.extract_strided_slice %519 {offsets = [0, 0], sizes = [2, 48], strides = [1, 1]} : vector<2x512xf32> to vector<2x48xf32>
    %521 = arith.negf %520 : vector<2x48xf32>
    %522 = math.exp %521 : vector<2x48xf32>
    %cst_111 = arith.constant 1.000000e+00 : f32
    %523 = vector.broadcast %cst_111 : f32 to vector<2x48xf32>
    %524 = arith.addf %523, %522 : vector<2x48xf32>
    %525 = arith.divf %523, %524 : vector<2x48xf32>
    %526 = vector.extract_strided_slice %519 {offsets = [0, 128], sizes = [2, 48], strides = [1, 1]} : vector<2x512xf32> to vector<2x48xf32>
    %527 = arith.negf %526 : vector<2x48xf32>
    %528 = math.exp %527 : vector<2x48xf32>
    %cst_112 = arith.constant 1.000000e+00 : f32
    %529 = vector.broadcast %cst_112 : f32 to vector<2x48xf32>
    %530 = arith.addf %529, %528 : vector<2x48xf32>
    %531 = arith.divf %529, %530 : vector<2x48xf32>
    %532 = vector.extract_strided_slice %519 {offsets = [0, 256], sizes = [2, 48], strides = [1, 1]} : vector<2x512xf32> to vector<2x48xf32>
    %533 = math.tanh %532 : vector<2x48xf32>
    %534 = vector.extract_strided_slice %519 {offsets = [0, 384], sizes = [2, 48], strides = [1, 1]} : vector<2x512xf32> to vector<2x48xf32>
    %535 = arith.negf %534 : vector<2x48xf32>
    %536 = math.exp %535 : vector<2x48xf32>
    %cst_113 = arith.constant 1.000000e+00 : f32
    %537 = vector.broadcast %cst_113 : f32 to vector<2x48xf32>
    %538 = arith.addf %537, %536 : vector<2x48xf32>
    %539 = arith.divf %537, %538 : vector<2x48xf32>
    %540 = arith.mulf %531, %513 : vector<2x48xf32>
    %541 = arith.mulf %525, %533 : vector<2x48xf32>
    %542 = arith.addf %540, %541 : vector<2x48xf32>
    %543 = math.tanh %542 : vector<2x48xf32>
    %544 = arith.mulf %539, %543 : vector<2x48xf32>
    %545 = vector.extract_strided_slice %339 {offsets = [7, 0, 0], sizes = [1, 2, 512], strides = [1, 1, 1]} : vector<8x2x512xf32> to vector<1x2x512xf32>
    %546 = vector.shape_cast %545 : vector<1x2x512xf32> to vector<2x512xf32>
    %cst_114 = arith.constant dense<0.000000e+00> : vector<2x512xf32>
    %547 = tpu.matmul %544, %331, %cst_114 {dimension_numbers = #tpu.dot_dimension_numbers<[1], [0], [0], [1], [0, 0, 1, 1], [], []>} : vector<2x48xf32>, vector<48x512xf32>, vector<2x512xf32> -> vector<2x512xf32>
    %548 = arith.addf %546, %547 : vector<2x512xf32>
    %549 = vector.extract_strided_slice %548 {offsets = [0, 0], sizes = [2, 48], strides = [1, 1]} : vector<2x512xf32> to vector<2x48xf32>
    %550 = arith.negf %549 : vector<2x48xf32>
    %551 = math.exp %550 : vector<2x48xf32>
    %cst_115 = arith.constant 1.000000e+00 : f32
    %552 = vector.broadcast %cst_115 : f32 to vector<2x48xf32>
    %553 = arith.addf %552, %551 : vector<2x48xf32>
    %554 = arith.divf %552, %553 : vector<2x48xf32>
    %555 = vector.extract_strided_slice %548 {offsets = [0, 128], sizes = [2, 48], strides = [1, 1]} : vector<2x512xf32> to vector<2x48xf32>
    %556 = arith.negf %555 : vector<2x48xf32>
    %557 = math.exp %556 : vector<2x48xf32>
    %cst_116 = arith.constant 1.000000e+00 : f32
    %558 = vector.broadcast %cst_116 : f32 to vector<2x48xf32>
    %559 = arith.addf %558, %557 : vector<2x48xf32>
    %560 = arith.divf %558, %559 : vector<2x48xf32>
    %561 = vector.extract_strided_slice %548 {offsets = [0, 256], sizes = [2, 48], strides = [1, 1]} : vector<2x512xf32> to vector<2x48xf32>
    %562 = math.tanh %561 : vector<2x48xf32>
    %563 = vector.extract_strided_slice %548 {offsets = [0, 384], sizes = [2, 48], strides = [1, 1]} : vector<2x512xf32> to vector<2x48xf32>
    %564 = arith.negf %563 : vector<2x48xf32>
    %565 = math.exp %564 : vector<2x48xf32>
    %cst_117 = arith.constant 1.000000e+00 : f32
    %566 = vector.broadcast %cst_117 : f32 to vector<2x48xf32>
    %567 = arith.addf %566, %565 : vector<2x48xf32>
    %568 = arith.divf %566, %567 : vector<2x48xf32>
    %569 = arith.mulf %560, %542 : vector<2x48xf32>
    %570 = arith.mulf %554, %562 : vector<2x48xf32>
    %571 = arith.addf %569, %570 : vector<2x48xf32>
    %572 = math.tanh %571 : vector<2x48xf32>
    %573 = arith.mulf %568, %572 : vector<2x48xf32>
    %574 = vector.shape_cast %370 : vector<2x48xf32> to vector<2x1x48xf32>
    %575 = vector.shape_cast %399 : vector<2x48xf32> to vector<2x1x48xf32>
    %576 = vector.shape_cast %428 : vector<2x48xf32> to vector<2x1x48xf32>
    %577 = vector.shape_cast %457 : vector<2x48xf32> to vector<2x1x48xf32>
    %578 = vector.shape_cast %486 : vector<2x48xf32> to vector<2x1x48xf32>
    %579 = vector.shape_cast %515 : vector<2x48xf32> to vector<2x1x48xf32>
    %580 = vector.shape_cast %544 : vector<2x48xf32> to vector<2x1x48xf32>
    %581 = vector.shape_cast %573 : vector<2x48xf32> to vector<2x1x48xf32>
    %582 = tpu.concatenate %574, %575, %576, %577, %578, %579, %580, %581 in 1 : vector<2x1x48xf32>, vector<2x1x48xf32>, vector<2x1x48xf32>, vector<2x1x48xf32>, vector<2x1x48xf32>, vector<2x1x48xf32>, vector<2x1x48xf32>, vector<2x1x48xf32> -> vector<2x8x48xf32>
    %c0_118 = arith.constant 0 : index
    %c0_119 = arith.constant 0 : index
    %583 = vector.load %arg14[%c0_118, %c0_119] : memref<1x48xf32, #tpu.memory_space<vmem>>, vector<1x48xf32>
    %584 = vector.shape_cast %583 : vector<1x48xf32> to vector<1x1x48xf32>
    %585 = vector.broadcast %584 : vector<1x1x48xf32> to vector<2x8x48xf32>
    %586 = arith.mulf %582, %585 : vector<2x8x48xf32>
    %cst_120 = arith.constant dense<0.000000e+00> : vector<2x8xf32>
    %587 = vector.multi_reduction <add>, %586, %cst_120 [2] : vector<2x8x48xf32> to vector<2x8xf32>
    %c0_121 = arith.constant 0 : index
    %c0_122 = arith.constant 0 : index
    %588 = vector.load %arg15[%c0_121, %c0_122] : memref<1x1xf32, #tpu.memory_space<vmem>>, vector<1x1xf32>
    %589 = vector.broadcast %588 : vector<1x1xf32> to vector<2x8xf32>
    %590 = arith.addf %587, %589 : vector<2x8xf32>
    %591 = arith.negf %590 : vector<2x8xf32>
    %592 = math.exp %591 : vector<2x8xf32>
    %cst_123 = arith.constant 1.000000e+00 : f32
    %593 = vector.broadcast %cst_123 : f32 to vector<2x8xf32>
    %594 = arith.addf %593, %592 : vector<2x8xf32>
    %595 = arith.divf %593, %594 : vector<2x8xf32>
    %c0_124 = arith.constant 0 : index
    %c0_125 = arith.constant 0 : index
    %596 = vector.load %arg16[%c0_124, %c0_125] : memref<2x8xf32, #tpu.memory_space<vmem>>, vector<2x8xf32>
    tpu.vector_store %arg16[%c0_124, %c0_125], %595 {strides = array<i32>} : memref<2x8xf32, #tpu.memory_space<vmem>>, vector<2x8xf32>,
    return
  }
  func.func @transform_0(%arg0: i32) -> (i32, i32, i32) {
    %c0_i32 = arith.constant 0 : i32
    %c0_i32_0 = arith.constant 0 : i32
    %c0_i32_1 = arith.constant 0 : i32
    %c0_i32_2 = arith.constant 0 : i32
    return %c0_i32, %c0_i32_0, %c0_i32_1 : i32, i32, i32
  }
  func.func @transform_1(%arg0: i32) -> (i32, i32, i32) {
    %c0_i32 = arith.constant 0 : i32
    %c0_i32_0 = arith.constant 0 : i32
    %c0_i32_1 = arith.constant 0 : i32
    %c0_i32_2 = arith.constant 0 : i32
    return %c0_i32, %c0_i32_0, %c0_i32_1 : i32, i32, i32
  }
  func.func @transform_2(%arg0: i32) -> (i32, i32) {
    %c0_i32 = arith.constant 0 : i32
    %c0_i32_0 = arith.constant 0 : i32
    %c0_i32_1 = arith.constant 0 : i32
    return %c0_i32, %c0_i32_0 : i32, i32
  }
  func.func @transform_3(%arg0: i32) -> (i32, i32) {
    %c0_i32 = arith.constant 0 : i32
    %c0_i32_0 = arith.constant 0 : i32
    %c0_i32_1 = arith.constant 0 : i32
    return %c0_i32, %c0_i32_0 : i32, i32
  }
  func.func @transform_4(%arg0: i32) -> (i32, i32) {
    %c0_i32 = arith.constant 0 : i32
    %c0_i32_0 = arith.constant 0 : i32
    %c0_i32_1 = arith.constant 0 : i32
    return %c0_i32, %c0_i32_0 : i32, i32
  }
  func.func @transform_5(%arg0: i32) -> (i32, i32) {
    %c0_i32 = arith.constant 0 : i32
    %c0_i32_0 = arith.constant 0 : i32
    %c0_i32_1 = arith.constant 0 : i32
    return %c0_i32, %c0_i32_0 : i32, i32
  }
  func.func @transform_6(%arg0: i32) -> (i32, i32) {
    %c0_i32 = arith.constant 0 : i32
    %c0_i32_0 = arith.constant 0 : i32
    %c0_i32_1 = arith.constant 0 : i32
    return %c0_i32, %c0_i32_0 : i32, i32
  }
  func.func @transform_7(%arg0: i32) -> (i32, i32) {
    %c0_i32 = arith.constant 0 : i32
    %c0_i32_0 = arith.constant 0 : i32
    %c0_i32_1 = arith.constant 0 : i32
    return %c0_i32, %c0_i32_0 : i32, i32
  }
  func.func @transform_8(%arg0: i32) -> (i32, i32) {
    %c0_i32 = arith.constant 0 : i32
    %c0_i32_0 = arith.constant 0 : i32
    %c0_i32_1 = arith.constant 0 : i32
    return %c0_i32, %c0_i32_0 : i32, i32
  }
  func.func @transform_9(%arg0: i32) -> (i32, i32) {
    %c0_i32 = arith.constant 0 : i32
    %c0_i32_0 = arith.constant 0 : i32
    %c0_i32_1 = arith.constant 0 : i32
    return %c0_i32, %c0_i32_0 : i32, i32
  }
  func.func @transform_10(%arg0: i32) -> (i32, i32, i32) {
    %c0_i32 = arith.constant 0 : i32
    %c0_i32_0 = arith.constant 0 : i32
    %c0_i32_1 = arith.constant 0 : i32
    %c0_i32_2 = arith.constant 0 : i32
    return %c0_i32, %c0_i32_0, %c0_i32_1 : i32, i32, i32
  }
  func.func @transform_11(%arg0: i32) -> (i32, i32, i32) {
    %c0_i32 = arith.constant 0 : i32
    %c0_i32_0 = arith.constant 0 : i32
    %c0_i32_1 = arith.constant 0 : i32
    %c0_i32_2 = arith.constant 0 : i32
    return %c0_i32, %c0_i32_0, %c0_i32_1 : i32, i32, i32
  }
  func.func @transform_12(%arg0: i32) -> (i32, i32, i32) {
    %c0_i32 = arith.constant 0 : i32
    %c0_i32_0 = arith.constant 0 : i32
    %c0_i32_1 = arith.constant 0 : i32
    %c0_i32_2 = arith.constant 0 : i32
    return %c0_i32, %c0_i32_0, %c0_i32_1 : i32, i32, i32
  }
  func.func @transform_13(%arg0: i32) -> (i32, i32) {
    %c0_i32 = arith.constant 0 : i32
    %c0_i32_0 = arith.constant 0 : i32
    %c0_i32_1 = arith.constant 0 : i32
    return %c0_i32, %c0_i32_0 : i32, i32
  }
  func.func @transform_14(%arg0: i32) -> (i32, i32) {
    %c0_i32 = arith.constant 0 : i32
    %c0_i32_0 = arith.constant 0 : i32
    %c0_i32_1 = arith.constant 0 : i32
    return %c0_i32, %c0_i32_0 : i32, i32
  }
  func.func @transform_15(%arg0: i32) -> (i32, i32) {
    %c0_i32 = arith.constant 0 : i32
    %c0_i32_0 = arith.constant 0 : i32
    %c0_i32_1 = arith.constant 0 : i32
    return %c0_i32, %c0_i32_0 : i32, i32
  }
}

</mosaic_0001>

<llo_original>
// kernel: custom_lstm_forward.1
$region0: #{custom_lstm_forward.1}
  #allocation0 [shape = 'u32[]', space=smem, size = 0x4, offset = 0x4, fixed_abs, tag = 'smem constant byte address 0x4 - core index']
  #allocation1 [shape = 'u32[144,128]{1,0:T(1,128)}', space=vmem, size = 0x12000, scoped, tag = 'internal scratch']
  #allocation2 [shape = 'f32[1,1]{1,0:T(1,128)S(1)}', space=vmem, size = 0x200, scoped, tag = 'scoped memory for custom_lstm_forward.1']
  %s0 = inlined_call_operand.vmem [shape: f32[8,2,80], index: 0, kind: input, shape index: {}]
  %s1 = inlined_call_operand.vmem [shape: f32[8,2,4], index: 1, kind: input, shape index: {}]
  %s2 = inlined_call_operand.vmem [shape: f32[80,24], index: 2, kind: input, shape index: {}]
  %s3 = inlined_call_operand.vmem [shape: f32[1,24], index: 3, kind: input, shape index: {}]
  %s4 = inlined_call_operand.vmem [shape: f32[1,24], index: 4, kind: input, shape index: {}]
  %s5 = inlined_call_operand.vmem [shape: f32[1,24], index: 5, kind: input, shape index: {}]
  %s6 = inlined_call_operand.vmem [shape: f32[4,24], index: 6, kind: input, shape index: {}]
  %s7 = inlined_call_operand.vmem [shape: f32[1,24], index: 7, kind: input, shape index: {}]
  %s8 = inlined_call_operand.vmem [shape: f32[1,24], index: 8, kind: input, shape index: {}]
  %s9 = inlined_call_operand.vmem [shape: f32[1,24], index: 9, kind: input, shape index: {}]
  %s10 = inlined_call_operand.vmem [shape: f32[2,48,512], index: 10, kind: input, shape index: {}]
  %s11 = inlined_call_operand.vmem [shape: f32[2,48,512], index: 11, kind: input, shape index: {}]
  %s12 = inlined_call_operand.vmem [shape: f32[2,1,512], index: 12, kind: input, shape index: {}]
  %s13 = inlined_call_operand.vmem [shape: f32[1,48], index: 13, kind: input, shape index: {}]
  %s14 = inlined_call_operand.<no memory space> [shape: f32[1,1], index: 14, kind: input, shape index: {}]
  %s15 = inlined_call_operand.hbm [shape: f32[2,8], index: 15, kind: output, shape index: {}]
  %s16 = sld [smem:[#allocation0]]
  $region70: #{custom_lstm_forward.1} parent=0
    _
  %s18 = ssub.s32 1, %s16
  %s19 = scalar_select 0, %s18, %s16
  %v20 = vstv %s14
  %21 = vst [vmem:[#allocation2] sm:$0x1] %v20
  $region1: #{custom_lstm_forward.1} parent=0
    #allocation3 [shape = 'u8[1024]{0}', space=vmem, size = 0x400, scoped, tag = 'output window, operand 0, single buffered']
    #allocation4 [shape = 's32[1]{0}', space=sflag, size = 0x4, scoped, tag = 'scoped memory for custom_lstm_forward.1']
    %22 = vsyncpa [#allocation4], 0
    // Predicated region
    $region2: #{custom_lstm_forward.1} parent=1 // pred_check
      _
    $region3: #{custom_lstm_forward.1} parent=1 // pred_check_branch
      %24 = sbr.rel (0) target = $region5
    $region4: #{custom_lstm_forward.1} parent=1 // pred_region
      _
    $region5: #{custom_lstm_forward.1} parent=1 // pred_fallthru
      _
    // Predicated region
    $region6: #{custom_lstm_forward.1} parent=1 // pred_check
      _
    $region7: #{custom_lstm_forward.1} parent=1 // pred_check_branch
      %26 = sbr.rel (0) target = $region9
    $region8: #{custom_lstm_forward.1} parent=1 // pred_region
      _
    $region9: #{custom_lstm_forward.1} parent=1 // pred_fallthru
      _
    // Predicated region
    $region10: #{custom_lstm_forward.1} parent=1 // pred_check
      _
    $region11: #{custom_lstm_forward.1} parent=1 // pred_check_branch
      %28 = sbr.rel (0) target = $region13
    $region12: #{custom_lstm_forward.1} parent=1 // pred_region
      _
    $region13: #{custom_lstm_forward.1} parent=1 // pred_fallthru
      _
    // Predicated region
    $region14: #{custom_lstm_forward.1} parent=1 // pred_check
      _
    $region15: #{custom_lstm_forward.1} parent=1 // pred_check_branch
      %30 = sbr.rel (0) target = $region17
    $region16: #{custom_lstm_forward.1} parent=1 // pred_region
      _
    $region17: #{custom_lstm_forward.1} parent=1 // pred_fallthru
      _
    // Predicated region
    $region18: #{custom_lstm_forward.1} parent=1 // pred_check
      _
    $region19: #{custom_lstm_forward.1} parent=1 // pred_check_branch
      %32 = sbr.rel (0) target = $region21
    $region20: #{custom_lstm_forward.1} parent=1 // pred_region
      _
    $region21: #{custom_lstm_forward.1} parent=1 // pred_fallthru
      _
    // Predicated region
    $region22: #{custom_lstm_forward.1} parent=1 // pred_check
      _
    $region23: #{custom_lstm_forward.1} parent=1 // pred_check_branch
      %34 = sbr.rel (0) target = $region25
    $region24: #{custom_lstm_forward.1} parent=1 // pred_region
      _
    $region25: #{custom_lstm_forward.1} parent=1 // pred_fallthru
      _
    // Predicated region
    $region26: #{custom_lstm_forward.1} parent=1 // pred_check
      _
    $region27: #{custom_lstm_forward.1} parent=1 // pred_check_branch
      %36 = sbr.rel (0) target = $region29
    $region28: #{custom_lstm_forward.1} parent=1 // pred_region
      _
    $region29: #{custom_lstm_forward.1} parent=1 // pred_fallthru
      _
    // Predicated region
    $region30: #{custom_lstm_forward.1} parent=1 // pred_check
      _
    $region31: #{custom_lstm_forward.1} parent=1 // pred_check_branch
      %38 = sbr.rel (0) target = $region33
    $region32: #{custom_lstm_forward.1} parent=1 // pred_region
      _
    $region33: #{custom_lstm_forward.1} parent=1 // pred_fallthru
      _
    // Predicated region
    $region34: #{custom_lstm_forward.1} parent=1 // pred_check
      _
    $region35: #{custom_lstm_forward.1} parent=1 // pred_check_branch
      %40 = sbr.rel (0) target = $region37
    $region36: #{custom_lstm_forward.1} parent=1 // pred_region
      _
    $region37: #{custom_lstm_forward.1} parent=1 // pred_fallthru
      _
    // Predicated region
    $region38: #{custom_lstm_forward.1} parent=1 // pred_check
      _
    $region39: #{custom_lstm_forward.1} parent=1 // pred_check_branch
      %42 = sbr.rel (0) target = $region41
    $region40: #{custom_lstm_forward.1} parent=1 // pred_region
      _
    $region41: #{custom_lstm_forward.1} parent=1 // pred_fallthru
      _
    // Predicated region
    $region42: #{custom_lstm_forward.1} parent=1 // pred_check
      _
    $region43: #{custom_lstm_forward.1} parent=1 // pred_check_branch
      %44 = sbr.rel (0) target = $region45
    $region44: #{custom_lstm_forward.1} parent=1 // pred_region
      _
    $region45: #{custom_lstm_forward.1} parent=1 // pred_fallthru
      _
    // Predicated region
    $region46: #{custom_lstm_forward.1} parent=1 // pred_check
      _
    $region47: #{custom_lstm_forward.1} parent=1 // pred_check_branch
      %46 = sbr.rel (0) target = $region49
    $region48: #{custom_lstm_forward.1} parent=1 // pred_region
      _
    $region49: #{custom_lstm_forward.1} parent=1 // pred_fallthru
      _
    // Predicated region
    $region50: #{custom_lstm_forward.1} parent=1 // pred_check
      _
    $region51: #{custom_lstm_forward.1} parent=1 // pred_check_branch
      %48 = sbr.rel (0) target = $region53
    $region52: #{custom_lstm_forward.1} parent=1 // pred_region
      _
    $region53: #{custom_lstm_forward.1} parent=1 // pred_fallthru
      _
    // Predicated region
    $region54: #{custom_lstm_forward.1} parent=1 // pred_check
      _
    $region55: #{custom_lstm_forward.1} parent=1 // pred_check_branch
      %50 = sbr.rel (0) target = $region57
    $region56: #{custom_lstm_forward.1} parent=1 // pred_region
      _
    $region57: #{custom_lstm_forward.1} parent=1 // pred_fallthru
      _
    // Predicated region
    $region58: #{custom_lstm_forward.1} parent=1 // pred_check
      _
    $region59: #{custom_lstm_forward.1} parent=1 // pred_check_branch
      %52 = sbr.rel (0) target = $region61
    $region60: #{custom_lstm_forward.1} parent=1 // pred_region
      _
    $region61: #{custom_lstm_forward.1} parent=1 // pred_fallthru
      _
    %v53 = vld [vmem:[%s0] sm:$0x3]
    %v54 = vld [vmem:[%s0 + $0x2] sm:$0x3]
    %v55 = vld [vmem:[%s0 + $0x4] sm:$0x3]
    %v56 = vld [vmem:[%s0 + $0x6] sm:$0x3]
    %v57 = vld [vmem:[%s0 + $0x8] sm:$0x3]
    %v58 = vld [vmem:[%s0 + $0xa] sm:$0x3]
    %v59 = vld [vmem:[%s0 + $0xc] sm:$0x3]
    %v60 = vld [vmem:[%s0 + $0xe] sm:$0x3]
    %v61 = vld [vmem:[%s2] sm:$0xff]
    %v62 = vld [vmem:[%s2 + $0x8] sm:$0xff]
    %v63 = vld [vmem:[%s2 + $0x10] sm:$0xff]
    %v64 = vld [vmem:[%s2 + $0x18] sm:$0xff]
    %v65 = vld [vmem:[%s2 + $0x20] sm:$0xff]
    %v66 = vld [vmem:[%s2 + $0x28] sm:$0xff]
    %v67 = vld [vmem:[%s2 + $0x30] sm:$0xff]
    %v68 = vld [vmem:[%s2 + $0x38] sm:$0xff]
    %v69 = vld [vmem:[%s2 + $0x40] sm:$0xff]
    %v70 = vld [vmem:[%s2 + $0x48] sm:$0xff]
    %v71 = vld [vmem:[%s3] sm:$0x1]
    %v73 = vlaneseq
    %v74 = vshrl.u32 %v73, 7
    %v75 = vsub.s32 0, %v74
    %v76 = vrot.slane %v71, %v75
    %v86 = vcombine.low %v53, %v54
    %v87 = vcombine.low %v55, %v56
    %v89 = vunpack.c.l.s4 1983009808
    %v90 = vunpack.c.0.s8 %v89
    %v91 = vlaneseq
    %v92 = vshrl.u32 %v91, 7
    %v93 = vsub.s32 %v90, %v92
    %v94 = vrot.slane %v86, %v93
    %v96 = vunpack.c.l.s4 1983009808
    %v97 = vunpack.c.0.s8 %v96
    %v98 = vlaneseq
    %v99 = vshrl.u32 %v98, 7
    %v100 = vsub.s32 %v97, %v99
    %v101 = vrot.slane %v87, %v100
    %v102 = vcombine.low %v94, %v101
    %v103 = vcombine.low %v57, %v58
    %v104 = vcombine.low %v59, %v60
    %v106 = vunpack.c.l.s4 1983009808
    %v107 = vunpack.c.0.s8 %v106
    %v108 = vlaneseq
    %v109 = vshrl.u32 %v108, 7
    %v110 = vsub.s32 %v107, %v109
    %v111 = vrot.slane %v103, %v110
    %v113 = vunpack.c.l.s4 1983009808
    %v114 = vunpack.c.0.s8 %v113
    %v115 = vlaneseq
    %v116 = vshrl.u32 %v115, 7
    %v117 = vsub.s32 %v114, %v116
    %v118 = vrot.slane %v104, %v117
    %v119 = vcombine.low %v111, %v118
    %vm120 = vcmask 654336
    %v121 = vsel %vm120, %v102, 0
    %v123 = vsel %vm120, %v119, 0
    %125 = vmatprep.subr.mxu0 0.0
    %126 = vmatpush1.msra.mxu0 %v61
    %127 = vmatprep.subr.mxu0 0.0
    %128 = vmatpush1.msra.mxu0 %v62
    %129 = vmatprep.subr.mxu0 0.0
    %130 = vmatpush1.msra.mxu0 %v63
    %131 = vmatprep.subr.mxu0 0.0
    %132 = vmatpush1.msra.mxu0 %v64
    %133 = vmatprep.subr.mxu0 0.0
    %134 = vmatpush1.msra.mxu0 %v65
    %135 = vmatprep.subr.mxu0 0.0
    %136 = vmatpush1.msra.mxu0 %v66
    %137 = vmatprep.subr.mxu0 0.0
    %138 = vmatpush1.msra.mxu0 %v67
    %139 = vmatprep.subr.mxu0 0.0
    %140 = vmatpush1.msra.mxu0 %v68
    %141 = vmatprep.subr.mxu0 0.0
    %142 = vmatpush1.msra.mxu0 %v69
    %143 = vmatprep.subr.mxu0 0.0
    %144 = vmatpush1.msra.mxu0 %v70
    %145 = vmatprep.subr.mxu0 0.0
    %146 = vmatpush1.msra.mxu0 0.0
    %147 = vmatprep.subr.mxu0 0.0
    %148 = vmatpush1.msra.mxu0 0.0
    %149 = vmatprep.subr.mxu0 0.0
    %150 = vmatpush1.msra.mxu0 0.0
    %151 = vmatprep.subr.mxu0 0.0
    %152 = vmatpush1.msra.mxu0 0.0
    %153 = vmatprep.subr.mxu0 0.0
    %154 = vmatpush1.msra.mxu0 0.0
    %155 = vmatprep.subr.mxu0 0.0
    %156 = vmatpush1.msra.mxu0 0.0
    %157 = vmatprep.subr.mxu0 0.0
    %158 = vmatpush1.msra.mxu0 0.0
    %159 = vmatprep.subr.mxu0 0.0
    %160 = vmatpush1.msra.mxu0 0.0
    %161 = vmatprep.subr.mxu0 0.0
    %162 = vmatpush1.msra.mxu0 0.0
    %163 = vmatprep.subr.mxu0 0.0
    %164 = vmatpush1.msra.mxu0 0.0
    %165 = vmatprep.subr.mxu0 0.0
    %166 = vmatpush1.msra.mxu0 0.0
    %167 = vmatprep.subr.mxu0 0.0
    %168 = vmatpush1.msra.mxu0 0.0
    %169 = vmatprep.subr.mxu0 0.0
    %170 = vmatpush1.msra.mxu0 0.0
    %171 = vmatprep.subr.mxu0 0.0
    %172 = vmatpush1.msra.mxu0 0.0
    %173 = vmatprep.subr.mxu0 0.0
    %174 = vmatpush1.msra.mxu0 0.0
    %175 = vmatprep.subr.mxu0 0.0
    %176 = vmatpush1.msra.mxu0 0.0
    %177 = vmatprep.subr.mxu0 0.0
    %178 = vmatpush1.msra.mxu0 0.0
    %179 = vmatprep.subr.mxu0 0.0
    %180 = vmatpush1.msra.mxu0 0.0
    %181 = vmatprep.subr.mxu0 0.0
    %182 = vmatpush1.msra.mxu0 0.0
    %183 = vmatprep.subr.mxu0 0.0
    %184 = vmatpush1.msra.mxu0 0.0
    %185 = vmatprep.subr.mxu0 0.0
    %186 = vmatpush1.msra.mxu0 0.0
    %187 = vmatprep.subr.mxu0 0.0
    %188 = vmatpush1.msra.mxu0 0.0
    %189 = vmatprep.mubr.f32.mxu0 0.0
    %190 = vmatmul.mubr.f32.gmra.mrb[0].mxu0 %v121
    %v191 = vpop.f32.mrb[0].mxu0
    %v192 = vadd.f32 %v76, %v191
    %v193 = vpop.f32.mrb[0].mxu0
    %194 = vmatprep.mubr.f32.mxu0 0.0
    %195 = vmatmul.mubr.f32.gmra.mrb[0].mxu0 %v123
    %v196 = vpop.f32.mrb[0].mxu0
    %v197 = vadd.f32 %v76, %v196
    %v198 = vpop.f32.mrb[0].mxu0
    %199 = vdwg.mxu0
    %v200 = vld [vmem:[%s4] sm:$0x1]
    %v201 = vld [vmem:[%s5] sm:$0x1]
    %vm202 = vcmask 195584
    %v203 = vsel %vm202, %v192, 0.0
    %204 = vadd.xlane.f32.xlu0 %v203
    %v205 = vpop.xlane.xlu0 %204
    %v206 = vsel %vm202, %v197, 0.0
    %207 = vadd.xlane.f32.xlu0 %v206
    %v208 = vpop.xlane.xlu0 %207
    %v209 = vrcp.pop 24.0
    %v210 = vmul.f32 %v205, %v209
    %v211 = vmul.f32 %v208, %v209
    %v212 = vsub.f32 %v192, %v210
    %v213 = vsub.f32 %v197, %v211
    %v214 = vmul.f32 %v212, %v212
    %v215 = vmul.f32 %v213, %v213
    %v216 = vsel %vm202, %v214, 0.0
    %217 = vadd.xlane.f32.xlu0 %v216
    %v218 = vpop.xlane.xlu0 %217
    %v219 = vsel %vm202, %v215, 0.0
    %220 = vadd.xlane.f32.xlu0 %v219
    %v221 = vpop.xlane.xlu0 %220
    %v222 = vmul.f32 %v218, %v209
    %v223 = vmul.f32 %v221, %v209
    %v224 = vadd.f32 %v222, 1e-05
    %v225 = vadd.f32 %v223, 1e-05
    %v226 = vrsqrt.pop %v224
    %v227 = vrsqrt.pop %v225
    %v228 = vmul.f32 %v212, %v226
    %v229 = vmul.f32 %v213, %v227
    %v231 = vlaneseq
    %v232 = vshrl.u32 %v231, 7
    %v233 = vsub.s32 0, %v232
    %v234 = vrot.slane %v200, %v233
    %v236 = vmul.f32 %v228, %v234
    %v237 = vmul.f32 %v229, %v234
    %v239 = vlaneseq
    %v240 = vshrl.u32 %v239, 7
    %v241 = vsub.s32 0, %v240
    %v242 = vrot.slane %v201, %v241
    %v244 = vadd.f32 %v236, %v242
    %v245 = vadd.f32 %v237, %v242
    %v246 = vld [vmem:[%s1] sm:$0x3]
    %v247 = vld [vmem:[%s1 + $0x2] sm:$0x3]
    %v248 = vld [vmem:[%s1 + $0x4] sm:$0x3]
    %v249 = vld [vmem:[%s1 + $0x6] sm:$0x3]
    %v250 = vld [vmem:[%s1 + $0x8] sm:$0x3]
    %v251 = vld [vmem:[%s1 + $0xa] sm:$0x3]
    %v252 = vld [vmem:[%s1 + $0xc] sm:$0x3]
    %v253 = vld [vmem:[%s1 + $0xe] sm:$0x3]
    %v254 = vld [vmem:[%s6] sm:$0xf]
    %v255 = vld [vmem:[%s7] sm:$0x1]
    %257 = vset.pattern.permute.xlu0 0
    %258 = vperm.xlu0 %257, %v246
    %v259 = vpop.permute.xlu0 %258
    %v262 = vunpack.c.l.s4 269488144
    %v263 = vunpack.c.0.s8 %v262
    %v264 = vlaneseq
    %v265 = vshrl.u32 %v264, 7
    %v266 = vsub.s32 %v263, %v265
    %v267 = vrot.slane %v259, %v266
    %269 = vset.pattern.permute.xlu0 0
    %270 = vperm.xlu0 %269, %v247
    %v271 = vpop.permute.xlu0 %270
    %v274 = vunpack.c.l.s4 269488144
    %v275 = vunpack.c.0.s8 %v274
    %v276 = vlaneseq
    %v277 = vshrl.u32 %v276, 7
    %v278 = vsub.s32 %v275, %v277
    %v279 = vrot.slane %v271, %v278
    %281 = vset.pattern.permute.xlu0 0
    %282 = vperm.xlu0 %281, %v248
    %v283 = vpop.permute.xlu0 %282
    %v286 = vunpack.c.l.s4 269488144
    %v287 = vunpack.c.0.s8 %v286
    %v288 = vlaneseq
    %v289 = vshrl.u32 %v288, 7
    %v290 = vsub.s32 %v287, %v289
    %v291 = vrot.slane %v283, %v290
    %293 = vset.pattern.permute.xlu0 0
    %294 = vperm.xlu0 %293, %v249
    %v295 = vpop.permute.xlu0 %294
    %v298 = vunpack.c.l.s4 269488144
    %v299 = vunpack.c.0.s8 %v298
    %v300 = vlaneseq
    %v301 = vshrl.u32 %v300, 7
    %v302 = vsub.s32 %v299, %v301
    %v303 = vrot.slane %v295, %v302
    %305 = vset.pattern.permute.xlu0 0
    %306 = vperm.xlu0 %305, %v250
    %v307 = vpop.permute.xlu0 %306
    %v310 = vunpack.c.l.s4 269488144
    %v311 = vunpack.c.0.s8 %v310
    %v312 = vlaneseq
    %v313 = vshrl.u32 %v312, 7
    %v314 = vsub.s32 %v311, %v313
    %v315 = vrot.slane %v307, %v314
    %317 = vset.pattern.permute.xlu0 0
    %318 = vperm.xlu0 %317, %v251
    %v319 = vpop.permute.xlu0 %318
    %v322 = vunpack.c.l.s4 269488144
    %v323 = vunpack.c.0.s8 %v322
    %v324 = vlaneseq
    %v325 = vshrl.u32 %v324, 7
    %v326 = vsub.s32 %v323, %v325
    %v327 = vrot.slane %v319, %v326
    %329 = vset.pattern.permute.xlu0 0
    %330 = vperm.xlu0 %329, %v252
    %v331 = vpop.permute.xlu0 %330
    %v334 = vunpack.c.l.s4 269488144
    %v335 = vunpack.c.0.s8 %v334
    %v336 = vlaneseq
    %v337 = vshrl.u32 %v336, 7
    %v338 = vsub.s32 %v335, %v337
    %v339 = vrot.slane %v331, %v338
    %341 = vset.pattern.permute.xlu0 0
    %342 = vperm.xlu0 %341, %v253
    %v343 = vpop.permute.xlu0 %342
    %v346 = vunpack.c.l.s4 269488144
    %v347 = vunpack.c.0.s8 %v346
    %v348 = vlaneseq
    %v349 = vshrl.u32 %v348, 7
    %v350 = vsub.s32 %v347, %v349
    %v351 = vrot.slane %v343, %v350
    %v352 = vlaneseq
    %v353 = vshrl.u32 %v352, 7
    %v354 = vsub.s32 0, %v353
    %v355 = vrot.slane %v254, %v354
    %v357 = vcombine.high %v355, %v355
    %v359 = vunpack.c.l.s4 1983009808
    %v360 = vunpack.c.0.s8 %v359
    %v361 = vlaneseq
    %v362 = vshrl.u32 %v361, 7
    %v363 = vsub.s32 %v360, %v362
    %v364 = vrot.slane %v355, %v363
    %v366 = vunpack.c.l.s4 1983009808
    %v367 = vunpack.c.0.s8 %v366
    %v368 = vlaneseq
    %v369 = vshrl.u32 %v368, 7
    %v370 = vsub.s32 %v367, %v369
    %v371 = vrot.slane %v357, %v370
    %v372 = vcombine.high %v364, %v364
    %v373 = vcombine.high %v371, %v371
    %v378 = vmul.f32 %v267, %v364
    %v379 = vmul.f32 %v279, %v372
    %v380 = vmul.f32 %v291, %v371
    %v381 = vmul.f32 %v303, %v373
    %v382 = vmul.f32 %v315, %v364
    %v383 = vmul.f32 %v327, %v372
    %v384 = vmul.f32 %v339, %v371
    %v385 = vmul.f32 %v351, %v373
    %v387 = vlaneseq
    %v388 = vshrl.u32 %v387, 7
    %v389 = vsub.s32 0, %v388
    %v390 = vrot.slane %v255, %v389
    %v400 = vcombine.low %v378, %v379
    %v401 = vcombine.low %v380, %v381
    %v403 = vunpack.c.l.s4 1983009808
    %v404 = vunpack.c.0.s8 %v403
    %v405 = vlaneseq
    %v406 = vshrl.u32 %v405, 7
    %v407 = vsub.s32 %v404, %v406
    %v408 = vrot.slane %v400, %v407
    %v410 = vunpack.c.l.s4 1983009808
    %v411 = vunpack.c.0.s8 %v410
    %v412 = vlaneseq
    %v413 = vshrl.u32 %v412, 7
    %v414 = vsub.s32 %v411, %v413
    %v415 = vrot.slane %v401, %v414
    %v416 = vcombine.low %v408, %v415
    %v417 = vcombine.low %v382, %v383
    %v418 = vcombine.low %v384, %v385
    %v420 = vunpack.c.l.s4 1983009808
    %v421 = vunpack.c.0.s8 %v420
    %v422 = vlaneseq
    %v423 = vshrl.u32 %v422, 7
    %v424 = vsub.s32 %v421, %v423
    %v425 = vrot.slane %v417, %v424
    %v427 = vunpack.c.l.s4 1983009808
    %v428 = vunpack.c.0.s8 %v427
    %v429 = vlaneseq
    %v430 = vshrl.u32 %v429, 7
    %v431 = vsub.s32 %v428, %v430
    %v432 = vrot.slane %v418, %v431
    %v433 = vcombine.low %v425, %v432
    %v436 = vadd.f32 %v390, %v416
    %v437 = vadd.f32 %v390, %v433
    %438 = vset.pattern.permute.xlu0 1
    %439 = vperm.xlu0 %438, %v246
    %v440 = vpop.permute.xlu0 %439
    %v443 = vunpack.c.l.s4 269488144
    %v444 = vunpack.c.0.s8 %v443
    %v445 = vlaneseq
    %v446 = vshrl.u32 %v445, 7
    %v447 = vsub.s32 %v444, %v446
    %v448 = vrot.slane %v440, %v447
    %449 = vset.pattern.permute.xlu0 1
    %450 = vperm.xlu0 %449, %v247
    %v451 = vpop.permute.xlu0 %450
    %v454 = vunpack.c.l.s4 269488144
    %v455 = vunpack.c.0.s8 %v454
    %v456 = vlaneseq
    %v457 = vshrl.u32 %v456, 7
    %v458 = vsub.s32 %v455, %v457
    %v459 = vrot.slane %v451, %v458
    %460 = vset.pattern.permute.xlu0 1
    %461 = vperm.xlu0 %460, %v248
    %v462 = vpop.permute.xlu0 %461
    %v465 = vunpack.c.l.s4 269488144
    %v466 = vunpack.c.0.s8 %v465
    %v467 = vlaneseq
    %v468 = vshrl.u32 %v467, 7
    %v469 = vsub.s32 %v466, %v468
    %v470 = vrot.slane %v462, %v469
    %471 = vset.pattern.permute.xlu0 1
    %472 = vperm.xlu0 %471, %v249
    %v473 = vpop.permute.xlu0 %472
    %v476 = vunpack.c.l.s4 269488144
    %v477 = vunpack.c.0.s8 %v476
    %v478 = vlaneseq
    %v479 = vshrl.u32 %v478, 7
    %v480 = vsub.s32 %v477, %v479
    %v481 = vrot.slane %v473, %v480
    %482 = vset.pattern.permute.xlu0 1
    %483 = vperm.xlu0 %482, %v250
    %v484 = vpop.permute.xlu0 %483
    %v487 = vunpack.c.l.s4 269488144
    %v488 = vunpack.c.0.s8 %v487
    %v489 = vlaneseq
    %v490 = vshrl.u32 %v489, 7
    %v491 = vsub.s32 %v488, %v490
    %v492 = vrot.slane %v484, %v491
    %493 = vset.pattern.permute.xlu0 1
    %494 = vperm.xlu0 %493, %v251
    %v495 = vpop.permute.xlu0 %494
    %v498 = vunpack.c.l.s4 269488144
    %v499 = vunpack.c.0.s8 %v498
    %v500 = vlaneseq
    %v501 = vshrl.u32 %v500, 7
    %v502 = vsub.s32 %v499, %v501
    %v503 = vrot.slane %v495, %v502
    %504 = vset.pattern.permute.xlu0 1
    %505 = vperm.xlu0 %504, %v252
    %v506 = vpop.permute.xlu0 %505
    %v509 = vunpack.c.l.s4 269488144
    %v510 = vunpack.c.0.s8 %v509
    %v511 = vlaneseq
    %v512 = vshrl.u32 %v511, 7
    %v513 = vsub.s32 %v510, %v512
    %v514 = vrot.slane %v506, %v513
    %515 = vset.pattern.permute.xlu0 1
    %516 = vperm.xlu0 %515, %v253
    %v517 = vpop.permute.xlu0 %516
    %v520 = vunpack.c.l.s4 269488144
    %v521 = vunpack.c.0.s8 %v520
    %v522 = vlaneseq
    %v523 = vshrl.u32 %v522, 7
    %v524 = vsub.s32 %v521, %v523
    %v525 = vrot.slane %v517, %v524
    %v526 = vlaneseq
    %v527 = vshrl.u32 %v526, 7
    %v528 = vsub.s32 1, %v527
    %v529 = vrot.slane %v254, %v528
    %v531 = vcombine.high %v529, %v529
    %v533 = vunpack.c.l.s4 1983009808
    %v534 = vunpack.c.0.s8 %v533
    %v535 = vlaneseq
    %v536 = vshrl.u32 %v535, 7
    %v537 = vsub.s32 %v534, %v536
    %v538 = vrot.slane %v529, %v537
    %v540 = vunpack.c.l.s4 1983009808
    %v541 = vunpack.c.0.s8 %v540
    %v542 = vlaneseq
    %v543 = vshrl.u32 %v542, 7
    %v544 = vsub.s32 %v541, %v543
    %v545 = vrot.slane %v531, %v544
    %v546 = vcombine.high %v538, %v538
    %v547 = vcombine.high %v545, %v545
    %v552 = vmul.f32 %v448, %v538
    %v553 = vmul.f32 %v459, %v546
    %v554 = vmul.f32 %v470, %v545
    %v555 = vmul.f32 %v481, %v547
    %v556 = vmul.f32 %v492, %v538
    %v557 = vmul.f32 %v503, %v546
    %v558 = vmul.f32 %v514, %v545
    %v559 = vmul.f32 %v525, %v547
    %v568 = vcombine.low %v552, %v553
    %v569 = vcombine.low %v554, %v555
    %v571 = vunpack.c.l.s4 1983009808
    %v572 = vunpack.c.0.s8 %v571
    %v573 = vlaneseq
    %v574 = vshrl.u32 %v573, 7
    %v575 = vsub.s32 %v572, %v574
    %v576 = vrot.slane %v568, %v575
    %v578 = vunpack.c.l.s4 1983009808
    %v579 = vunpack.c.0.s8 %v578
    %v580 = vlaneseq
    %v581 = vshrl.u32 %v580, 7
    %v582 = vsub.s32 %v579, %v581
    %v583 = vrot.slane %v569, %v582
    %v584 = vcombine.low %v576, %v583
    %v585 = vcombine.low %v556, %v557
    %v586 = vcombine.low %v558, %v559
    %v588 = vunpack.c.l.s4 1983009808
    %v589 = vunpack.c.0.s8 %v588
    %v590 = vlaneseq
    %v591 = vshrl.u32 %v590, 7
    %v592 = vsub.s32 %v589, %v591
    %v593 = vrot.slane %v585, %v592
    %v595 = vunpack.c.l.s4 1983009808
    %v596 = vunpack.c.0.s8 %v595
    %v597 = vlaneseq
    %v598 = vshrl.u32 %v597, 7
    %v599 = vsub.s32 %v596, %v598
    %v600 = vrot.slane %v586, %v599
    %v601 = vcombine.low %v593, %v600
    %v604 = vadd.f32 %v436, %v584
    %v605 = vadd.f32 %v437, %v601
    %606 = vset.pattern.permute.xlu0 2
    %607 = vperm.xlu0 %606, %v246
    %v608 = vpop.permute.xlu0 %607
    %v611 = vunpack.c.l.s4 269488144
    %v612 = vunpack.c.0.s8 %v611
    %v613 = vlaneseq
    %v614 = vshrl.u32 %v613, 7
    %v615 = vsub.s32 %v612, %v614
    %v616 = vrot.slane %v608, %v615
    %617 = vset.pattern.permute.xlu0 2
    %618 = vperm.xlu0 %617, %v247
    %v619 = vpop.permute.xlu0 %618
    %v622 = vunpack.c.l.s4 269488144
    %v623 = vunpack.c.0.s8 %v622
    %v624 = vlaneseq
    %v625 = vshrl.u32 %v624, 7
    %v626 = vsub.s32 %v623, %v625
    %v627 = vrot.slane %v619, %v626
    %628 = vset.pattern.permute.xlu0 2
    %629 = vperm.xlu0 %628, %v248
    %v630 = vpop.permute.xlu0 %629
    %v633 = vunpack.c.l.s4 269488144
    %v634 = vunpack.c.0.s8 %v633
    %v635 = vlaneseq
    %v636 = vshrl.u32 %v635, 7
    %v637 = vsub.s32 %v634, %v636
    %v638 = vrot.slane %v630, %v637
    %639 = vset.pattern.permute.xlu0 2
    %640 = vperm.xlu0 %639, %v249
    %v641 = vpop.permute.xlu0 %640
    %v644 = vunpack.c.l.s4 269488144
    %v645 = vunpack.c.0.s8 %v644
    %v646 = vlaneseq
    %v647 = vshrl.u32 %v646, 7
    %v648 = vsub.s32 %v645, %v647
    %v649 = vrot.slane %v641, %v648
    %650 = vset.pattern.permute.xlu0 2
    %651 = vperm.xlu0 %650, %v250
    %v652 = vpop.permute.xlu0 %651
    %v655 = vunpack.c.l.s4 269488144
    %v656 = vunpack.c.0.s8 %v655
    %v657 = vlaneseq
    %v658 = vshrl.u32 %v657, 7
    %v659 = vsub.s32 %v656, %v658
    %v660 = vrot.slane %v652, %v659
    %661 = vset.pattern.permute.xlu0 2
    %662 = vperm.xlu0 %661, %v251
    %v663 = vpop.permute.xlu0 %662
    %v666 = vunpack.c.l.s4 269488144
    %v667 = vunpack.c.0.s8 %v666
    %v668 = vlaneseq
    %v669 = vshrl.u32 %v668, 7
    %v670 = vsub.s32 %v667, %v669
    %v671 = vrot.slane %v663, %v670
    %672 = vset.pattern.permute.xlu0 2
    %673 = vperm.xlu0 %672, %v252
    %v674 = vpop.permute.xlu0 %673
    %v677 = vunpack.c.l.s4 269488144
    %v678 = vunpack.c.0.s8 %v677
    %v679 = vlaneseq
    %v680 = vshrl.u32 %v679, 7
    %v681 = vsub.s32 %v678, %v680
    %v682 = vrot.slane %v674, %v681
    %683 = vset.pattern.permute.xlu0 2
    %684 = vperm.xlu0 %683, %v253
    %v685 = vpop.permute.xlu0 %684
    %v688 = vunpack.c.l.s4 269488144
    %v689 = vunpack.c.0.s8 %v688
    %v690 = vlaneseq
    %v691 = vshrl.u32 %v690, 7
    %v692 = vsub.s32 %v689, %v691
    %v693 = vrot.slane %v685, %v692
    %v694 = vlaneseq
    %v695 = vshrl.u32 %v694, 7
    %v696 = vsub.s32 2, %v695
    %v697 = vrot.slane %v254, %v696
    %v699 = vcombine.high %v697, %v697
    %v701 = vunpack.c.l.s4 1983009808
    %v702 = vunpack.c.0.s8 %v701
    %v703 = vlaneseq
    %v704 = vshrl.u32 %v703, 7
    %v705 = vsub.s32 %v702, %v704
    %v706 = vrot.slane %v697, %v705
    %v708 = vunpack.c.l.s4 1983009808
    %v709 = vunpack.c.0.s8 %v708
    %v710 = vlaneseq
    %v711 = vshrl.u32 %v710, 7
    %v712 = vsub.s32 %v709, %v711
    %v713 = vrot.slane %v699, %v712
    %v714 = vcombine.high %v706, %v706
    %v715 = vcombine.high %v713, %v713
    %v720 = vmul.f32 %v616, %v706
    %v721 = vmul.f32 %v627, %v714
    %v722 = vmul.f32 %v638, %v713
    %v723 = vmul.f32 %v649, %v715
    %v724 = vmul.f32 %v660, %v706
    %v725 = vmul.f32 %v671, %v714
    %v726 = vmul.f32 %v682, %v713
    %v727 = vmul.f32 %v693, %v715
    %v736 = vcombine.low %v720, %v721
    %v737 = vcombine.low %v722, %v723
    %v739 = vunpack.c.l.s4 1983009808
    %v740 = vunpack.c.0.s8 %v739
    %v741 = vlaneseq
    %v742 = vshrl.u32 %v741, 7
    %v743 = vsub.s32 %v740, %v742
    %v744 = vrot.slane %v736, %v743
    %v746 = vunpack.c.l.s4 1983009808
    %v747 = vunpack.c.0.s8 %v746
    %v748 = vlaneseq
    %v749 = vshrl.u32 %v748, 7
    %v750 = vsub.s32 %v747, %v749
    %v751 = vrot.slane %v737, %v750
    %v752 = vcombine.low %v744, %v751
    %v753 = vcombine.low %v724, %v725
    %v754 = vcombine.low %v726, %v727
    %v756 = vunpack.c.l.s4 1983009808
    %v757 = vunpack.c.0.s8 %v756
    %v758 = vlaneseq
    %v759 = vshrl.u32 %v758, 7
    %v760 = vsub.s32 %v757, %v759
    %v761 = vrot.slane %v753, %v760
    %v763 = vunpack.c.l.s4 1983009808
    %v764 = vunpack.c.0.s8 %v763
    %v765 = vlaneseq
    %v766 = vshrl.u32 %v765, 7
    %v767 = vsub.s32 %v764, %v766
    %v768 = vrot.slane %v754, %v767
    %v769 = vcombine.low %v761, %v768
    %v772 = vadd.f32 %v604, %v752
    %v773 = vadd.f32 %v605, %v769
    %774 = vset.pattern.permute.xlu0 3
    %775 = vperm.xlu0 %774, %v246
    %v776 = vpop.permute.xlu0 %775
    %v779 = vunpack.c.l.s4 269488144
    %v780 = vunpack.c.0.s8 %v779
    %v781 = vlaneseq
    %v782 = vshrl.u32 %v781, 7
    %v783 = vsub.s32 %v780, %v782
    %v784 = vrot.slane %v776, %v783
    %785 = vset.pattern.permute.xlu0 3
    %786 = vperm.xlu0 %785, %v247
    %v787 = vpop.permute.xlu0 %786
    %v790 = vunpack.c.l.s4 269488144
    %v791 = vunpack.c.0.s8 %v790
    %v792 = vlaneseq
    %v793 = vshrl.u32 %v792, 7
    %v794 = vsub.s32 %v791, %v793
    %v795 = vrot.slane %v787, %v794
    %796 = vset.pattern.permute.xlu0 3
    %797 = vperm.xlu0 %796, %v248
    %v798 = vpop.permute.xlu0 %797
    %v801 = vunpack.c.l.s4 269488144
    %v802 = vunpack.c.0.s8 %v801
    %v803 = vlaneseq
    %v804 = vshrl.u32 %v803, 7
    %v805 = vsub.s32 %v802, %v804
    %v806 = vrot.slane %v798, %v805
    %807 = vset.pattern.permute.xlu0 3
    %808 = vperm.xlu0 %807, %v249
    %v809 = vpop.permute.xlu0 %808
    %v812 = vunpack.c.l.s4 269488144
    %v813 = vunpack.c.0.s8 %v812
    %v814 = vlaneseq
    %v815 = vshrl.u32 %v814, 7
    %v816 = vsub.s32 %v813, %v815
    %v817 = vrot.slane %v809, %v816
    %818 = vset.pattern.permute.xlu0 3
    %819 = vperm.xlu0 %818, %v250
    %v820 = vpop.permute.xlu0 %819
    %v823 = vunpack.c.l.s4 269488144
    %v824 = vunpack.c.0.s8 %v823
    %v825 = vlaneseq
    %v826 = vshrl.u32 %v825, 7
    %v827 = vsub.s32 %v824, %v826
    %v828 = vrot.slane %v820, %v827
    %829 = vset.pattern.permute.xlu0 3
    %830 = vperm.xlu0 %829, %v251
    %v831 = vpop.permute.xlu0 %830
    %v834 = vunpack.c.l.s4 269488144
    %v835 = vunpack.c.0.s8 %v834
    %v836 = vlaneseq
    %v837 = vshrl.u32 %v836, 7
    %v838 = vsub.s32 %v835, %v837
    %v839 = vrot.slane %v831, %v838
    %840 = vset.pattern.permute.xlu0 3
    %841 = vperm.xlu0 %840, %v252
    %v842 = vpop.permute.xlu0 %841
    %v845 = vunpack.c.l.s4 269488144
    %v846 = vunpack.c.0.s8 %v845
    %v847 = vlaneseq
    %v848 = vshrl.u32 %v847, 7
    %v849 = vsub.s32 %v846, %v848
    %v850 = vrot.slane %v842, %v849
    %851 = vset.pattern.permute.xlu0 3
    %852 = vperm.xlu0 %851, %v253
    %v853 = vpop.permute.xlu0 %852
    %v856 = vunpack.c.l.s4 269488144
    %v857 = vunpack.c.0.s8 %v856
    %v858 = vlaneseq
    %v859 = vshrl.u32 %v858, 7
    %v860 = vsub.s32 %v857, %v859
    %v861 = vrot.slane %v853, %v860
    %v862 = vlaneseq
    %v863 = vshrl.u32 %v862, 7
    %v864 = vsub.s32 3, %v863
    %v865 = vrot.slane %v254, %v864
    %v867 = vcombine.high %v865, %v865
    %v869 = vunpack.c.l.s4 1983009808
    %v870 = vunpack.c.0.s8 %v869
    %v871 = vlaneseq
    %v872 = vshrl.u32 %v871, 7
    %v873 = vsub.s32 %v870, %v872
    %v874 = vrot.slane %v865, %v873
    %v876 = vunpack.c.l.s4 1983009808
    %v877 = vunpack.c.0.s8 %v876
    %v878 = vlaneseq
    %v879 = vshrl.u32 %v878, 7
    %v880 = vsub.s32 %v877, %v879
    %v881 = vrot.slane %v867, %v880
    %v882 = vcombine.high %v874, %v874
    %v883 = vcombine.high %v881, %v881
    %v888 = vmul.f32 %v784, %v874
    %v889 = vmul.f32 %v795, %v882
    %v890 = vmul.f32 %v806, %v881
    %v891 = vmul.f32 %v817, %v883
    %v892 = vmul.f32 %v828, %v874
    %v893 = vmul.f32 %v839, %v882
    %v894 = vmul.f32 %v850, %v881
    %v895 = vmul.f32 %v861, %v883
    %v904 = vcombine.low %v888, %v889
    %v905 = vcombine.low %v890, %v891
    %v907 = vunpack.c.l.s4 1983009808
    %v908 = vunpack.c.0.s8 %v907
    %v909 = vlaneseq
    %v910 = vshrl.u32 %v909, 7
    %v911 = vsub.s32 %v908, %v910
    %v912 = vrot.slane %v904, %v911
    %v914 = vunpack.c.l.s4 1983009808
    %v915 = vunpack.c.0.s8 %v914
    %v916 = vlaneseq
    %v917 = vshrl.u32 %v916, 7
    %v918 = vsub.s32 %v915, %v917
    %v919 = vrot.slane %v905, %v918
    %v920 = vcombine.low %v912, %v919
    %v921 = vcombine.low %v892, %v893
    %v922 = vcombine.low %v894, %v895
    %v924 = vunpack.c.l.s4 1983009808
    %v925 = vunpack.c.0.s8 %v924
    %v926 = vlaneseq
    %v927 = vshrl.u32 %v926, 7
    %v928 = vsub.s32 %v925, %v927
    %v929 = vrot.slane %v921, %v928
    %v931 = vunpack.c.l.s4 1983009808
    %v932 = vunpack.c.0.s8 %v931
    %v933 = vlaneseq
    %v934 = vshrl.u32 %v933, 7
    %v935 = vsub.s32 %v932, %v934
    %v936 = vrot.slane %v922, %v935
    %v937 = vcombine.low %v929, %v936
    %v940 = vadd.f32 %v772, %v920
    %v941 = vadd.f32 %v773, %v937
    %v942 = vld [vmem:[%s8] sm:$0x1]
    %v943 = vld [vmem:[%s9] sm:$0x1]
    %v944 = vsel %vm202, %v940, 0.0
    %945 = vadd.xlane.f32.xlu0 %v944
    %v946 = vpop.xlane.xlu0 %945
    %v947 = vsel %vm202, %v941, 0.0
    %948 = vadd.xlane.f32.xlu0 %v947
    %v949 = vpop.xlane.xlu0 %948
    %v950 = vmul.f32 %v946, %v209
    %v951 = vmul.f32 %v949, %v209
    %v952 = vsub.f32 %v940, %v950
    %v953 = vsub.f32 %v941, %v951
    %v954 = vmul.f32 %v952, %v952
    %v955 = vmul.f32 %v953, %v953
    %v956 = vsel %vm202, %v954, 0.0
    %957 = vadd.xlane.f32.xlu0 %v956
    %v958 = vpop.xlane.xlu0 %957
    %v959 = vsel %vm202, %v955, 0.0
    %960 = vadd.xlane.f32.xlu0 %v959
    %v961 = vpop.xlane.xlu0 %960
    %v962 = vmul.f32 %v958, %v209
    %v963 = vmul.f32 %v961, %v209
    %v964 = vadd.f32 %v962, 1e-05
    %v965 = vadd.f32 %v963, 1e-05
    %v966 = vrsqrt.pop %v964
    %v967 = vrsqrt.pop %v965
    %v968 = vmul.f32 %v952, %v966
    %v969 = vmul.f32 %v953, %v967
    %v971 = vlaneseq
    %v972 = vshrl.u32 %v971, 7
    %v973 = vsub.s32 0, %v972
    %v974 = vrot.slane %v942, %v973
    %v976 = vmul.f32 %v968, %v974
    %v977 = vmul.f32 %v969, %v974
    %v979 = vlaneseq
    %v980 = vshrl.u32 %v979, 7
    %v981 = vsub.s32 0, %v980
    %v982 = vrot.slane %v943, %v981
    %v984 = vadd.f32 %v976, %v982
    %v985 = vadd.f32 %v977, %v982
    %988 = vrot.lane.b32.xlu0 %v984, 24
    %v989 = vpop.permute.xlu0 %988
    %990 = vrot.lane.b32.xlu0 %v985, 24
    %v991 = vpop.permute.xlu0 %990
    %v994 = vsel %vm202, %v244, %v989
    %v995 = vsel %vm202, %v245, %v991
    %v996 = vld [vmem:[%s11] sm:$0xff]
    %v997 = vld [vmem:[%s11 + $0x8] sm:$0xff]
    %v998 = vld [vmem:[%s11 + $0x10] sm:$0xff]
    %v999 = vld [vmem:[%s11 + $0x18] sm:$0xff]
    %v1000 = vld [vmem:[%s11 + $0x20] sm:$0xff]
    %v1001 = vld [vmem:[%s11 + $0x28] sm:$0xff]
    %v1002 = vld [vmem:[%s11 + $0x30] sm:$0xff]
    %v1003 = vld [vmem:[%s11 + $0x38] sm:$0xff]
    %v1004 = vld [vmem:[%s11 + $0x40] sm:$0xff]
    %v1005 = vld [vmem:[%s11 + $0x48] sm:$0xff]
    %v1006 = vld [vmem:[%s11 + $0x50] sm:$0xff]
    %v1007 = vld [vmem:[%s11 + $0x58] sm:$0xff]
    %v1008 = vld [vmem:[%s11 + $0x60] sm:$0xff]
    %v1009 = vld [vmem:[%s11 + $0x68] sm:$0xff]
    %v1010 = vld [vmem:[%s11 + $0x70] sm:$0xff]
    %v1011 = vld [vmem:[%s11 + $0x78] sm:$0xff]
    %v1012 = vld [vmem:[%s11 + $0x80] sm:$0xff]
    %v1013 = vld [vmem:[%s11 + $0x88] sm:$0xff]
    %v1014 = vld [vmem:[%s11 + $0x90] sm:$0xff]
    %v1015 = vld [vmem:[%s11 + $0x98] sm:$0xff]
    %v1016 = vld [vmem:[%s11 + $0xa0] sm:$0xff]
    %v1017 = vld [vmem:[%s11 + $0xa8] sm:$0xff]
    %v1018 = vld [vmem:[%s11 + $0xb0] sm:$0xff]
    %v1019 = vld [vmem:[%s11 + $0xb8] sm:$0xff]
    %v1020 = vld [vmem:[%s10] sm:$0xff]
    %v1021 = vld [vmem:[%s10 + $0x8] sm:$0xff]
    %v1022 = vld [vmem:[%s10 + $0x10] sm:$0xff]
    %v1023 = vld [vmem:[%s10 + $0x18] sm:$0xff]
    %v1024 = vld [vmem:[%s10 + $0x20] sm:$0xff]
    %v1025 = vld [vmem:[%s10 + $0x28] sm:$0xff]
    %v1026 = vld [vmem:[%s10 + $0x30] sm:$0xff]
    %v1027 = vld [vmem:[%s10 + $0x38] sm:$0xff]
    %v1028 = vld [vmem:[%s10 + $0x40] sm:$0xff]
    %v1029 = vld [vmem:[%s10 + $0x48] sm:$0xff]
    %v1030 = vld [vmem:[%s10 + $0x50] sm:$0xff]
    %v1031 = vld [vmem:[%s10 + $0x58] sm:$0xff]
    %v1032 = vld [vmem:[%s10 + $0x60] sm:$0xff]
    %v1033 = vld [vmem:[%s10 + $0x68] sm:$0xff]
    %v1034 = vld [vmem:[%s10 + $0x70] sm:$0xff]
    %v1035 = vld [vmem:[%s10 + $0x78] sm:$0xff]
    %v1036 = vld [vmem:[%s10 + $0x80] sm:$0xff]
    %v1037 = vld [vmem:[%s10 + $0x88] sm:$0xff]
    %v1038 = vld [vmem:[%s10 + $0x90] sm:$0xff]
    %v1039 = vld [vmem:[%s10 + $0x98] sm:$0xff]
    %v1040 = vld [vmem:[%s10 + $0xa0] sm:$0xff]
    %v1041 = vld [vmem:[%s10 + $0xa8] sm:$0xff]
    %v1042 = vld [vmem:[%s10 + $0xb0] sm:$0xff]
    %v1043 = vld [vmem:[%s10 + $0xb8] sm:$0xff]
    %v1044 = vld [vmem:[%s12] sm:$0xf]
    %v1046 = vlaneseq
    %v1047 = vshrl.u32 %v1046, 7
    %v1048 = vsub.s32 0, %v1047
    %v1049 = vrot.slane %v1044, %v1048
    %v1050 = vlaneseq
    %v1051 = vshrl.u32 %v1050, 7
    %v1052 = vsub.s32 1, %v1051
    %v1053 = vrot.slane %v1044, %v1052
    %v1054 = vlaneseq
    %v1055 = vshrl.u32 %v1054, 7
    %v1056 = vsub.s32 2, %v1055
    %v1057 = vrot.slane %v1044, %v1056
    %v1058 = vlaneseq
    %v1059 = vshrl.u32 %v1058, 7
    %v1060 = vsub.s32 3, %v1059
    %v1061 = vrot.slane %v1044, %v1060
    %vm1066 = vcmask 392192
    %v1068 = vsel %vm1066, %v994, 0
    %v1071 = vsel %vm1066, %v995, 0
    %1073 = vmatprep.subr.mxu0 %v1021
    %1074 = vmatpush1.msra.mxu0 %v1020
    %1075 = vmatprep.subr.mxu0 %v1025
    %1076 = vmatpush1.msra.mxu0 %v1024
    %1077 = vmatprep.subr.mxu0 %v1029
    %1078 = vmatpush1.msra.mxu0 %v1028
    %1079 = vmatprep.subr.mxu0 %v1033
    %1080 = vmatpush1.msra.mxu0 %v1032
    %1081 = vmatprep.subr.mxu0 %v1037
    %1082 = vmatpush1.msra.mxu0 %v1036
    %1083 = vmatprep.subr.mxu0 %v1041
    %1084 = vmatpush1.msra.mxu0 %v1040
    %1085 = vmatprep.subr.mxu0 0.0
    %1086 = vmatpush1.msra.mxu0 0.0
    %1087 = vmatprep.subr.mxu0 0.0
    %1088 = vmatpush1.msra.mxu0 0.0
    %1089 = vmatprep.subr.mxu0 0.0
    %1090 = vmatpush1.msra.mxu0 0.0
    %1091 = vmatprep.subr.mxu0 0.0
    %1092 = vmatpush1.msra.mxu0 0.0
    %1093 = vmatprep.subr.mxu0 0.0
    %1094 = vmatpush1.msra.mxu0 0.0
    %1095 = vmatprep.subr.mxu0 0.0
    %1096 = vmatpush1.msra.mxu0 0.0
    %1097 = vmatprep.subr.mxu0 0.0
    %1098 = vmatpush1.msra.mxu0 0.0
    %1099 = vmatprep.subr.mxu0 0.0
    %1100 = vmatpush1.msra.mxu0 0.0
    %1101 = vmatprep.subr.mxu0 0.0
    %1102 = vmatpush1.msra.mxu0 0.0
    %1103 = vmatprep.subr.mxu0 0.0
    %1104 = vmatpush1.msra.mxu0 0.0
    %1105 = vmatprep.subr.mxu0 0.0
    %1106 = vmatpush1.msra.mxu0 0.0
    %1107 = vmatprep.subr.mxu0 0.0
    %1108 = vmatpush1.msra.mxu0 0.0
    %1109 = vmatprep.subr.mxu0 0.0
    %1110 = vmatpush1.msra.mxu0 0.0
    %1111 = vmatprep.subr.mxu0 0.0
    %1112 = vmatpush1.msra.mxu0 0.0
    %1113 = vmatprep.subr.mxu0 0.0
    %1114 = vmatpush1.msra.mxu0 0.0
    %1115 = vmatprep.subr.mxu0 0.0
    %1116 = vmatpush1.msra.mxu0 0.0
    %1117 = vmatprep.subr.mxu0 0.0
    %1118 = vmatpush1.msra.mxu0 0.0
    %1119 = vmatprep.subr.mxu0 0.0
    %1120 = vmatpush1.msra.mxu0 0.0
    %1121 = vmatprep.subr.mxu0 0.0
    %1122 = vmatpush1.msra.mxu0 0.0
    %1123 = vmatprep.subr.mxu0 0.0
    %1124 = vmatpush1.msra.mxu0 0.0
    %1125 = vmatprep.subr.mxu0 0.0
    %1126 = vmatpush1.msra.mxu0 0.0
    %1127 = vmatprep.subr.mxu0 0.0
    %1128 = vmatpush1.msra.mxu0 0.0
    %1129 = vmatprep.subr.mxu0 0.0
    %1130 = vmatpush1.msra.mxu0 0.0
    %1131 = vmatprep.subr.mxu0 0.0
    %1132 = vmatpush1.msra.mxu0 0.0
    %1133 = vmatprep.subr.mxu0 0.0
    %1134 = vmatpush1.msra.mxu0 0.0
    %1135 = vmatprep.subr.mxu0 0.0
    %1136 = vmatpush1.msra.mxu0 0.0
    %1137 = vmatprep.mubr.f32.mxu0 0.0
    %1138 = vmatmul.mubr.f32.gmra.mrb[0].mxu0 %v1068
    %v1139 = vpop.f32.mrb[0].mxu0
    %v1140 = vadd.f32 %v1049, %v1139
    %v1141 = vpop.f32.mrb[0].mxu0
    %v1142 = vadd.f32 %v1053, %v1141
    %1143 = vmatprep.mubr.f32.mxu0 0.0
    %1144 = vmatmul.mubr.f32.gmra.mrb[0].mxu0 %v1071
    %v1145 = vpop.f32.mrb[0].mxu0
    %v1146 = vadd.f32 %v1049, %v1145
    %v1147 = vpop.f32.mrb[0].mxu0
    %v1148 = vadd.f32 %v1053, %v1147
    %1149 = vdwg.mxu0
    %1150 = vmatprep.subr.mxu0 %v1023
    %1151 = vmatpush1.msra.mxu0 %v1022
    %1152 = vmatprep.subr.mxu0 %v1027
    %1153 = vmatpush1.msra.mxu0 %v1026
    %1154 = vmatprep.subr.mxu0 %v1031
    %1155 = vmatpush1.msra.mxu0 %v1030
    %1156 = vmatprep.subr.mxu0 %v1035
    %1157 = vmatpush1.msra.mxu0 %v1034
    %1158 = vmatprep.subr.mxu0 %v1039
    %1159 = vmatpush1.msra.mxu0 %v1038
    %1160 = vmatprep.subr.mxu0 %v1043
    %1161 = vmatpush1.msra.mxu0 %v1042
    %1162 = vmatprep.subr.mxu0 0.0
    %1163 = vmatpush1.msra.mxu0 0.0
    %1164 = vmatprep.subr.mxu0 0.0
    %1165 = vmatpush1.msra.mxu0 0.0
    %1166 = vmatprep.subr.mxu0 0.0
    %1167 = vmatpush1.msra.mxu0 0.0
    %1168 = vmatprep.subr.mxu0 0.0
    %1169 = vmatpush1.msra.mxu0 0.0
    %1170 = vmatprep.subr.mxu0 0.0
    %1171 = vmatpush1.msra.mxu0 0.0
    %1172 = vmatprep.subr.mxu0 0.0
    %1173 = vmatpush1.msra.mxu0 0.0
    %1174 = vmatprep.subr.mxu0 0.0
    %1175 = vmatpush1.msra.mxu0 0.0
    %1176 = vmatprep.subr.mxu0 0.0
    %1177 = vmatpush1.msra.mxu0 0.0
    %1178 = vmatprep.subr.mxu0 0.0
    %1179 = vmatpush1.msra.mxu0 0.0
    %1180 = vmatprep.subr.mxu0 0.0
    %1181 = vmatpush1.msra.mxu0 0.0
    %1182 = vmatprep.subr.mxu0 0.0
    %1183 = vmatpush1.msra.mxu0 0.0
    %1184 = vmatprep.subr.mxu0 0.0
    %1185 = vmatpush1.msra.mxu0 0.0
    %1186 = vmatprep.subr.mxu0 0.0
    %1187 = vmatpush1.msra.mxu0 0.0
    %1188 = vmatprep.subr.mxu0 0.0
    %1189 = vmatpush1.msra.mxu0 0.0
    %1190 = vmatprep.subr.mxu0 0.0
    %1191 = vmatpush1.msra.mxu0 0.0
    %1192 = vmatprep.subr.mxu0 0.0
    %1193 = vmatpush1.msra.mxu0 0.0
    %1194 = vmatprep.subr.mxu0 0.0
    %1195 = vmatpush1.msra.mxu0 0.0
    %1196 = vmatprep.subr.mxu0 0.0
    %1197 = vmatpush1.msra.mxu0 0.0
    %1198 = vmatprep.subr.mxu0 0.0
    %1199 = vmatpush1.msra.mxu0 0.0
    %1200 = vmatprep.subr.mxu0 0.0
    %1201 = vmatpush1.msra.mxu0 0.0
    %1202 = vmatprep.subr.mxu0 0.0
    %1203 = vmatpush1.msra.mxu0 0.0
    %1204 = vmatprep.subr.mxu0 0.0
    %1205 = vmatpush1.msra.mxu0 0.0
    %1206 = vmatprep.subr.mxu0 0.0
    %1207 = vmatpush1.msra.mxu0 0.0
    %1208 = vmatprep.subr.mxu0 0.0
    %1209 = vmatpush1.msra.mxu0 0.0
    %1210 = vmatprep.subr.mxu0 0.0
    %1211 = vmatpush1.msra.mxu0 0.0
    %1212 = vmatprep.subr.mxu0 0.0
    %1213 = vmatpush1.msra.mxu0 0.0
    %1214 = vmatprep.mubr.f32.mxu0 0.0
    %1215 = vmatmul.mubr.f32.gmra.mrb[0].mxu0 %v1068
    %v1216 = vpop.f32.mrb[0].mxu0
    %v1217 = vadd.f32 %v1057, %v1216
    %v1218 = vpop.f32.mrb[0].mxu0
    %v1219 = vadd.f32 %v1061, %v1218
    %1220 = vmatprep.mubr.f32.mxu0 0.0
    %1221 = vmatmul.mubr.f32.gmra.mrb[0].mxu0 %v1071
    %v1222 = vpop.f32.mrb[0].mxu0
    %v1223 = vadd.f32 %v1057, %v1222
    %v1224 = vpop.f32.mrb[0].mxu0
    %v1225 = vadd.f32 %v1061, %v1224
    %1226 = vdwg.mxu0
    %v1235 = vcombine.low %v1140, %v1142
    %v1236 = vcombine.high %v1140, %v1142
    %v1237 = vcombine.low %v1217, %v1219
    %v1238 = vcombine.high %v1217, %v1219
    %v1240 = vunpack.c.l.s4 1983009808
    %v1241 = vunpack.c.0.s8 %v1240
    %v1242 = vlaneseq
    %v1243 = vshrl.u32 %v1242, 7
    %v1244 = vsub.s32 %v1241, %v1243
    %v1245 = vrot.slane %v1235, %v1244
    %v1247 = vunpack.c.l.s4 1983009808
    %v1248 = vunpack.c.0.s8 %v1247
    %v1249 = vlaneseq
    %v1250 = vshrl.u32 %v1249, 7
    %v1251 = vsub.s32 %v1248, %v1250
    %v1252 = vrot.slane %v1236, %v1251
    %v1254 = vunpack.c.l.s4 1983009808
    %v1255 = vunpack.c.0.s8 %v1254
    %v1256 = vlaneseq
    %v1257 = vshrl.u32 %v1256, 7
    %v1258 = vsub.s32 %v1255, %v1257
    %v1259 = vrot.slane %v1237, %v1258
    %v1261 = vunpack.c.l.s4 1983009808
    %v1262 = vunpack.c.0.s8 %v1261
    %v1263 = vlaneseq
    %v1264 = vshrl.u32 %v1263, 7
    %v1265 = vsub.s32 %v1262, %v1264
    %v1266 = vrot.slane %v1238, %v1265
    %v1267 = vcombine.low %v1245, %v1259
    %v1268 = vcombine.high %v1245, %v1259
    %v1269 = vcombine.low %v1252, %v1266
    %v1270 = vcombine.high %v1252, %v1266
    %v1271 = vcombine.low %v1146, %v1148
    %v1272 = vcombine.high %v1146, %v1148
    %v1273 = vcombine.low %v1223, %v1225
    %v1274 = vcombine.high %v1223, %v1225
    %v1276 = vunpack.c.l.s4 1983009808
    %v1277 = vunpack.c.0.s8 %v1276
    %v1278 = vlaneseq
    %v1279 = vshrl.u32 %v1278, 7
    %v1280 = vsub.s32 %v1277, %v1279
    %v1281 = vrot.slane %v1271, %v1280
    %v1283 = vunpack.c.l.s4 1983009808
    %v1284 = vunpack.c.0.s8 %v1283
    %v1285 = vlaneseq
    %v1286 = vshrl.u32 %v1285, 7
    %v1287 = vsub.s32 %v1284, %v1286
    %v1288 = vrot.slane %v1272, %v1287
    %v1290 = vunpack.c.l.s4 1983009808
    %v1291 = vunpack.c.0.s8 %v1290
    %v1292 = vlaneseq
    %v1293 = vshrl.u32 %v1292, 7
    %v1294 = vsub.s32 %v1291, %v1293
    %v1295 = vrot.slane %v1273, %v1294
    %v1297 = vunpack.c.l.s4 1983009808
    %v1298 = vunpack.c.0.s8 %v1297
    %v1299 = vlaneseq
    %v1300 = vshrl.u32 %v1299, 7
    %v1301 = vsub.s32 %v1298, %v1300
    %v1302 = vrot.slane %v1274, %v1301
    %v1303 = vcombine.low %v1281, %v1295
    %v1304 = vcombine.high %v1281, %v1295
    %v1305 = vcombine.low %v1288, %v1302
    %v1306 = vcombine.high %v1288, %v1302
    %v1316 = vsel %vm1066, 0.0, 0
    %1318 = vmatprep.subr.mxu0 %v997
    %1319 = vmatpush1.msra.mxu0 %v996
    %1320 = vmatprep.subr.mxu0 %v1001
    %1321 = vmatpush1.msra.mxu0 %v1000
    %1322 = vmatprep.subr.mxu0 %v1005
    %1323 = vmatpush1.msra.mxu0 %v1004
    %1324 = vmatprep.subr.mxu0 %v1009
    %1325 = vmatpush1.msra.mxu0 %v1008
    %1326 = vmatprep.subr.mxu0 %v1013
    %1327 = vmatpush1.msra.mxu0 %v1012
    %1328 = vmatprep.subr.mxu0 %v1017
    %1329 = vmatpush1.msra.mxu0 %v1016
    %1330 = vmatprep.subr.mxu0 0.0
    %1331 = vmatpush1.msra.mxu0 0.0
    %1332 = vmatprep.subr.mxu0 0.0
    %1333 = vmatpush1.msra.mxu0 0.0
    %1334 = vmatprep.subr.mxu0 0.0
    %1335 = vmatpush1.msra.mxu0 0.0
    %1336 = vmatprep.subr.mxu0 0.0
    %1337 = vmatpush1.msra.mxu0 0.0
    %1338 = vmatprep.subr.mxu0 0.0
    %1339 = vmatpush1.msra.mxu0 0.0
    %1340 = vmatprep.subr.mxu0 0.0
    %1341 = vmatpush1.msra.mxu0 0.0
    %1342 = vmatprep.subr.mxu0 0.0
    %1343 = vmatpush1.msra.mxu0 0.0
    %1344 = vmatprep.subr.mxu0 0.0
    %1345 = vmatpush1.msra.mxu0 0.0
    %1346 = vmatprep.subr.mxu0 0.0
    %1347 = vmatpush1.msra.mxu0 0.0
    %1348 = vmatprep.subr.mxu0 0.0
    %1349 = vmatpush1.msra.mxu0 0.0
    %1350 = vmatprep.subr.mxu0 0.0
    %1351 = vmatpush1.msra.mxu0 0.0
    %1352 = vmatprep.subr.mxu0 0.0
    %1353 = vmatpush1.msra.mxu0 0.0
    %1354 = vmatprep.subr.mxu0 0.0
    %1355 = vmatpush1.msra.mxu0 0.0
    %1356 = vmatprep.subr.mxu0 0.0
    %1357 = vmatpush1.msra.mxu0 0.0
    %1358 = vmatprep.subr.mxu0 0.0
    %1359 = vmatpush1.msra.mxu0 0.0
    %1360 = vmatprep.subr.mxu0 0.0
    %1361 = vmatpush1.msra.mxu0 0.0
    %1362 = vmatprep.subr.mxu0 0.0
    %1363 = vmatpush1.msra.mxu0 0.0
    %1364 = vmatprep.subr.mxu0 0.0
    %1365 = vmatpush1.msra.mxu0 0.0
    %1366 = vmatprep.subr.mxu0 0.0
    %1367 = vmatpush1.msra.mxu0 0.0
    %1368 = vmatprep.subr.mxu0 0.0
    %1369 = vmatpush1.msra.mxu0 0.0
    %1370 = vmatprep.subr.mxu0 0.0
    %1371 = vmatpush1.msra.mxu0 0.0
    %1372 = vmatprep.subr.mxu0 0.0
    %1373 = vmatpush1.msra.mxu0 0.0
    %1374 = vmatprep.subr.mxu0 0.0
    %1375 = vmatpush1.msra.mxu0 0.0
    %1376 = vmatprep.subr.mxu0 0.0
    %1377 = vmatpush1.msra.mxu0 0.0
    %1378 = vmatprep.subr.mxu0 0.0
    %1379 = vmatpush1.msra.mxu0 0.0
    %1380 = vmatprep.subr.mxu0 0.0
    %1381 = vmatpush1.msra.mxu0 0.0
    %1382 = vmatprep.mubr.f32.mxu0 0.0
    %1383 = vmatmul.mubr.f32.gmra.mrb[0].mxu0 %v1316
    %v1384 = vpop.f32.mrb[0].mxu0
    %v1385 = vadd.f32 0.0, %v1384
    %v1386 = vpop.f32.mrb[0].mxu0
    %v1387 = vadd.f32 0.0, %v1386
    %1388 = vdwg.mxu0
    %1389 = vmatprep.subr.mxu0 %v999
    %1390 = vmatpush1.msra.mxu0 %v998
    %1391 = vmatprep.subr.mxu0 %v1003
    %1392 = vmatpush1.msra.mxu0 %v1002
    %1393 = vmatprep.subr.mxu0 %v1007
    %1394 = vmatpush1.msra.mxu0 %v1006
    %1395 = vmatprep.subr.mxu0 %v1011
    %1396 = vmatpush1.msra.mxu0 %v1010
    %1397 = vmatprep.subr.mxu0 %v1015
    %1398 = vmatpush1.msra.mxu0 %v1014
    %1399 = vmatprep.subr.mxu0 %v1019
    %1400 = vmatpush1.msra.mxu0 %v1018
    %1401 = vmatprep.subr.mxu0 0.0
    %1402 = vmatpush1.msra.mxu0 0.0
    %1403 = vmatprep.subr.mxu0 0.0
    %1404 = vmatpush1.msra.mxu0 0.0
    %1405 = vmatprep.subr.mxu0 0.0
    %1406 = vmatpush1.msra.mxu0 0.0
    %1407 = vmatprep.subr.mxu0 0.0
    %1408 = vmatpush1.msra.mxu0 0.0
    %1409 = vmatprep.subr.mxu0 0.0
    %1410 = vmatpush1.msra.mxu0 0.0
    %1411 = vmatprep.subr.mxu0 0.0
    %1412 = vmatpush1.msra.mxu0 0.0
    %1413 = vmatprep.subr.mxu0 0.0
    %1414 = vmatpush1.msra.mxu0 0.0
    %1415 = vmatprep.subr.mxu0 0.0
    %1416 = vmatpush1.msra.mxu0 0.0
    %1417 = vmatprep.subr.mxu0 0.0
    %1418 = vmatpush1.msra.mxu0 0.0
    %1419 = vmatprep.subr.mxu0 0.0
    %1420 = vmatpush1.msra.mxu0 0.0
    %1421 = vmatprep.subr.mxu0 0.0
    %1422 = vmatpush1.msra.mxu0 0.0
    %1423 = vmatprep.subr.mxu0 0.0
    %1424 = vmatpush1.msra.mxu0 0.0
    %1425 = vmatprep.subr.mxu0 0.0
    %1426 = vmatpush1.msra.mxu0 0.0
    %1427 = vmatprep.subr.mxu0 0.0
    %1428 = vmatpush1.msra.mxu0 0.0
    %1429 = vmatprep.subr.mxu0 0.0
    %1430 = vmatpush1.msra.mxu0 0.0
    %1431 = vmatprep.subr.mxu0 0.0
    %1432 = vmatpush1.msra.mxu0 0.0
    %1433 = vmatprep.subr.mxu0 0.0
    %1434 = vmatpush1.msra.mxu0 0.0
    %1435 = vmatprep.subr.mxu0 0.0
    %1436 = vmatpush1.msra.mxu0 0.0
    %1437 = vmatprep.subr.mxu0 0.0
    %1438 = vmatpush1.msra.mxu0 0.0
    %1439 = vmatprep.subr.mxu0 0.0
    %1440 = vmatpush1.msra.mxu0 0.0
    %1441 = vmatprep.subr.mxu0 0.0
    %1442 = vmatpush1.msra.mxu0 0.0
    %1443 = vmatprep.subr.mxu0 0.0
    %1444 = vmatpush1.msra.mxu0 0.0
    %1445 = vmatprep.subr.mxu0 0.0
    %1446 = vmatpush1.msra.mxu0 0.0
    %1447 = vmatprep.subr.mxu0 0.0
    %1448 = vmatpush1.msra.mxu0 0.0
    %1449 = vmatprep.subr.mxu0 0.0
    %1450 = vmatpush1.msra.mxu0 0.0
    %1451 = vmatprep.subr.mxu0 0.0
    %1452 = vmatpush1.msra.mxu0 0.0
    %1453 = vmatprep.mubr.f32.mxu0 0.0
    %1454 = vmatmul.mubr.f32.gmra.mrb[0].mxu0 %v1316
    %v1455 = vpop.f32.mrb[0].mxu0
    %v1456 = vadd.f32 0.0, %v1455
    %v1457 = vpop.f32.mrb[0].mxu0
    %v1458 = vadd.f32 0.0, %v1457
    %1459 = vdwg.mxu0
    %v1464 = vcombine.low %v1385, %v1387
    %v1465 = vcombine.low %v1456, %v1458
    %v1467 = vunpack.c.l.s4 1983009808
    %v1468 = vunpack.c.0.s8 %v1467
    %v1469 = vlaneseq
    %v1470 = vshrl.u32 %v1469, 7
    %v1471 = vsub.s32 %v1468, %v1470
    %v1472 = vrot.slane %v1464, %v1471
    %v1474 = vunpack.c.l.s4 1983009808
    %v1475 = vunpack.c.0.s8 %v1474
    %v1476 = vlaneseq
    %v1477 = vshrl.u32 %v1476, 7
    %v1478 = vsub.s32 %v1475, %v1477
    %v1479 = vrot.slane %v1465, %v1478
    %v1480 = vcombine.low %v1472, %v1479
    %v1482 = vadd.f32 %v1267, %v1480
    %v1483 = vxor.u32 %v1482, 2147483648
    %v1484 = vmul.f32 %v1483, 1.442695
    %v1485 = vpow.pop %v1484
    %v1486 = vadd.f32 %v1485, 1.0
    %v1487 = vrcp.pop %v1486
    %v1488 = vmul.f32 1.0, %v1487
    %v1490 = vrot.slane %v1482, 2
    %v1492 = vxor.u32 %v1490, 2147483648
    %v1493 = vmul.f32 %v1492, 1.442695
    %v1494 = vpow.pop %v1493
    %v1495 = vadd.f32 %v1494, 1.0
    %v1496 = vrcp.pop %v1495
    %v1497 = vmul.f32 1.0, %v1496
    %v1498 = vrot.slane %v1482, 4
    %v1500 = vtanh.pop %v1498
    %v1501 = vrot.slane %v1482, 6
    %v1503 = vxor.u32 %v1501, 2147483648
    %v1504 = vmul.f32 %v1503, 1.442695
    %v1505 = vpow.pop %v1504
    %v1506 = vadd.f32 %v1505, 1.0
    %v1507 = vrcp.pop %v1506
    %v1508 = vmul.f32 1.0, %v1507
    %v1509 = vmul.f32 %v1497, 0.0
    %v1510 = vmul.f32 %v1488, %v1500
    %v1511 = vadd.f32 %v1509, %v1510
    %v1512 = vtanh.pop %v1511
    %v1513 = vmul.f32 %v1508, %v1512
    %v1515 = vsel %vm1066, %v1513, 0
    %1517 = vmatprep.subr.mxu0 %v997
    %1518 = vmatpush1.msra.mxu0 %v996
    %1519 = vmatprep.subr.mxu0 %v1001
    %1520 = vmatpush1.msra.mxu0 %v1000
    %1521 = vmatprep.subr.mxu0 %v1005
    %1522 = vmatpush1.msra.mxu0 %v1004
    %1523 = vmatprep.subr.mxu0 %v1009
    %1524 = vmatpush1.msra.mxu0 %v1008
    %1525 = vmatprep.subr.mxu0 %v1013
    %1526 = vmatpush1.msra.mxu0 %v1012
    %1527 = vmatprep.subr.mxu0 %v1017
    %1528 = vmatpush1.msra.mxu0 %v1016
    %1529 = vmatprep.subr.mxu0 0.0
    %1530 = vmatpush1.msra.mxu0 0.0
    %1531 = vmatprep.subr.mxu0 0.0
    %1532 = vmatpush1.msra.mxu0 0.0
    %1533 = vmatprep.subr.mxu0 0.0
    %1534 = vmatpush1.msra.mxu0 0.0
    %1535 = vmatprep.subr.mxu0 0.0
    %1536 = vmatpush1.msra.mxu0 0.0
    %1537 = vmatprep.subr.mxu0 0.0
    %1538 = vmatpush1.msra.mxu0 0.0
    %1539 = vmatprep.subr.mxu0 0.0
    %1540 = vmatpush1.msra.mxu0 0.0
    %1541 = vmatprep.subr.mxu0 0.0
    %1542 = vmatpush1.msra.mxu0 0.0
    %1543 = vmatprep.subr.mxu0 0.0
    %1544 = vmatpush1.msra.mxu0 0.0
    %1545 = vmatprep.subr.mxu0 0.0
    %1546 = vmatpush1.msra.mxu0 0.0
    %1547 = vmatprep.subr.mxu0 0.0
    %1548 = vmatpush1.msra.mxu0 0.0
    %1549 = vmatprep.subr.mxu0 0.0
    %1550 = vmatpush1.msra.mxu0 0.0
    %1551 = vmatprep.subr.mxu0 0.0
    %1552 = vmatpush1.msra.mxu0 0.0
    %1553 = vmatprep.subr.mxu0 0.0
    %1554 = vmatpush1.msra.mxu0 0.0
    %1555 = vmatprep.subr.mxu0 0.0
    %1556 = vmatpush1.msra.mxu0 0.0
    %1557 = vmatprep.subr.mxu0 0.0
    %1558 = vmatpush1.msra.mxu0 0.0
    %1559 = vmatprep.subr.mxu0 0.0
    %1560 = vmatpush1.msra.mxu0 0.0
    %1561 = vmatprep.subr.mxu0 0.0
    %1562 = vmatpush1.msra.mxu0 0.0
    %1563 = vmatprep.subr.mxu0 0.0
    %1564 = vmatpush1.msra.mxu0 0.0
    %1565 = vmatprep.subr.mxu0 0.0
    %1566 = vmatpush1.msra.mxu0 0.0
    %1567 = vmatprep.subr.mxu0 0.0
    %1568 = vmatpush1.msra.mxu0 0.0
    %1569 = vmatprep.subr.mxu0 0.0
    %1570 = vmatpush1.msra.mxu0 0.0
    %1571 = vmatprep.subr.mxu0 0.0
    %1572 = vmatpush1.msra.mxu0 0.0
    %1573 = vmatprep.subr.mxu0 0.0
    %1574 = vmatpush1.msra.mxu0 0.0
    %1575 = vmatprep.subr.mxu0 0.0
    %1576 = vmatpush1.msra.mxu0 0.0
    %1577 = vmatprep.subr.mxu0 0.0
    %1578 = vmatpush1.msra.mxu0 0.0
    %1579 = vmatprep.subr.mxu0 0.0
    %1580 = vmatpush1.msra.mxu0 0.0
    %1581 = vmatprep.mubr.f32.mxu0 0.0
    %1582 = vmatmul.mubr.f32.gmra.mrb[0].mxu0 %v1515
    %v1583 = vpop.f32.mrb[0].mxu0
    %v1584 = vadd.f32 0.0, %v1583
    %v1585 = vpop.f32.mrb[0].mxu0
    %v1586 = vadd.f32 0.0, %v1585
    %1587 = vdwg.mxu0
    %1588 = vmatprep.subr.mxu0 %v999
    %1589 = vmatpush1.msra.mxu0 %v998
    %1590 = vmatprep.subr.mxu0 %v1003
    %1591 = vmatpush1.msra.mxu0 %v1002
    %1592 = vmatprep.subr.mxu0 %v1007
    %1593 = vmatpush1.msra.mxu0 %v1006
    %1594 = vmatprep.subr.mxu0 %v1011
    %1595 = vmatpush1.msra.mxu0 %v1010
    %1596 = vmatprep.subr.mxu0 %v1015
    %1597 = vmatpush1.msra.mxu0 %v1014
    %1598 = vmatprep.subr.mxu0 %v1019
    %1599 = vmatpush1.msra.mxu0 %v1018
    %1600 = vmatprep.subr.mxu0 0.0
    %1601 = vmatpush1.msra.mxu0 0.0
    %1602 = vmatprep.subr.mxu0 0.0
    %1603 = vmatpush1.msra.mxu0 0.0
    %1604 = vmatprep.subr.mxu0 0.0
    %1605 = vmatpush1.msra.mxu0 0.0
    %1606 = vmatprep.subr.mxu0 0.0
    %1607 = vmatpush1.msra.mxu0 0.0
    %1608 = vmatprep.subr.mxu0 0.0
    %1609 = vmatpush1.msra.mxu0 0.0
    %1610 = vmatprep.subr.mxu0 0.0
    %1611 = vmatpush1.msra.mxu0 0.0
    %1612 = vmatprep.subr.mxu0 0.0
    %1613 = vmatpush1.msra.mxu0 0.0
    %1614 = vmatprep.subr.mxu0 0.0
    %1615 = vmatpush1.msra.mxu0 0.0
    %1616 = vmatprep.subr.mxu0 0.0
    %1617 = vmatpush1.msra.mxu0 0.0
    %1618 = vmatprep.subr.mxu0 0.0
    %1619 = vmatpush1.msra.mxu0 0.0
    %1620 = vmatprep.subr.mxu0 0.0
    %1621 = vmatpush1.msra.mxu0 0.0
    %1622 = vmatprep.subr.mxu0 0.0
    %1623 = vmatpush1.msra.mxu0 0.0
    %1624 = vmatprep.subr.mxu0 0.0
    %1625 = vmatpush1.msra.mxu0 0.0
    %1626 = vmatprep.subr.mxu0 0.0
    %1627 = vmatpush1.msra.mxu0 0.0
    %1628 = vmatprep.subr.mxu0 0.0
    %1629 = vmatpush1.msra.mxu0 0.0
    %1630 = vmatprep.subr.mxu0 0.0
    %1631 = vmatpush1.msra.mxu0 0.0
    %1632 = vmatprep.subr.mxu0 0.0
    %1633 = vmatpush1.msra.mxu0 0.0
    %1634 = vmatprep.subr.mxu0 0.0
    %1635 = vmatpush1.msra.mxu0 0.0
    %1636 = vmatprep.subr.mxu0 0.0
    %1637 = vmatpush1.msra.mxu0 0.0
    %1638 = vmatprep.subr.mxu0 0.0
    %1639 = vmatpush1.msra.mxu0 0.0
    %1640 = vmatprep.subr.mxu0 0.0
    %1641 = vmatpush1.msra.mxu0 0.0
    %1642 = vmatprep.subr.mxu0 0.0
    %1643 = vmatpush1.msra.mxu0 0.0
    %1644 = vmatprep.subr.mxu0 0.0
    %1645 = vmatpush1.msra.mxu0 0.0
    %1646 = vmatprep.subr.mxu0 0.0
    %1647 = vmatpush1.msra.mxu0 0.0
    %1648 = vmatprep.subr.mxu0 0.0
    %1649 = vmatpush1.msra.mxu0 0.0
    %1650 = vmatprep.subr.mxu0 0.0
    %1651 = vmatpush1.msra.mxu0 0.0
    %1652 = vmatprep.mubr.f32.mxu0 0.0
    %1653 = vmatmul.mubr.f32.gmra.mrb[0].mxu0 %v1515
    %v1654 = vpop.f32.mrb[0].mxu0
    %v1655 = vadd.f32 0.0, %v1654
    %v1656 = vpop.f32.mrb[0].mxu0
    %v1657 = vadd.f32 0.0, %v1656
    %1658 = vdwg.mxu0
    %v1663 = vcombine.low %v1584, %v1586
    %v1664 = vcombine.low %v1655, %v1657
    %v1666 = vunpack.c.l.s4 1983009808
    %v1667 = vunpack.c.0.s8 %v1666
    %v1668 = vlaneseq
    %v1669 = vshrl.u32 %v1668, 7
    %v1670 = vsub.s32 %v1667, %v1669
    %v1671 = vrot.slane %v1663, %v1670
    %v1673 = vunpack.c.l.s4 1983009808
    %v1674 = vunpack.c.0.s8 %v1673
    %v1675 = vlaneseq
    %v1676 = vshrl.u32 %v1675, 7
    %v1677 = vsub.s32 %v1674, %v1676
    %v1678 = vrot.slane %v1664, %v1677
    %v1679 = vcombine.low %v1671, %v1678
    %v1681 = vadd.f32 %v1268, %v1679
    %v1682 = vxor.u32 %v1681, 2147483648
    %v1683 = vmul.f32 %v1682, 1.442695
    %v1684 = vpow.pop %v1683
    %v1685 = vadd.f32 %v1684, 1.0
    %v1686 = vrcp.pop %v1685
    %v1687 = vmul.f32 1.0, %v1686
    %v1689 = vrot.slane %v1681, 2
    %v1691 = vxor.u32 %v1689, 2147483648
    %v1692 = vmul.f32 %v1691, 1.442695
    %v1693 = vpow.pop %v1692
    %v1694 = vadd.f32 %v1693, 1.0
    %v1695 = vrcp.pop %v1694
    %v1696 = vmul.f32 1.0, %v1695
    %v1697 = vrot.slane %v1681, 4
    %v1699 = vtanh.pop %v1697
    %v1700 = vrot.slane %v1681, 6
    %v1702 = vxor.u32 %v1700, 2147483648
    %v1703 = vmul.f32 %v1702, 1.442695
    %v1704 = vpow.pop %v1703
    %v1705 = vadd.f32 %v1704, 1.0
    %v1706 = vrcp.pop %v1705
    %v1707 = vmul.f32 1.0, %v1706
    %v1708 = vmul.f32 %v1696, %v1511
    %v1709 = vmul.f32 %v1687, %v1699
    %v1710 = vadd.f32 %v1708, %v1709
    %v1711 = vtanh.pop %v1710
    %v1712 = vmul.f32 %v1707, %v1711
    %v1714 = vsel %vm1066, %v1712, 0
    %1716 = vmatprep.subr.mxu0 %v997
    %1717 = vmatpush1.msra.mxu0 %v996
    %1718 = vmatprep.subr.mxu0 %v1001
    %1719 = vmatpush1.msra.mxu0 %v1000
    %1720 = vmatprep.subr.mxu0 %v1005
    %1721 = vmatpush1.msra.mxu0 %v1004
    %1722 = vmatprep.subr.mxu0 %v1009
    %1723 = vmatpush1.msra.mxu0 %v1008
    %1724 = vmatprep.subr.mxu0 %v1013
    %1725 = vmatpush1.msra.mxu0 %v1012
    %1726 = vmatprep.subr.mxu0 %v1017
    %1727 = vmatpush1.msra.mxu0 %v1016
    %1728 = vmatprep.subr.mxu0 0.0
    %1729 = vmatpush1.msra.mxu0 0.0
    %1730 = vmatprep.subr.mxu0 0.0
    %1731 = vmatpush1.msra.mxu0 0.0
    %1732 = vmatprep.subr.mxu0 0.0
    %1733 = vmatpush1.msra.mxu0 0.0
    %1734 = vmatprep.subr.mxu0 0.0
    %1735 = vmatpush1.msra.mxu0 0.0
    %1736 = vmatprep.subr.mxu0 0.0
    %1737 = vmatpush1.msra.mxu0 0.0
    %1738 = vmatprep.subr.mxu0 0.0
    %1739 = vmatpush1.msra.mxu0 0.0
    %1740 = vmatprep.subr.mxu0 0.0
    %1741 = vmatpush1.msra.mxu0 0.0
    %1742 = vmatprep.subr.mxu0 0.0
    %1743 = vmatpush1.msra.mxu0 0.0
    %1744 = vmatprep.subr.mxu0 0.0
    %1745 = vmatpush1.msra.mxu0 0.0
    %1746 = vmatprep.subr.mxu0 0.0
    %1747 = vmatpush1.msra.mxu0 0.0
    %1748 = vmatprep.subr.mxu0 0.0
    %1749 = vmatpush1.msra.mxu0 0.0
    %1750 = vmatprep.subr.mxu0 0.0
    %1751 = vmatpush1.msra.mxu0 0.0
    %1752 = vmatprep.subr.mxu0 0.0
    %1753 = vmatpush1.msra.mxu0 0.0
    %1754 = vmatprep.subr.mxu0 0.0
    %1755 = vmatpush1.msra.mxu0 0.0
    %1756 = vmatprep.subr.mxu0 0.0
    %1757 = vmatpush1.msra.mxu0 0.0
    %1758 = vmatprep.subr.mxu0 0.0
    %1759 = vmatpush1.msra.mxu0 0.0
    %1760 = vmatprep.subr.mxu0 0.0
    %1761 = vmatpush1.msra.mxu0 0.0
    %1762 = vmatprep.subr.mxu0 0.0
    %1763 = vmatpush1.msra.mxu0 0.0
    %1764 = vmatprep.subr.mxu0 0.0
    %1765 = vmatpush1.msra.mxu0 0.0
    %1766 = vmatprep.subr.mxu0 0.0
    %1767 = vmatpush1.msra.mxu0 0.0
    %1768 = vmatprep.subr.mxu0 0.0
    %1769 = vmatpush1.msra.mxu0 0.0
    %1770 = vmatprep.subr.mxu0 0.0
    %1771 = vmatpush1.msra.mxu0 0.0
    %1772 = vmatprep.subr.mxu0 0.0
    %1773 = vmatpush1.msra.mxu0 0.0
    %1774 = vmatprep.subr.mxu0 0.0
    %1775 = vmatpush1.msra.mxu0 0.0
    %1776 = vmatprep.subr.mxu0 0.0
    %1777 = vmatpush1.msra.mxu0 0.0
    %1778 = vmatprep.subr.mxu0 0.0
    %1779 = vmatpush1.msra.mxu0 0.0
    %1780 = vmatprep.mubr.f32.mxu0 0.0
    %1781 = vmatmul.mubr.f32.gmra.mrb[0].mxu0 %v1714
    %v1782 = vpop.f32.mrb[0].mxu0
    %v1783 = vadd.f32 0.0, %v1782
    %v1784 = vpop.f32.mrb[0].mxu0
    %v1785 = vadd.f32 0.0, %v1784
    %1786 = vdwg.mxu0
    %1787 = vmatprep.subr.mxu0 %v999
    %1788 = vmatpush1.msra.mxu0 %v998
    %1789 = vmatprep.subr.mxu0 %v1003
    %1790 = vmatpush1.msra.mxu0 %v1002
    %1791 = vmatprep.subr.mxu0 %v1007
    %1792 = vmatpush1.msra.mxu0 %v1006
    %1793 = vmatprep.subr.mxu0 %v1011
    %1794 = vmatpush1.msra.mxu0 %v1010
    %1795 = vmatprep.subr.mxu0 %v1015
    %1796 = vmatpush1.msra.mxu0 %v1014
    %1797 = vmatprep.subr.mxu0 %v1019
    %1798 = vmatpush1.msra.mxu0 %v1018
    %1799 = vmatprep.subr.mxu0 0.0
    %1800 = vmatpush1.msra.mxu0 0.0
    %1801 = vmatprep.subr.mxu0 0.0
    %1802 = vmatpush1.msra.mxu0 0.0
    %1803 = vmatprep.subr.mxu0 0.0
    %1804 = vmatpush1.msra.mxu0 0.0
    %1805 = vmatprep.subr.mxu0 0.0
    %1806 = vmatpush1.msra.mxu0 0.0
    %1807 = vmatprep.subr.mxu0 0.0
    %1808 = vmatpush1.msra.mxu0 0.0
    %1809 = vmatprep.subr.mxu0 0.0
    %1810 = vmatpush1.msra.mxu0 0.0
    %1811 = vmatprep.subr.mxu0 0.0
    %1812 = vmatpush1.msra.mxu0 0.0
    %1813 = vmatprep.subr.mxu0 0.0
    %1814 = vmatpush1.msra.mxu0 0.0
    %1815 = vmatprep.subr.mxu0 0.0
    %1816 = vmatpush1.msra.mxu0 0.0
    %1817 = vmatprep.subr.mxu0 0.0
    %1818 = vmatpush1.msra.mxu0 0.0
    %1819 = vmatprep.subr.mxu0 0.0
    %1820 = vmatpush1.msra.mxu0 0.0
    %1821 = vmatprep.subr.mxu0 0.0
    %1822 = vmatpush1.msra.mxu0 0.0
    %1823 = vmatprep.subr.mxu0 0.0
    %1824 = vmatpush1.msra.mxu0 0.0
    %1825 = vmatprep.subr.mxu0 0.0
    %1826 = vmatpush1.msra.mxu0 0.0
    %1827 = vmatprep.subr.mxu0 0.0
    %1828 = vmatpush1.msra.mxu0 0.0
    %1829 = vmatprep.subr.mxu0 0.0
    %1830 = vmatpush1.msra.mxu0 0.0
    %1831 = vmatprep.subr.mxu0 0.0
    %1832 = vmatpush1.msra.mxu0 0.0
    %1833 = vmatprep.subr.mxu0 0.0
    %1834 = vmatpush1.msra.mxu0 0.0
    %1835 = vmatprep.subr.mxu0 0.0
    %1836 = vmatpush1.msra.mxu0 0.0
    %1837 = vmatprep.subr.mxu0 0.0
    %1838 = vmatpush1.msra.mxu0 0.0
    %1839 = vmatprep.subr.mxu0 0.0
    %1840 = vmatpush1.msra.mxu0 0.0
    %1841 = vmatprep.subr.mxu0 0.0
    %1842 = vmatpush1.msra.mxu0 0.0
    %1843 = vmatprep.subr.mxu0 0.0
    %1844 = vmatpush1.msra.mxu0 0.0
    %1845 = vmatprep.subr.mxu0 0.0
    %1846 = vmatpush1.msra.mxu0 0.0
    %1847 = vmatprep.subr.mxu0 0.0
    %1848 = vmatpush1.msra.mxu0 0.0
    %1849 = vmatprep.subr.mxu0 0.0
    %1850 = vmatpush1.msra.mxu0 0.0
    %1851 = vmatprep.mubr.f32.mxu0 0.0
    %1852 = vmatmul.mubr.f32.gmra.mrb[0].mxu0 %v1714
    %v1853 = vpop.f32.mrb[0].mxu0
    %v1854 = vadd.f32 0.0, %v1853
    %v1855 = vpop.f32.mrb[0].mxu0
    %v1856 = vadd.f32 0.0, %v1855
    %1857 = vdwg.mxu0
    %v1862 = vcombine.low %v1783, %v1785
    %v1863 = vcombine.low %v1854, %v1856
    %v1865 = vunpack.c.l.s4 1983009808
    %v1866 = vunpack.c.0.s8 %v1865
    %v1867 = vlaneseq
    %v1868 = vshrl.u32 %v1867, 7
    %v1869 = vsub.s32 %v1866, %v1868
    %v1870 = vrot.slane %v1862, %v1869
    %v1872 = vunpack.c.l.s4 1983009808
    %v1873 = vunpack.c.0.s8 %v1872
    %v1874 = vlaneseq
    %v1875 = vshrl.u32 %v1874, 7
    %v1876 = vsub.s32 %v1873, %v1875
    %v1877 = vrot.slane %v1863, %v1876
    %v1878 = vcombine.low %v1870, %v1877
    %v1880 = vadd.f32 %v1269, %v1878
    %v1881 = vxor.u32 %v1880, 2147483648
    %v1882 = vmul.f32 %v1881, 1.442695
    %v1883 = vpow.pop %v1882
    %v1884 = vadd.f32 %v1883, 1.0
    %v1885 = vrcp.pop %v1884
    %v1886 = vmul.f32 1.0, %v1885
    %v1888 = vrot.slane %v1880, 2
    %v1890 = vxor.u32 %v1888, 2147483648
    %v1891 = vmul.f32 %v1890, 1.442695
    %v1892 = vpow.pop %v1891
    %v1893 = vadd.f32 %v1892, 1.0
    %v1894 = vrcp.pop %v1893
    %v1895 = vmul.f32 1.0, %v1894
    %v1896 = vrot.slane %v1880, 4
    %v1898 = vtanh.pop %v1896
    %v1899 = vrot.slane %v1880, 6
    %v1901 = vxor.u32 %v1899, 2147483648
    %v1902 = vmul.f32 %v1901, 1.442695
    %v1903 = vpow.pop %v1902
    %v1904 = vadd.f32 %v1903, 1.0
    %v1905 = vrcp.pop %v1904
    %v1906 = vmul.f32 1.0, %v1905
    %v1907 = vmul.f32 %v1895, %v1710
    %v1908 = vmul.f32 %v1886, %v1898
    %v1909 = vadd.f32 %v1907, %v1908
    %v1910 = vtanh.pop %v1909
    %v1911 = vmul.f32 %v1906, %v1910
    %v1913 = vsel %vm1066, %v1911, 0
    %1915 = vmatprep.subr.mxu0 %v997
    %1916 = vmatpush1.msra.mxu0 %v996
    %1917 = vmatprep.subr.mxu0 %v1001
    %1918 = vmatpush1.msra.mxu0 %v1000
    %1919 = vmatprep.subr.mxu0 %v1005
    %1920 = vmatpush1.msra.mxu0 %v1004
    %1921 = vmatprep.subr.mxu0 %v1009
    %1922 = vmatpush1.msra.mxu0 %v1008
    %1923 = vmatprep.subr.mxu0 %v1013
    %1924 = vmatpush1.msra.mxu0 %v1012
    %1925 = vmatprep.subr.mxu0 %v1017
    %1926 = vmatpush1.msra.mxu0 %v1016
    %1927 = vmatprep.subr.mxu0 0.0
    %1928 = vmatpush1.msra.mxu0 0.0
    %1929 = vmatprep.subr.mxu0 0.0
    %1930 = vmatpush1.msra.mxu0 0.0
    %1931 = vmatprep.subr.mxu0 0.0
    %1932 = vmatpush1.msra.mxu0 0.0
    %1933 = vmatprep.subr.mxu0 0.0
    %1934 = vmatpush1.msra.mxu0 0.0
    %1935 = vmatprep.subr.mxu0 0.0
    %1936 = vmatpush1.msra.mxu0 0.0
    %1937 = vmatprep.subr.mxu0 0.0
    %1938 = vmatpush1.msra.mxu0 0.0
    %1939 = vmatprep.subr.mxu0 0.0
    %1940 = vmatpush1.msra.mxu0 0.0
    %1941 = vmatprep.subr.mxu0 0.0
    %1942 = vmatpush1.msra.mxu0 0.0
    %1943 = vmatprep.subr.mxu0 0.0
    %1944 = vmatpush1.msra.mxu0 0.0
    %1945 = vmatprep.subr.mxu0 0.0
    %1946 = vmatpush1.msra.mxu0 0.0
    %1947 = vmatprep.subr.mxu0 0.0
    %1948 = vmatpush1.msra.mxu0 0.0
    %1949 = vmatprep.subr.mxu0 0.0
    %1950 = vmatpush1.msra.mxu0 0.0
    %1951 = vmatprep.subr.mxu0 0.0
    %1952 = vmatpush1.msra.mxu0 0.0
    %1953 = vmatprep.subr.mxu0 0.0
    %1954 = vmatpush1.msra.mxu0 0.0
    %1955 = vmatprep.subr.mxu0 0.0
    %1956 = vmatpush1.msra.mxu0 0.0
    %1957 = vmatprep.subr.mxu0 0.0
    %1958 = vmatpush1.msra.mxu0 0.0
    %1959 = vmatprep.subr.mxu0 0.0
    %1960 = vmatpush1.msra.mxu0 0.0
    %1961 = vmatprep.subr.mxu0 0.0
    %1962 = vmatpush1.msra.mxu0 0.0
    %1963 = vmatprep.subr.mxu0 0.0
    %1964 = vmatpush1.msra.mxu0 0.0
    %1965 = vmatprep.subr.mxu0 0.0
    %1966 = vmatpush1.msra.mxu0 0.0
    %1967 = vmatprep.subr.mxu0 0.0
    %1968 = vmatpush1.msra.mxu0 0.0
    %1969 = vmatprep.subr.mxu0 0.0
    %1970 = vmatpush1.msra.mxu0 0.0
    %1971 = vmatprep.subr.mxu0 0.0
    %1972 = vmatpush1.msra.mxu0 0.0
    %1973 = vmatprep.subr.mxu0 0.0
    %1974 = vmatpush1.msra.mxu0 0.0
    %1975 = vmatprep.subr.mxu0 0.0
    %1976 = vmatpush1.msra.mxu0 0.0
    %1977 = vmatprep.subr.mxu0 0.0
    %1978 = vmatpush1.msra.mxu0 0.0
    %1979 = vmatprep.mubr.f32.mxu0 0.0
    %1980 = vmatmul.mubr.f32.gmra.mrb[0].mxu0 %v1913
    %v1981 = vpop.f32.mrb[0].mxu0
    %v1982 = vadd.f32 0.0, %v1981
    %v1983 = vpop.f32.mrb[0].mxu0
    %v1984 = vadd.f32 0.0, %v1983
    %1985 = vdwg.mxu0
    %1986 = vmatprep.subr.mxu0 %v999
    %1987 = vmatpush1.msra.mxu0 %v998
    %1988 = vmatprep.subr.mxu0 %v1003
    %1989 = vmatpush1.msra.mxu0 %v1002
    %1990 = vmatprep.subr.mxu0 %v1007
    %1991 = vmatpush1.msra.mxu0 %v1006
    %1992 = vmatprep.subr.mxu0 %v1011
    %1993 = vmatpush1.msra.mxu0 %v1010
    %1994 = vmatprep.subr.mxu0 %v1015
    %1995 = vmatpush1.msra.mxu0 %v1014
    %1996 = vmatprep.subr.mxu0 %v1019
    %1997 = vmatpush1.msra.mxu0 %v1018
    %1998 = vmatprep.subr.mxu0 0.0
    %1999 = vmatpush1.msra.mxu0 0.0
    %2000 = vmatprep.subr.mxu0 0.0
    %2001 = vmatpush1.msra.mxu0 0.0
    %2002 = vmatprep.subr.mxu0 0.0
    %2003 = vmatpush1.msra.mxu0 0.0
    %2004 = vmatprep.subr.mxu0 0.0
    %2005 = vmatpush1.msra.mxu0 0.0
    %2006 = vmatprep.subr.mxu0 0.0
    %2007 = vmatpush1.msra.mxu0 0.0
    %2008 = vmatprep.subr.mxu0 0.0
    %2009 = vmatpush1.msra.mxu0 0.0
    %2010 = vmatprep.subr.mxu0 0.0
    %2011 = vmatpush1.msra.mxu0 0.0
    %2012 = vmatprep.subr.mxu0 0.0
    %2013 = vmatpush1.msra.mxu0 0.0
    %2014 = vmatprep.subr.mxu0 0.0
    %2015 = vmatpush1.msra.mxu0 0.0
    %2016 = vmatprep.subr.mxu0 0.0
    %2017 = vmatpush1.msra.mxu0 0.0
    %2018 = vmatprep.subr.mxu0 0.0
    %2019 = vmatpush1.msra.mxu0 0.0
    %2020 = vmatprep.subr.mxu0 0.0
    %2021 = vmatpush1.msra.mxu0 0.0
    %2022 = vmatprep.subr.mxu0 0.0
    %2023 = vmatpush1.msra.mxu0 0.0
    %2024 = vmatprep.subr.mxu0 0.0
    %2025 = vmatpush1.msra.mxu0 0.0
    %2026 = vmatprep.subr.mxu0 0.0
    %2027 = vmatpush1.msra.mxu0 0.0
    %2028 = vmatprep.subr.mxu0 0.0
    %2029 = vmatpush1.msra.mxu0 0.0
    %2030 = vmatprep.subr.mxu0 0.0
    %2031 = vmatpush1.msra.mxu0 0.0
    %2032 = vmatprep.subr.mxu0 0.0
    %2033 = vmatpush1.msra.mxu0 0.0
    %2034 = vmatprep.subr.mxu0 0.0
    %2035 = vmatpush1.msra.mxu0 0.0
    %2036 = vmatprep.subr.mxu0 0.0
    %2037 = vmatpush1.msra.mxu0 0.0
    %2038 = vmatprep.subr.mxu0 0.0
    %2039 = vmatpush1.msra.mxu0 0.0
    %2040 = vmatprep.subr.mxu0 0.0
    %2041 = vmatpush1.msra.mxu0 0.0
    %2042 = vmatprep.subr.mxu0 0.0
    %2043 = vmatpush1.msra.mxu0 0.0
    %2044 = vmatprep.subr.mxu0 0.0
    %2045 = vmatpush1.msra.mxu0 0.0
    %2046 = vmatprep.subr.mxu0 0.0
    %2047 = vmatpush1.msra.mxu0 0.0
    %2048 = vmatprep.subr.mxu0 0.0
    %2049 = vmatpush1.msra.mxu0 0.0
    %2050 = vmatprep.mubr.f32.mxu0 0.0
    %2051 = vmatmul.mubr.f32.gmra.mrb[0].mxu0 %v1913
    %v2052 = vpop.f32.mrb[0].mxu0
    %v2053 = vadd.f32 0.0, %v2052
    %v2054 = vpop.f32.mrb[0].mxu0
    %v2055 = vadd.f32 0.0, %v2054
    %2056 = vdwg.mxu0
    %v2061 = vcombine.low %v1982, %v1984
    %v2062 = vcombine.low %v2053, %v2055
    %v2064 = vunpack.c.l.s4 1983009808
    %v2065 = vunpack.c.0.s8 %v2064
    %v2066 = vlaneseq
    %v2067 = vshrl.u32 %v2066, 7
    %v2068 = vsub.s32 %v2065, %v2067
    %v2069 = vrot.slane %v2061, %v2068
    %v2071 = vunpack.c.l.s4 1983009808
    %v2072 = vunpack.c.0.s8 %v2071
    %v2073 = vlaneseq
    %v2074 = vshrl.u32 %v2073, 7
    %v2075 = vsub.s32 %v2072, %v2074
    %v2076 = vrot.slane %v2062, %v2075
    %v2077 = vcombine.low %v2069, %v2076
    %v2079 = vadd.f32 %v1270, %v2077
    %v2080 = vxor.u32 %v2079, 2147483648
    %v2081 = vmul.f32 %v2080, 1.442695
    %v2082 = vpow.pop %v2081
    %v2083 = vadd.f32 %v2082, 1.0
    %v2084 = vrcp.pop %v2083
    %v2085 = vmul.f32 1.0, %v2084
    %v2087 = vrot.slane %v2079, 2
    %v2089 = vxor.u32 %v2087, 2147483648
    %v2090 = vmul.f32 %v2089, 1.442695
    %v2091 = vpow.pop %v2090
    %v2092 = vadd.f32 %v2091, 1.0
    %v2093 = vrcp.pop %v2092
    %v2094 = vmul.f32 1.0, %v2093
    %v2095 = vrot.slane %v2079, 4
    %v2097 = vtanh.pop %v2095
    %v2098 = vrot.slane %v2079, 6
    %v2100 = vxor.u32 %v2098, 2147483648
    %v2101 = vmul.f32 %v2100, 1.442695
    %v2102 = vpow.pop %v2101
    %v2103 = vadd.f32 %v2102, 1.0
    %v2104 = vrcp.pop %v2103
    %v2105 = vmul.f32 1.0, %v2104
    %v2106 = vmul.f32 %v2094, %v1909
    %v2107 = vmul.f32 %v2085, %v2097
    %v2108 = vadd.f32 %v2106, %v2107
    %v2109 = vtanh.pop %v2108
    %v2110 = vmul.f32 %v2105, %v2109
    %v2112 = vsel %vm1066, %v2110, 0
    %2114 = vmatprep.subr.mxu0 %v997
    %2115 = vmatpush1.msra.mxu0 %v996
    %2116 = vmatprep.subr.mxu0 %v1001
    %2117 = vmatpush1.msra.mxu0 %v1000
    %2118 = vmatprep.subr.mxu0 %v1005
    %2119 = vmatpush1.msra.mxu0 %v1004
    %2120 = vmatprep.subr.mxu0 %v1009
    %2121 = vmatpush1.msra.mxu0 %v1008
    %2122 = vmatprep.subr.mxu0 %v1013
    %2123 = vmatpush1.msra.mxu0 %v1012
    %2124 = vmatprep.subr.mxu0 %v1017
    %2125 = vmatpush1.msra.mxu0 %v1016
    %2126 = vmatprep.subr.mxu0 0.0
    %2127 = vmatpush1.msra.mxu0 0.0
    %2128 = vmatprep.subr.mxu0 0.0
    %2129 = vmatpush1.msra.mxu0 0.0
    %2130 = vmatprep.subr.mxu0 0.0
    %2131 = vmatpush1.msra.mxu0 0.0
    %2132 = vmatprep.subr.mxu0 0.0
    %2133 = vmatpush1.msra.mxu0 0.0
    %2134 = vmatprep.subr.mxu0 0.0
    %2135 = vmatpush1.msra.mxu0 0.0
    %2136 = vmatprep.subr.mxu0 0.0
    %2137 = vmatpush1.msra.mxu0 0.0
    %2138 = vmatprep.subr.mxu0 0.0
    %2139 = vmatpush1.msra.mxu0 0.0
    %2140 = vmatprep.subr.mxu0 0.0
    %2141 = vmatpush1.msra.mxu0 0.0
    %2142 = vmatprep.subr.mxu0 0.0
    %2143 = vmatpush1.msra.mxu0 0.0
    %2144 = vmatprep.subr.mxu0 0.0
    %2145 = vmatpush1.msra.mxu0 0.0
    %2146 = vmatprep.subr.mxu0 0.0
    %2147 = vmatpush1.msra.mxu0 0.0
    %2148 = vmatprep.subr.mxu0 0.0
    %2149 = vmatpush1.msra.mxu0 0.0
    %2150 = vmatprep.subr.mxu0 0.0
    %2151 = vmatpush1.msra.mxu0 0.0
    %2152 = vmatprep.subr.mxu0 0.0
    %2153 = vmatpush1.msra.mxu0 0.0
    %2154 = vmatprep.subr.mxu0 0.0
    %2155 = vmatpush1.msra.mxu0 0.0
    %2156 = vmatprep.subr.mxu0 0.0
    %2157 = vmatpush1.msra.mxu0 0.0
    %2158 = vmatprep.subr.mxu0 0.0
    %2159 = vmatpush1.msra.mxu0 0.0
    %2160 = vmatprep.subr.mxu0 0.0
    %2161 = vmatpush1.msra.mxu0 0.0
    %2162 = vmatprep.subr.mxu0 0.0
    %2163 = vmatpush1.msra.mxu0 0.0
    %2164 = vmatprep.subr.mxu0 0.0
    %2165 = vmatpush1.msra.mxu0 0.0
    %2166 = vmatprep.subr.mxu0 0.0
    %2167 = vmatpush1.msra.mxu0 0.0
    %2168 = vmatprep.subr.mxu0 0.0
    %2169 = vmatpush1.msra.mxu0 0.0
    %2170 = vmatprep.subr.mxu0 0.0
    %2171 = vmatpush1.msra.mxu0 0.0
    %2172 = vmatprep.subr.mxu0 0.0
    %2173 = vmatpush1.msra.mxu0 0.0
    %2174 = vmatprep.subr.mxu0 0.0
    %2175 = vmatpush1.msra.mxu0 0.0
    %2176 = vmatprep.subr.mxu0 0.0
    %2177 = vmatpush1.msra.mxu0 0.0
    %2178 = vmatprep.mubr.f32.mxu0 0.0
    %2179 = vmatmul.mubr.f32.gmra.mrb[0].mxu0 %v2112
    %v2180 = vpop.f32.mrb[0].mxu0
    %v2181 = vadd.f32 0.0, %v2180
    %v2182 = vpop.f32.mrb[0].mxu0
    %v2183 = vadd.f32 0.0, %v2182
    %2184 = vdwg.mxu0
    %2185 = vmatprep.subr.mxu0 %v999
    %2186 = vmatpush1.msra.mxu0 %v998
    %2187 = vmatprep.subr.mxu0 %v1003
    %2188 = vmatpush1.msra.mxu0 %v1002
    %2189 = vmatprep.subr.mxu0 %v1007
    %2190 = vmatpush1.msra.mxu0 %v1006
    %2191 = vmatprep.subr.mxu0 %v1011
    %2192 = vmatpush1.msra.mxu0 %v1010
    %2193 = vmatprep.subr.mxu0 %v1015
    %2194 = vmatpush1.msra.mxu0 %v1014
    %2195 = vmatprep.subr.mxu0 %v1019
    %2196 = vmatpush1.msra.mxu0 %v1018
    %2197 = vmatprep.subr.mxu0 0.0
    %2198 = vmatpush1.msra.mxu0 0.0
    %2199 = vmatprep.subr.mxu0 0.0
    %2200 = vmatpush1.msra.mxu0 0.0
    %2201 = vmatprep.subr.mxu0 0.0
    %2202 = vmatpush1.msra.mxu0 0.0
    %2203 = vmatprep.subr.mxu0 0.0
    %2204 = vmatpush1.msra.mxu0 0.0
    %2205 = vmatprep.subr.mxu0 0.0
    %2206 = vmatpush1.msra.mxu0 0.0
    %2207 = vmatprep.subr.mxu0 0.0
    %2208 = vmatpush1.msra.mxu0 0.0
    %2209 = vmatprep.subr.mxu0 0.0
    %2210 = vmatpush1.msra.mxu0 0.0
    %2211 = vmatprep.subr.mxu0 0.0
    %2212 = vmatpush1.msra.mxu0 0.0
    %2213 = vmatprep.subr.mxu0 0.0
    %2214 = vmatpush1.msra.mxu0 0.0
    %2215 = vmatprep.subr.mxu0 0.0
    %2216 = vmatpush1.msra.mxu0 0.0
    %2217 = vmatprep.subr.mxu0 0.0
    %2218 = vmatpush1.msra.mxu0 0.0
    %2219 = vmatprep.subr.mxu0 0.0
    %2220 = vmatpush1.msra.mxu0 0.0
    %2221 = vmatprep.subr.mxu0 0.0
    %2222 = vmatpush1.msra.mxu0 0.0
    %2223 = vmatprep.subr.mxu0 0.0
    %2224 = vmatpush1.msra.mxu0 0.0
    %2225 = vmatprep.subr.mxu0 0.0
    %2226 = vmatpush1.msra.mxu0 0.0
    %2227 = vmatprep.subr.mxu0 0.0
    %2228 = vmatpush1.msra.mxu0 0.0
    %2229 = vmatprep.subr.mxu0 0.0
    %2230 = vmatpush1.msra.mxu0 0.0
    %2231 = vmatprep.subr.mxu0 0.0
    %2232 = vmatpush1.msra.mxu0 0.0
    %2233 = vmatprep.subr.mxu0 0.0
    %2234 = vmatpush1.msra.mxu0 0.0
    %2235 = vmatprep.subr.mxu0 0.0
    %2236 = vmatpush1.msra.mxu0 0.0
    %2237 = vmatprep.subr.mxu0 0.0
    %2238 = vmatpush1.msra.mxu0 0.0
    %2239 = vmatprep.subr.mxu0 0.0
    %2240 = vmatpush1.msra.mxu0 0.0
    %2241 = vmatprep.subr.mxu0 0.0
    %2242 = vmatpush1.msra.mxu0 0.0
    %2243 = vmatprep.subr.mxu0 0.0
    %2244 = vmatpush1.msra.mxu0 0.0
    %2245 = vmatprep.subr.mxu0 0.0
    %2246 = vmatpush1.msra.mxu0 0.0
    %2247 = vmatprep.subr.mxu0 0.0
    %2248 = vmatpush1.msra.mxu0 0.0
    %2249 = vmatprep.mubr.f32.mxu0 0.0
    %2250 = vmatmul.mubr.f32.gmra.mrb[0].mxu0 %v2112
    %v2251 = vpop.f32.mrb[0].mxu0
    %v2252 = vadd.f32 0.0, %v2251
    %v2253 = vpop.f32.mrb[0].mxu0
    %v2254 = vadd.f32 0.0, %v2253
    %2255 = vdwg.mxu0
    %v2260 = vcombine.low %v2181, %v2183
    %v2261 = vcombine.low %v2252, %v2254
    %v2263 = vunpack.c.l.s4 1983009808
    %v2264 = vunpack.c.0.s8 %v2263
    %v2265 = vlaneseq
    %v2266 = vshrl.u32 %v2265, 7
    %v2267 = vsub.s32 %v2264, %v2266
    %v2268 = vrot.slane %v2260, %v2267
    %v2270 = vunpack.c.l.s4 1983009808
    %v2271 = vunpack.c.0.s8 %v2270
    %v2272 = vlaneseq
    %v2273 = vshrl.u32 %v2272, 7
    %v2274 = vsub.s32 %v2271, %v2273
    %v2275 = vrot.slane %v2261, %v2274
    %v2276 = vcombine.low %v2268, %v2275
    %v2278 = vadd.f32 %v1303, %v2276
    %v2279 = vxor.u32 %v2278, 2147483648
    %v2280 = vmul.f32 %v2279, 1.442695
    %v2281 = vpow.pop %v2280
    %v2282 = vadd.f32 %v2281, 1.0
    %v2283 = vrcp.pop %v2282
    %v2284 = vmul.f32 1.0, %v2283
    %v2286 = vrot.slane %v2278, 2
    %v2288 = vxor.u32 %v2286, 2147483648
    %v2289 = vmul.f32 %v2288, 1.442695
    %v2290 = vpow.pop %v2289
    %v2291 = vadd.f32 %v2290, 1.0
    %v2292 = vrcp.pop %v2291
    %v2293 = vmul.f32 1.0, %v2292
    %v2294 = vrot.slane %v2278, 4
    %v2296 = vtanh.pop %v2294
    %v2297 = vrot.slane %v2278, 6
    %v2299 = vxor.u32 %v2297, 2147483648
    %v2300 = vmul.f32 %v2299, 1.442695
    %v2301 = vpow.pop %v2300
    %v2302 = vadd.f32 %v2301, 1.0
    %v2303 = vrcp.pop %v2302
    %v2304 = vmul.f32 1.0, %v2303
    %v2305 = vmul.f32 %v2293, %v2108
    %v2306 = vmul.f32 %v2284, %v2296
    %v2307 = vadd.f32 %v2305, %v2306
    %v2308 = vtanh.pop %v2307
    %v2309 = vmul.f32 %v2304, %v2308
    %v2311 = vsel %vm1066, %v2309, 0
    %2313 = vmatprep.subr.mxu0 %v997
    %2314 = vmatpush1.msra.mxu0 %v996
    %2315 = vmatprep.subr.mxu0 %v1001
    %2316 = vmatpush1.msra.mxu0 %v1000
    %2317 = vmatprep.subr.mxu0 %v1005
    %2318 = vmatpush1.msra.mxu0 %v1004
    %2319 = vmatprep.subr.mxu0 %v1009
    %2320 = vmatpush1.msra.mxu0 %v1008
    %2321 = vmatprep.subr.mxu0 %v1013
    %2322 = vmatpush1.msra.mxu0 %v1012
    %2323 = vmatprep.subr.mxu0 %v1017
    %2324 = vmatpush1.msra.mxu0 %v1016
    %2325 = vmatprep.subr.mxu0 0.0
    %2326 = vmatpush1.msra.mxu0 0.0
    %2327 = vmatprep.subr.mxu0 0.0
    %2328 = vmatpush1.msra.mxu0 0.0
    %2329 = vmatprep.subr.mxu0 0.0
    %2330 = vmatpush1.msra.mxu0 0.0
    %2331 = vmatprep.subr.mxu0 0.0
    %2332 = vmatpush1.msra.mxu0 0.0
    %2333 = vmatprep.subr.mxu0 0.0
    %2334 = vmatpush1.msra.mxu0 0.0
    %2335 = vmatprep.subr.mxu0 0.0
    %2336 = vmatpush1.msra.mxu0 0.0
    %2337 = vmatprep.subr.mxu0 0.0
    %2338 = vmatpush1.msra.mxu0 0.0
    %2339 = vmatprep.subr.mxu0 0.0
    %2340 = vmatpush1.msra.mxu0 0.0
    %2341 = vmatprep.subr.mxu0 0.0
    %2342 = vmatpush1.msra.mxu0 0.0
    %2343 = vmatprep.subr.mxu0 0.0
    %2344 = vmatpush1.msra.mxu0 0.0
    %2345 = vmatprep.subr.mxu0 0.0
    %2346 = vmatpush1.msra.mxu0 0.0
    %2347 = vmatprep.subr.mxu0 0.0
    %2348 = vmatpush1.msra.mxu0 0.0
    %2349 = vmatprep.subr.mxu0 0.0
    %2350 = vmatpush1.msra.mxu0 0.0
    %2351 = vmatprep.subr.mxu0 0.0
    %2352 = vmatpush1.msra.mxu0 0.0
    %2353 = vmatprep.subr.mxu0 0.0
    %2354 = vmatpush1.msra.mxu0 0.0
    %2355 = vmatprep.subr.mxu0 0.0
    %2356 = vmatpush1.msra.mxu0 0.0
    %2357 = vmatprep.subr.mxu0 0.0
    %2358 = vmatpush1.msra.mxu0 0.0
    %2359 = vmatprep.subr.mxu0 0.0
    %2360 = vmatpush1.msra.mxu0 0.0
    %2361 = vmatprep.subr.mxu0 0.0
    %2362 = vmatpush1.msra.mxu0 0.0
    %2363 = vmatprep.subr.mxu0 0.0
    %2364 = vmatpush1.msra.mxu0 0.0
    %2365 = vmatprep.subr.mxu0 0.0
    %2366 = vmatpush1.msra.mxu0 0.0
    %2367 = vmatprep.subr.mxu0 0.0
    %2368 = vmatpush1.msra.mxu0 0.0
    %2369 = vmatprep.subr.mxu0 0.0
    %2370 = vmatpush1.msra.mxu0 0.0
    %2371 = vmatprep.subr.mxu0 0.0
    %2372 = vmatpush1.msra.mxu0 0.0
    %2373 = vmatprep.subr.mxu0 0.0
    %2374 = vmatpush1.msra.mxu0 0.0
    %2375 = vmatprep.subr.mxu0 0.0
    %2376 = vmatpush1.msra.mxu0 0.0
    %2377 = vmatprep.mubr.f32.mxu0 0.0
    %2378 = vmatmul.mubr.f32.gmra.mrb[0].mxu0 %v2311
    %v2379 = vpop.f32.mrb[0].mxu0
    %v2380 = vadd.f32 0.0, %v2379
    %v2381 = vpop.f32.mrb[0].mxu0
    %v2382 = vadd.f32 0.0, %v2381
    %2383 = vdwg.mxu0
    %2384 = vmatprep.subr.mxu0 %v999
    %2385 = vmatpush1.msra.mxu0 %v998
    %2386 = vmatprep.subr.mxu0 %v1003
    %2387 = vmatpush1.msra.mxu0 %v1002
    %2388 = vmatprep.subr.mxu0 %v1007
    %2389 = vmatpush1.msra.mxu0 %v1006
    %2390 = vmatprep.subr.mxu0 %v1011
    %2391 = vmatpush1.msra.mxu0 %v1010
    %2392 = vmatprep.subr.mxu0 %v1015
    %2393 = vmatpush1.msra.mxu0 %v1014
    %2394 = vmatprep.subr.mxu0 %v1019
    %2395 = vmatpush1.msra.mxu0 %v1018
    %2396 = vmatprep.subr.mxu0 0.0
    %2397 = vmatpush1.msra.mxu0 0.0
    %2398 = vmatprep.subr.mxu0 0.0
    %2399 = vmatpush1.msra.mxu0 0.0
    %2400 = vmatprep.subr.mxu0 0.0
    %2401 = vmatpush1.msra.mxu0 0.0
    %2402 = vmatprep.subr.mxu0 0.0
    %2403 = vmatpush1.msra.mxu0 0.0
    %2404 = vmatprep.subr.mxu0 0.0
    %2405 = vmatpush1.msra.mxu0 0.0
    %2406 = vmatprep.subr.mxu0 0.0
    %2407 = vmatpush1.msra.mxu0 0.0
    %2408 = vmatprep.subr.mxu0 0.0
    %2409 = vmatpush1.msra.mxu0 0.0
    %2410 = vmatprep.subr.mxu0 0.0
    %2411 = vmatpush1.msra.mxu0 0.0
    %2412 = vmatprep.subr.mxu0 0.0
    %2413 = vmatpush1.msra.mxu0 0.0
    %2414 = vmatprep.subr.mxu0 0.0
    %2415 = vmatpush1.msra.mxu0 0.0
    %2416 = vmatprep.subr.mxu0 0.0
    %2417 = vmatpush1.msra.mxu0 0.0
    %2418 = vmatprep.subr.mxu0 0.0
    %2419 = vmatpush1.msra.mxu0 0.0
    %2420 = vmatprep.subr.mxu0 0.0
    %2421 = vmatpush1.msra.mxu0 0.0
    %2422 = vmatprep.subr.mxu0 0.0
    %2423 = vmatpush1.msra.mxu0 0.0
    %2424 = vmatprep.subr.mxu0 0.0
    %2425 = vmatpush1.msra.mxu0 0.0
    %2426 = vmatprep.subr.mxu0 0.0
    %2427 = vmatpush1.msra.mxu0 0.0
    %2428 = vmatprep.subr.mxu0 0.0
    %2429 = vmatpush1.msra.mxu0 0.0
    %2430 = vmatprep.subr.mxu0 0.0
    %2431 = vmatpush1.msra.mxu0 0.0
    %2432 = vmatprep.subr.mxu0 0.0
    %2433 = vmatpush1.msra.mxu0 0.0
    %2434 = vmatprep.subr.mxu0 0.0
    %2435 = vmatpush1.msra.mxu0 0.0
    %2436 = vmatprep.subr.mxu0 0.0
    %2437 = vmatpush1.msra.mxu0 0.0
    %2438 = vmatprep.subr.mxu0 0.0
    %2439 = vmatpush1.msra.mxu0 0.0
    %2440 = vmatprep.subr.mxu0 0.0
    %2441 = vmatpush1.msra.mxu0 0.0
    %2442 = vmatprep.subr.mxu0 0.0
    %2443 = vmatpush1.msra.mxu0 0.0
    %2444 = vmatprep.subr.mxu0 0.0
    %2445 = vmatpush1.msra.mxu0 0.0
    %2446 = vmatprep.subr.mxu0 0.0
    %2447 = vmatpush1.msra.mxu0 0.0
    %2448 = vmatprep.mubr.f32.mxu0 0.0
    %2449 = vmatmul.mubr.f32.gmra.mrb[0].mxu0 %v2311
    %v2450 = vpop.f32.mrb[0].mxu0
    %v2451 = vadd.f32 0.0, %v2450
    %v2452 = vpop.f32.mrb[0].mxu0
    %v2453 = vadd.f32 0.0, %v2452
    %2454 = vdwg.mxu0
    %v2459 = vcombine.low %v2380, %v2382
    %v2460 = vcombine.low %v2451, %v2453
    %v2462 = vunpack.c.l.s4 1983009808
    %v2463 = vunpack.c.0.s8 %v2462
    %v2464 = vlaneseq
    %v2465 = vshrl.u32 %v2464, 7
    %v2466 = vsub.s32 %v2463, %v2465
    %v2467 = vrot.slane %v2459, %v2466
    %v2469 = vunpack.c.l.s4 1983009808
    %v2470 = vunpack.c.0.s8 %v2469
    %v2471 = vlaneseq
    %v2472 = vshrl.u32 %v2471, 7
    %v2473 = vsub.s32 %v2470, %v2472
    %v2474 = vrot.slane %v2460, %v2473
    %v2475 = vcombine.low %v2467, %v2474
    %v2477 = vadd.f32 %v1304, %v2475
    %v2478 = vxor.u32 %v2477, 2147483648
    %v2479 = vmul.f32 %v2478, 1.442695
    %v2480 = vpow.pop %v2479
    %v2481 = vadd.f32 %v2480, 1.0
    %v2482 = vrcp.pop %v2481
    %v2483 = vmul.f32 1.0, %v2482
    %v2485 = vrot.slane %v2477, 2
    %v2487 = vxor.u32 %v2485, 2147483648
    %v2488 = vmul.f32 %v2487, 1.442695
    %v2489 = vpow.pop %v2488
    %v2490 = vadd.f32 %v2489, 1.0
    %v2491 = vrcp.pop %v2490
    %v2492 = vmul.f32 1.0, %v2491
    %v2493 = vrot.slane %v2477, 4
    %v2495 = vtanh.pop %v2493
    %v2496 = vrot.slane %v2477, 6
    %v2498 = vxor.u32 %v2496, 2147483648
    %v2499 = vmul.f32 %v2498, 1.442695
    %v2500 = vpow.pop %v2499
    %v2501 = vadd.f32 %v2500, 1.0
    %v2502 = vrcp.pop %v2501
    %v2503 = vmul.f32 1.0, %v2502
    %v2504 = vmul.f32 %v2492, %v2307
    %v2505 = vmul.f32 %v2483, %v2495
    %v2506 = vadd.f32 %v2504, %v2505
    %v2507 = vtanh.pop %v2506
    %v2508 = vmul.f32 %v2503, %v2507
    %v2510 = vsel %vm1066, %v2508, 0
    %2512 = vmatprep.subr.mxu0 %v997
    %2513 = vmatpush1.msra.mxu0 %v996
    %2514 = vmatprep.subr.mxu0 %v1001
    %2515 = vmatpush1.msra.mxu0 %v1000
    %2516 = vmatprep.subr.mxu0 %v1005
    %2517 = vmatpush1.msra.mxu0 %v1004
    %2518 = vmatprep.subr.mxu0 %v1009
    %2519 = vmatpush1.msra.mxu0 %v1008
    %2520 = vmatprep.subr.mxu0 %v1013
    %2521 = vmatpush1.msra.mxu0 %v1012
    %2522 = vmatprep.subr.mxu0 %v1017
    %2523 = vmatpush1.msra.mxu0 %v1016
    %2524 = vmatprep.subr.mxu0 0.0
    %2525 = vmatpush1.msra.mxu0 0.0
    %2526 = vmatprep.subr.mxu0 0.0
    %2527 = vmatpush1.msra.mxu0 0.0
    %2528 = vmatprep.subr.mxu0 0.0
    %2529 = vmatpush1.msra.mxu0 0.0
    %2530 = vmatprep.subr.mxu0 0.0
    %2531 = vmatpush1.msra.mxu0 0.0
    %2532 = vmatprep.subr.mxu0 0.0
    %2533 = vmatpush1.msra.mxu0 0.0
    %2534 = vmatprep.subr.mxu0 0.0
    %2535 = vmatpush1.msra.mxu0 0.0
    %2536 = vmatprep.subr.mxu0 0.0
    %2537 = vmatpush1.msra.mxu0 0.0
    %2538 = vmatprep.subr.mxu0 0.0
    %2539 = vmatpush1.msra.mxu0 0.0
    %2540 = vmatprep.subr.mxu0 0.0
    %2541 = vmatpush1.msra.mxu0 0.0
    %2542 = vmatprep.subr.mxu0 0.0
    %2543 = vmatpush1.msra.mxu0 0.0
    %2544 = vmatprep.subr.mxu0 0.0
    %2545 = vmatpush1.msra.mxu0 0.0
    %2546 = vmatprep.subr.mxu0 0.0
    %2547 = vmatpush1.msra.mxu0 0.0
    %2548 = vmatprep.subr.mxu0 0.0
    %2549 = vmatpush1.msra.mxu0 0.0
    %2550 = vmatprep.subr.mxu0 0.0
    %2551 = vmatpush1.msra.mxu0 0.0
    %2552 = vmatprep.subr.mxu0 0.0
    %2553 = vmatpush1.msra.mxu0 0.0
    %2554 = vmatprep.subr.mxu0 0.0
    %2555 = vmatpush1.msra.mxu0 0.0
    %2556 = vmatprep.subr.mxu0 0.0
    %2557 = vmatpush1.msra.mxu0 0.0
    %2558 = vmatprep.subr.mxu0 0.0
    %2559 = vmatpush1.msra.mxu0 0.0
    %2560 = vmatprep.subr.mxu0 0.0
    %2561 = vmatpush1.msra.mxu0 0.0
    %2562 = vmatprep.subr.mxu0 0.0
    %2563 = vmatpush1.msra.mxu0 0.0
    %2564 = vmatprep.subr.mxu0 0.0
    %2565 = vmatpush1.msra.mxu0 0.0
    %2566 = vmatprep.subr.mxu0 0.0
    %2567 = vmatpush1.msra.mxu0 0.0
    %2568 = vmatprep.subr.mxu0 0.0
    %2569 = vmatpush1.msra.mxu0 0.0
    %2570 = vmatprep.subr.mxu0 0.0
    %2571 = vmatpush1.msra.mxu0 0.0
    %2572 = vmatprep.subr.mxu0 0.0
    %2573 = vmatpush1.msra.mxu0 0.0
    %2574 = vmatprep.subr.mxu0 0.0
    %2575 = vmatpush1.msra.mxu0 0.0
    %2576 = vmatprep.mubr.f32.mxu0 0.0
    %2577 = vmatmul.mubr.f32.gmra.mrb[0].mxu0 %v2510
    %v2578 = vpop.f32.mrb[0].mxu0
    %v2579 = vadd.f32 0.0, %v2578
    %v2580 = vpop.f32.mrb[0].mxu0
    %v2581 = vadd.f32 0.0, %v2580
    %2582 = vdwg.mxu0
    %2583 = vmatprep.subr.mxu0 %v999
    %2584 = vmatpush1.msra.mxu0 %v998
    %2585 = vmatprep.subr.mxu0 %v1003
    %2586 = vmatpush1.msra.mxu0 %v1002
    %2587 = vmatprep.subr.mxu0 %v1007
    %2588 = vmatpush1.msra.mxu0 %v1006
    %2589 = vmatprep.subr.mxu0 %v1011
    %2590 = vmatpush1.msra.mxu0 %v1010
    %2591 = vmatprep.subr.mxu0 %v1015
    %2592 = vmatpush1.msra.mxu0 %v1014
    %2593 = vmatprep.subr.mxu0 %v1019
    %2594 = vmatpush1.msra.mxu0 %v1018
    %2595 = vmatprep.subr.mxu0 0.0
    %2596 = vmatpush1.msra.mxu0 0.0
    %2597 = vmatprep.subr.mxu0 0.0
    %2598 = vmatpush1.msra.mxu0 0.0
    %2599 = vmatprep.subr.mxu0 0.0
    %2600 = vmatpush1.msra.mxu0 0.0
    %2601 = vmatprep.subr.mxu0 0.0
    %2602 = vmatpush1.msra.mxu0 0.0
    %2603 = vmatprep.subr.mxu0 0.0
    %2604 = vmatpush1.msra.mxu0 0.0
    %2605 = vmatprep.subr.mxu0 0.0
    %2606 = vmatpush1.msra.mxu0 0.0
    %2607 = vmatprep.subr.mxu0 0.0
    %2608 = vmatpush1.msra.mxu0 0.0
    %2609 = vmatprep.subr.mxu0 0.0
    %2610 = vmatpush1.msra.mxu0 0.0
    %2611 = vmatprep.subr.mxu0 0.0
    %2612 = vmatpush1.msra.mxu0 0.0
    %2613 = vmatprep.subr.mxu0 0.0
    %2614 = vmatpush1.msra.mxu0 0.0
    %2615 = vmatprep.subr.mxu0 0.0
    %2616 = vmatpush1.msra.mxu0 0.0
    %2617 = vmatprep.subr.mxu0 0.0
    %2618 = vmatpush1.msra.mxu0 0.0
    %2619 = vmatprep.subr.mxu0 0.0
    %2620 = vmatpush1.msra.mxu0 0.0
    %2621 = vmatprep.subr.mxu0 0.0
    %2622 = vmatpush1.msra.mxu0 0.0
    %2623 = vmatprep.subr.mxu0 0.0
    %2624 = vmatpush1.msra.mxu0 0.0
    %2625 = vmatprep.subr.mxu0 0.0
    %2626 = vmatpush1.msra.mxu0 0.0
    %2627 = vmatprep.subr.mxu0 0.0
    %2628 = vmatpush1.msra.mxu0 0.0
    %2629 = vmatprep.subr.mxu0 0.0
    %2630 = vmatpush1.msra.mxu0 0.0
    %2631 = vmatprep.subr.mxu0 0.0
    %2632 = vmatpush1.msra.mxu0 0.0
    %2633 = vmatprep.subr.mxu0 0.0
    %2634 = vmatpush1.msra.mxu0 0.0
    %2635 = vmatprep.subr.mxu0 0.0
    %2636 = vmatpush1.msra.mxu0 0.0
    %2637 = vmatprep.subr.mxu0 0.0
    %2638 = vmatpush1.msra.mxu0 0.0
    %2639 = vmatprep.subr.mxu0 0.0
    %2640 = vmatpush1.msra.mxu0 0.0
    %2641 = vmatprep.subr.mxu0 0.0
    %2642 = vmatpush1.msra.mxu0 0.0
    %2643 = vmatprep.subr.mxu0 0.0
    %2644 = vmatpush1.msra.mxu0 0.0
    %2645 = vmatprep.subr.mxu0 0.0
    %2646 = vmatpush1.msra.mxu0 0.0
    %2647 = vmatprep.mubr.f32.mxu0 0.0
    %2648 = vmatmul.mubr.f32.gmra.mrb[0].mxu0 %v2510
    %v2649 = vpop.f32.mrb[0].mxu0
    %v2650 = vadd.f32 0.0, %v2649
    %v2651 = vpop.f32.mrb[0].mxu0
    %v2652 = vadd.f32 0.0, %v2651
    %2653 = vdwg.mxu0
    %v2658 = vcombine.low %v2579, %v2581
    %v2659 = vcombine.low %v2650, %v2652
    %v2661 = vunpack.c.l.s4 1983009808
    %v2662 = vunpack.c.0.s8 %v2661
    %v2663 = vlaneseq
    %v2664 = vshrl.u32 %v2663, 7
    %v2665 = vsub.s32 %v2662, %v2664
    %v2666 = vrot.slane %v2658, %v2665
    %v2668 = vunpack.c.l.s4 1983009808
    %v2669 = vunpack.c.0.s8 %v2668
    %v2670 = vlaneseq
    %v2671 = vshrl.u32 %v2670, 7
    %v2672 = vsub.s32 %v2669, %v2671
    %v2673 = vrot.slane %v2659, %v2672
    %v2674 = vcombine.low %v2666, %v2673
    %v2676 = vadd.f32 %v1305, %v2674
    %v2677 = vxor.u32 %v2676, 2147483648
    %v2678 = vmul.f32 %v2677, 1.442695
    %v2679 = vpow.pop %v2678
    %v2680 = vadd.f32 %v2679, 1.0
    %v2681 = vrcp.pop %v2680
    %v2682 = vmul.f32 1.0, %v2681
    %v2684 = vrot.slane %v2676, 2
    %v2686 = vxor.u32 %v2684, 2147483648
    %v2687 = vmul.f32 %v2686, 1.442695
    %v2688 = vpow.pop %v2687
    %v2689 = vadd.f32 %v2688, 1.0
    %v2690 = vrcp.pop %v2689
    %v2691 = vmul.f32 1.0, %v2690
    %v2692 = vrot.slane %v2676, 4
    %v2694 = vtanh.pop %v2692
    %v2695 = vrot.slane %v2676, 6
    %v2697 = vxor.u32 %v2695, 2147483648
    %v2698 = vmul.f32 %v2697, 1.442695
    %v2699 = vpow.pop %v2698
    %v2700 = vadd.f32 %v2699, 1.0
    %v2701 = vrcp.pop %v2700
    %v2702 = vmul.f32 1.0, %v2701
    %v2703 = vmul.f32 %v2691, %v2506
    %v2704 = vmul.f32 %v2682, %v2694
    %v2705 = vadd.f32 %v2703, %v2704
    %v2706 = vtanh.pop %v2705
    %v2707 = vmul.f32 %v2702, %v2706
    %v2709 = vsel %vm1066, %v2707, 0
    %2711 = vmatprep.subr.mxu0 %v997
    %2712 = vmatpush1.msra.mxu0 %v996
    %2713 = vmatprep.subr.mxu0 %v1001
    %2714 = vmatpush1.msra.mxu0 %v1000
    %2715 = vmatprep.subr.mxu0 %v1005
    %2716 = vmatpush1.msra.mxu0 %v1004
    %2717 = vmatprep.subr.mxu0 %v1009
    %2718 = vmatpush1.msra.mxu0 %v1008
    %2719 = vmatprep.subr.mxu0 %v1013
    %2720 = vmatpush1.msra.mxu0 %v1012
    %2721 = vmatprep.subr.mxu0 %v1017
    %2722 = vmatpush1.msra.mxu0 %v1016
    %2723 = vmatprep.subr.mxu0 0.0
    %2724 = vmatpush1.msra.mxu0 0.0
    %2725 = vmatprep.subr.mxu0 0.0
    %2726 = vmatpush1.msra.mxu0 0.0
    %2727 = vmatprep.subr.mxu0 0.0
    %2728 = vmatpush1.msra.mxu0 0.0
    %2729 = vmatprep.subr.mxu0 0.0
    %2730 = vmatpush1.msra.mxu0 0.0
    %2731 = vmatprep.subr.mxu0 0.0
    %2732 = vmatpush1.msra.mxu0 0.0
    %2733 = vmatprep.subr.mxu0 0.0
    %2734 = vmatpush1.msra.mxu0 0.0
    %2735 = vmatprep.subr.mxu0 0.0
    %2736 = vmatpush1.msra.mxu0 0.0
    %2737 = vmatprep.subr.mxu0 0.0
    %2738 = vmatpush1.msra.mxu0 0.0
    %2739 = vmatprep.subr.mxu0 0.0
    %2740 = vmatpush1.msra.mxu0 0.0
    %2741 = vmatprep.subr.mxu0 0.0
    %2742 = vmatpush1.msra.mxu0 0.0
    %2743 = vmatprep.subr.mxu0 0.0
    %2744 = vmatpush1.msra.mxu0 0.0
    %2745 = vmatprep.subr.mxu0 0.0
    %2746 = vmatpush1.msra.mxu0 0.0
    %2747 = vmatprep.subr.mxu0 0.0
    %2748 = vmatpush1.msra.mxu0 0.0
    %2749 = vmatprep.subr.mxu0 0.0
    %2750 = vmatpush1.msra.mxu0 0.0
    %2751 = vmatprep.subr.mxu0 0.0
    %2752 = vmatpush1.msra.mxu0 0.0
    %2753 = vmatprep.subr.mxu0 0.0
    %2754 = vmatpush1.msra.mxu0 0.0
    %2755 = vmatprep.subr.mxu0 0.0
    %2756 = vmatpush1.msra.mxu0 0.0
    %2757 = vmatprep.subr.mxu0 0.0
    %2758 = vmatpush1.msra.mxu0 0.0
    %2759 = vmatprep.subr.mxu0 0.0
    %2760 = vmatpush1.msra.mxu0 0.0
    %2761 = vmatprep.subr.mxu0 0.0
    %2762 = vmatpush1.msra.mxu0 0.0
    %2763 = vmatprep.subr.mxu0 0.0
    %2764 = vmatpush1.msra.mxu0 0.0
    %2765 = vmatprep.subr.mxu0 0.0
    %2766 = vmatpush1.msra.mxu0 0.0
    %2767 = vmatprep.subr.mxu0 0.0
    %2768 = vmatpush1.msra.mxu0 0.0
    %2769 = vmatprep.subr.mxu0 0.0
    %2770 = vmatpush1.msra.mxu0 0.0
    %2771 = vmatprep.subr.mxu0 0.0
    %2772 = vmatpush1.msra.mxu0 0.0
    %2773 = vmatprep.subr.mxu0 0.0
    %2774 = vmatpush1.msra.mxu0 0.0
    %2775 = vmatprep.mubr.f32.mxu0 0.0
    %2776 = vmatmul.mubr.f32.gmra.mrb[0].mxu0 %v2709
    %v2777 = vpop.f32.mrb[0].mxu0
    %v2778 = vadd.f32 0.0, %v2777
    %v2779 = vpop.f32.mrb[0].mxu0
    %v2780 = vadd.f32 0.0, %v2779
    %2781 = vdwg.mxu0
    %2782 = vmatprep.subr.mxu0 %v999
    %2783 = vmatpush1.msra.mxu0 %v998
    %2784 = vmatprep.subr.mxu0 %v1003
    %2785 = vmatpush1.msra.mxu0 %v1002
    %2786 = vmatprep.subr.mxu0 %v1007
    %2787 = vmatpush1.msra.mxu0 %v1006
    %2788 = vmatprep.subr.mxu0 %v1011
    %2789 = vmatpush1.msra.mxu0 %v1010
    %2790 = vmatprep.subr.mxu0 %v1015
    %2791 = vmatpush1.msra.mxu0 %v1014
    %2792 = vmatprep.subr.mxu0 %v1019
    %2793 = vmatpush1.msra.mxu0 %v1018
    %2794 = vmatprep.subr.mxu0 0.0
    %2795 = vmatpush1.msra.mxu0 0.0
    %2796 = vmatprep.subr.mxu0 0.0
    %2797 = vmatpush1.msra.mxu0 0.0
    %2798 = vmatprep.subr.mxu0 0.0
    %2799 = vmatpush1.msra.mxu0 0.0
    %2800 = vmatprep.subr.mxu0 0.0
    %2801 = vmatpush1.msra.mxu0 0.0
    %2802 = vmatprep.subr.mxu0 0.0
    %2803 = vmatpush1.msra.mxu0 0.0
    %2804 = vmatprep.subr.mxu0 0.0
    %2805 = vmatpush1.msra.mxu0 0.0
    %2806 = vmatprep.subr.mxu0 0.0
    %2807 = vmatpush1.msra.mxu0 0.0
    %2808 = vmatprep.subr.mxu0 0.0
    %2809 = vmatpush1.msra.mxu0 0.0
    %2810 = vmatprep.subr.mxu0 0.0
    %2811 = vmatpush1.msra.mxu0 0.0
    %2812 = vmatprep.subr.mxu0 0.0
    %2813 = vmatpush1.msra.mxu0 0.0
    %2814 = vmatprep.subr.mxu0 0.0
    %2815 = vmatpush1.msra.mxu0 0.0
    %2816 = vmatprep.subr.mxu0 0.0
    %2817 = vmatpush1.msra.mxu0 0.0
    %2818 = vmatprep.subr.mxu0 0.0
    %2819 = vmatpush1.msra.mxu0 0.0
    %2820 = vmatprep.subr.mxu0 0.0
    %2821 = vmatpush1.msra.mxu0 0.0
    %2822 = vmatprep.subr.mxu0 0.0
    %2823 = vmatpush1.msra.mxu0 0.0
    %2824 = vmatprep.subr.mxu0 0.0
    %2825 = vmatpush1.msra.mxu0 0.0
    %2826 = vmatprep.subr.mxu0 0.0
    %2827 = vmatpush1.msra.mxu0 0.0
    %2828 = vmatprep.subr.mxu0 0.0
    %2829 = vmatpush1.msra.mxu0 0.0
    %2830 = vmatprep.subr.mxu0 0.0
    %2831 = vmatpush1.msra.mxu0 0.0
    %2832 = vmatprep.subr.mxu0 0.0
    %2833 = vmatpush1.msra.mxu0 0.0
    %2834 = vmatprep.subr.mxu0 0.0
    %2835 = vmatpush1.msra.mxu0 0.0
    %2836 = vmatprep.subr.mxu0 0.0
    %2837 = vmatpush1.msra.mxu0 0.0
    %2838 = vmatprep.subr.mxu0 0.0
    %2839 = vmatpush1.msra.mxu0 0.0
    %2840 = vmatprep.subr.mxu0 0.0
    %2841 = vmatpush1.msra.mxu0 0.0
    %2842 = vmatprep.subr.mxu0 0.0
    %2843 = vmatpush1.msra.mxu0 0.0
    %2844 = vmatprep.subr.mxu0 0.0
    %2845 = vmatpush1.msra.mxu0 0.0
    %2846 = vmatprep.mubr.f32.mxu0 0.0
    %2847 = vmatmul.mubr.f32.gmra.mrb[0].mxu0 %v2709
    %v2848 = vpop.f32.mrb[0].mxu0
    %v2849 = vadd.f32 0.0, %v2848
    %v2850 = vpop.f32.mrb[0].mxu0
    %v2851 = vadd.f32 0.0, %v2850
    %2852 = vdwg.mxu0
    %v2857 = vcombine.low %v2778, %v2780
    %v2858 = vcombine.low %v2849, %v2851
    %v2860 = vunpack.c.l.s4 1983009808
    %v2861 = vunpack.c.0.s8 %v2860
    %v2862 = vlaneseq
    %v2863 = vshrl.u32 %v2862, 7
    %v2864 = vsub.s32 %v2861, %v2863
    %v2865 = vrot.slane %v2857, %v2864
    %v2867 = vunpack.c.l.s4 1983009808
    %v2868 = vunpack.c.0.s8 %v2867
    %v2869 = vlaneseq
    %v2870 = vshrl.u32 %v2869, 7
    %v2871 = vsub.s32 %v2868, %v2870
    %v2872 = vrot.slane %v2858, %v2871
    %v2873 = vcombine.low %v2865, %v2872
    %v2875 = vadd.f32 %v1306, %v2873
    %v2876 = vxor.u32 %v2875, 2147483648
    %v2877 = vmul.f32 %v2876, 1.442695
    %v2878 = vpow.pop %v2877
    %v2879 = vadd.f32 %v2878, 1.0
    %v2880 = vrcp.pop %v2879
    %v2881 = vmul.f32 1.0, %v2880
    %v2883 = vrot.slane %v2875, 2
    %v2885 = vxor.u32 %v2883, 2147483648
    %v2886 = vmul.f32 %v2885, 1.442695
    %v2887 = vpow.pop %v2886
    %v2888 = vadd.f32 %v2887, 1.0
    %v2889 = vrcp.pop %v2888
    %v2890 = vmul.f32 1.0, %v2889
    %v2891 = vrot.slane %v2875, 4
    %v2893 = vtanh.pop %v2891
    %v2894 = vrot.slane %v2875, 6
    %v2896 = vxor.u32 %v2894, 2147483648
    %v2897 = vmul.f32 %v2896, 1.442695
    %v2898 = vpow.pop %v2897
    %v2899 = vadd.f32 %v2898, 1.0
    %v2900 = vrcp.pop %v2899
    %v2901 = vmul.f32 1.0, %v2900
    %v2902 = vmul.f32 %v2890, %v2705
    %v2903 = vmul.f32 %v2881, %v2893
    %v2904 = vadd.f32 %v2902, %v2903
    %v2905 = vtanh.pop %v2904
    %v2906 = vmul.f32 %v2901, %v2905
    %v2907 = vcombine.low %v1712, %v1712
    %v2909 = vunpack.c.l.s4 1983009808
    %v2910 = vunpack.c.0.s8 %v2909
    %v2911 = vlaneseq
    %v2912 = vshrl.u32 %v2911, 7
    %v2913 = vsub.s32 %v2910, %v2912
    %v2914 = vrot.slane %v2907, %v2913
    %v2917 = vunpack.c.l.s4 1983009808
    %v2918 = vunpack.c.0.s8 %v2917
    %v2919 = vlaneseq
    %v2920 = vshrl.u32 %v2919, 7
    %v2921 = vsub.s32 %v2918, %v2920
    %v2922 = vrot.slane %v1911, %v2921
    %v2923 = vcombine.low %v2922, %v2922
    %v2925 = vcombine.low %v2110, %v2110
    %v2927 = vunpack.c.l.s4 1983009808
    %v2928 = vunpack.c.0.s8 %v2927
    %v2929 = vlaneseq
    %v2930 = vshrl.u32 %v2929, 7
    %v2931 = vsub.s32 %v2928, %v2930
    %v2932 = vrot.slane %v2925, %v2931
    %v2933 = vcombine.low %v2932, %v2932
    %v2935 = vcombine.low %v2508, %v2508
    %v2937 = vunpack.c.l.s4 1983009808
    %v2938 = vunpack.c.0.s8 %v2937
    %v2939 = vlaneseq
    %v2940 = vshrl.u32 %v2939, 7
    %v2941 = vsub.s32 %v2938, %v2940
    %v2942 = vrot.slane %v2935, %v2941
    %v2945 = vunpack.c.l.s4 1983009808
    %v2946 = vunpack.c.0.s8 %v2945
    %v2947 = vlaneseq
    %v2948 = vshrl.u32 %v2947, 7
    %v2949 = vsub.s32 %v2946, %v2948
    %v2950 = vrot.slane %v2707, %v2949
    %v2951 = vcombine.low %v2950, %v2950
    %v2954 = vcombine.low %v2906, %v2906
    %v2956 = vunpack.c.l.s4 1983009808
    %v2957 = vunpack.c.0.s8 %v2956
    %v2958 = vlaneseq
    %v2959 = vshrl.u32 %v2958, 7
    %v2960 = vsub.s32 %v2957, %v2959
    %v2961 = vrot.slane %v2954, %v2960
    %v2962 = vcombine.low %v2961, %v2961
    %vm2964 = vcmask 1041408
    %v2965 = vsel %vm2964, %v1513, %v2914
    %vm2966 = vcmask 1043456
    %v2967 = vsel %vm2966, %v2965, %v2923
    %vm2968 = vcmask 1045504
    %v2969 = vsel %vm2968, %v2967, %v2933
    %v2970 = vsel %vm2964, %v2309, %v2942
    %v2971 = vsel %vm2966, %v2970, %v2951
    %v2972 = vsel %vm2968, %v2971, %v2962
    %s2973 = scalar_lea.vmem %s11, 192
    %v2974 = vld [vmem:[%s2973] sm:$0xff]
    %v2975 = vld [vmem:[%s2973 + $0x8] sm:$0xff]
    %v2976 = vld [vmem:[%s2973 + $0x10] sm:$0xff]
    %v2977 = vld [vmem:[%s2973 + $0x18] sm:$0xff]
    %v2978 = vld [vmem:[%s2973 + $0x20] sm:$0xff]
    %v2979 = vld [vmem:[%s2973 + $0x28] sm:$0xff]
    %v2980 = vld [vmem:[%s2973 + $0x30] sm:$0xff]
    %v2981 = vld [vmem:[%s2973 + $0x38] sm:$0xff]
    %v2982 = vld [vmem:[%s2973 + $0x40] sm:$0xff]
    %v2983 = vld [vmem:[%s2973 + $0x48] sm:$0xff]
    %v2984 = vld [vmem:[%s2973 + $0x50] sm:$0xff]
    %v2985 = vld [vmem:[%s2973 + $0x58] sm:$0xff]
    %v2986 = vld [vmem:[%s2973 + $0x60] sm:$0xff]
    %v2987 = vld [vmem:[%s2973 + $0x68] sm:$0xff]
    %v2988 = vld [vmem:[%s2973 + $0x70] sm:$0xff]
    %v2989 = vld [vmem:[%s2973 + $0x78] sm:$0xff]
    %v2990 = vld [vmem:[%s2973 + $0x80] sm:$0xff]
    %v2991 = vld [vmem:[%s2973 + $0x88] sm:$0xff]
    %v2992 = vld [vmem:[%s2973 + $0x90] sm:$0xff]
    %v2993 = vld [vmem:[%s2973 + $0x98] sm:$0xff]
    %v2994 = vld [vmem:[%s2973 + $0xa0] sm:$0xff]
    %v2995 = vld [vmem:[%s2973 + $0xa8] sm:$0xff]
    %v2996 = vld [vmem:[%s2973 + $0xb0] sm:$0xff]
    %v2997 = vld [vmem:[%s2973 + $0xb8] sm:$0xff]
    %s2998 = scalar_lea.vmem %s10, 192
    %v2999 = vld [vmem:[%s2998] sm:$0xff]
    %v3000 = vld [vmem:[%s2998 + $0x8] sm:$0xff]
    %v3001 = vld [vmem:[%s2998 + $0x10] sm:$0xff]
    %v3002 = vld [vmem:[%s2998 + $0x18] sm:$0xff]
    %v3003 = vld [vmem:[%s2998 + $0x20] sm:$0xff]
    %v3004 = vld [vmem:[%s2998 + $0x28] sm:$0xff]
    %v3005 = vld [vmem:[%s2998 + $0x30] sm:$0xff]
    %v3006 = vld [vmem:[%s2998 + $0x38] sm:$0xff]
    %v3007 = vld [vmem:[%s2998 + $0x40] sm:$0xff]
    %v3008 = vld [vmem:[%s2998 + $0x48] sm:$0xff]
    %v3009 = vld [vmem:[%s2998 + $0x50] sm:$0xff]
    %v3010 = vld [vmem:[%s2998 + $0x58] sm:$0xff]
    %v3011 = vld [vmem:[%s2998 + $0x60] sm:$0xff]
    %v3012 = vld [vmem:[%s2998 + $0x68] sm:$0xff]
    %v3013 = vld [vmem:[%s2998 + $0x70] sm:$0xff]
    %v3014 = vld [vmem:[%s2998 + $0x78] sm:$0xff]
    %v3015 = vld [vmem:[%s2998 + $0x80] sm:$0xff]
    %v3016 = vld [vmem:[%s2998 + $0x88] sm:$0xff]
    %v3017 = vld [vmem:[%s2998 + $0x90] sm:$0xff]
    %v3018 = vld [vmem:[%s2998 + $0x98] sm:$0xff]
    %v3019 = vld [vmem:[%s2998 + $0xa0] sm:$0xff]
    %v3020 = vld [vmem:[%s2998 + $0xa8] sm:$0xff]
    %v3021 = vld [vmem:[%s2998 + $0xb0] sm:$0xff]
    %v3022 = vld [vmem:[%s2998 + $0xb8] sm:$0xff]
    %s3023 = scalar_lea.vmem %s12, 4
    %v3024 = vld [vmem:[%s3023] sm:$0xf]
    %v3026 = vlaneseq
    %v3027 = vshrl.u32 %v3026, 7
    %v3028 = vsub.s32 0, %v3027
    %v3029 = vrot.slane %v3024, %v3028
    %v3030 = vlaneseq
    %v3031 = vshrl.u32 %v3030, 7
    %v3032 = vsub.s32 1, %v3031
    %v3033 = vrot.slane %v3024, %v3032
    %v3034 = vlaneseq
    %v3035 = vshrl.u32 %v3034, 7
    %v3036 = vsub.s32 2, %v3035
    %v3037 = vrot.slane %v3024, %v3036
    %v3038 = vlaneseq
    %v3039 = vshrl.u32 %v3038, 7
    %v3040 = vsub.s32 3, %v3039
    %v3041 = vrot.slane %v3024, %v3040
    %v3047 = vsel %vm1066, %v2969, 0
    %v3050 = vsel %vm1066, %v2972, 0
    %3052 = vmatprep.subr.mxu0 %v3000
    %3053 = vmatpush1.msra.mxu0 %v2999
    %3054 = vmatprep.subr.mxu0 %v3004
    %3055 = vmatpush1.msra.mxu0 %v3003
    %3056 = vmatprep.subr.mxu0 %v3008
    %3057 = vmatpush1.msra.mxu0 %v3007
    %3058 = vmatprep.subr.mxu0 %v3012
    %3059 = vmatpush1.msra.mxu0 %v3011
    %3060 = vmatprep.subr.mxu0 %v3016
    %3061 = vmatpush1.msra.mxu0 %v3015
    %3062 = vmatprep.subr.mxu0 %v3020
    %3063 = vmatpush1.msra.mxu0 %v3019
    %3064 = vmatprep.subr.mxu0 0.0
    %3065 = vmatpush1.msra.mxu0 0.0
    %3066 = vmatprep.subr.mxu0 0.0
    %3067 = vmatpush1.msra.mxu0 0.0
    %3068 = vmatprep.subr.mxu0 0.0
    %3069 = vmatpush1.msra.mxu0 0.0
    %3070 = vmatprep.subr.mxu0 0.0
    %3071 = vmatpush1.msra.mxu0 0.0
    %3072 = vmatprep.subr.mxu0 0.0
    %3073 = vmatpush1.msra.mxu0 0.0
    %3074 = vmatprep.subr.mxu0 0.0
    %3075 = vmatpush1.msra.mxu0 0.0
    %3076 = vmatprep.subr.mxu0 0.0
    %3077 = vmatpush1.msra.mxu0 0.0
    %3078 = vmatprep.subr.mxu0 0.0
    %3079 = vmatpush1.msra.mxu0 0.0
    %3080 = vmatprep.subr.mxu0 0.0
    %3081 = vmatpush1.msra.mxu0 0.0
    %3082 = vmatprep.subr.mxu0 0.0
    %3083 = vmatpush1.msra.mxu0 0.0
    %3084 = vmatprep.subr.mxu0 0.0
    %3085 = vmatpush1.msra.mxu0 0.0
    %3086 = vmatprep.subr.mxu0 0.0
    %3087 = vmatpush1.msra.mxu0 0.0
    %3088 = vmatprep.subr.mxu0 0.0
    %3089 = vmatpush1.msra.mxu0 0.0
    %3090 = vmatprep.subr.mxu0 0.0
    %3091 = vmatpush1.msra.mxu0 0.0
    %3092 = vmatprep.subr.mxu0 0.0
    %3093 = vmatpush1.msra.mxu0 0.0
    %3094 = vmatprep.subr.mxu0 0.0
    %3095 = vmatpush1.msra.mxu0 0.0
    %3096 = vmatprep.subr.mxu0 0.0
    %3097 = vmatpush1.msra.mxu0 0.0
    %3098 = vmatprep.subr.mxu0 0.0
    %3099 = vmatpush1.msra.mxu0 0.0
    %3100 = vmatprep.subr.mxu0 0.0
    %3101 = vmatpush1.msra.mxu0 0.0
    %3102 = vmatprep.subr.mxu0 0.0
    %3103 = vmatpush1.msra.mxu0 0.0
    %3104 = vmatprep.subr.mxu0 0.0
    %3105 = vmatpush1.msra.mxu0 0.0
    %3106 = vmatprep.subr.mxu0 0.0
    %3107 = vmatpush1.msra.mxu0 0.0
    %3108 = vmatprep.subr.mxu0 0.0
    %3109 = vmatpush1.msra.mxu0 0.0
    %3110 = vmatprep.subr.mxu0 0.0
    %3111 = vmatpush1.msra.mxu0 0.0
    %3112 = vmatprep.subr.mxu0 0.0
    %3113 = vmatpush1.msra.mxu0 0.0
    %3114 = vmatprep.subr.mxu0 0.0
    %3115 = vmatpush1.msra.mxu0 0.0
    %3116 = vmatprep.mubr.f32.mxu0 0.0
    %3117 = vmatmul.mubr.f32.gmra.mrb[0].mxu0 %v3047
    %v3118 = vpop.f32.mrb[0].mxu0
    %v3119 = vadd.f32 %v3029, %v3118
    %v3120 = vpop.f32.mrb[0].mxu0
    %v3121 = vadd.f32 %v3033, %v3120
    %3122 = vmatprep.mubr.f32.mxu0 0.0
    %3123 = vmatmul.mubr.f32.gmra.mrb[0].mxu0 %v3050
    %v3124 = vpop.f32.mrb[0].mxu0
    %v3125 = vadd.f32 %v3029, %v3124
    %v3126 = vpop.f32.mrb[0].mxu0
    %v3127 = vadd.f32 %v3033, %v3126
    %3128 = vdwg.mxu0
    %3129 = vmatprep.subr.mxu0 %v3002
    %3130 = vmatpush1.msra.mxu0 %v3001
    %3131 = vmatprep.subr.mxu0 %v3006
    %3132 = vmatpush1.msra.mxu0 %v3005
    %3133 = vmatprep.subr.mxu0 %v3010
    %3134 = vmatpush1.msra.mxu0 %v3009
    %3135 = vmatprep.subr.mxu0 %v3014
    %3136 = vmatpush1.msra.mxu0 %v3013
    %3137 = vmatprep.subr.mxu0 %v3018
    %3138 = vmatpush1.msra.mxu0 %v3017
    %3139 = vmatprep.subr.mxu0 %v3022
    %3140 = vmatpush1.msra.mxu0 %v3021
    %3141 = vmatprep.subr.mxu0 0.0
    %3142 = vmatpush1.msra.mxu0 0.0
    %3143 = vmatprep.subr.mxu0 0.0
    %3144 = vmatpush1.msra.mxu0 0.0
    %3145 = vmatprep.subr.mxu0 0.0
    %3146 = vmatpush1.msra.mxu0 0.0
    %3147 = vmatprep.subr.mxu0 0.0
    %3148 = vmatpush1.msra.mxu0 0.0
    %3149 = vmatprep.subr.mxu0 0.0
    %3150 = vmatpush1.msra.mxu0 0.0
    %3151 = vmatprep.subr.mxu0 0.0
    %3152 = vmatpush1.msra.mxu0 0.0
    %3153 = vmatprep.subr.mxu0 0.0
    %3154 = vmatpush1.msra.mxu0 0.0
    %3155 = vmatprep.subr.mxu0 0.0
    %3156 = vmatpush1.msra.mxu0 0.0
    %3157 = vmatprep.subr.mxu0 0.0
    %3158 = vmatpush1.msra.mxu0 0.0
    %3159 = vmatprep.subr.mxu0 0.0
    %3160 = vmatpush1.msra.mxu0 0.0
    %3161 = vmatprep.subr.mxu0 0.0
    %3162 = vmatpush1.msra.mxu0 0.0
    %3163 = vmatprep.subr.mxu0 0.0
    %3164 = vmatpush1.msra.mxu0 0.0
    %3165 = vmatprep.subr.mxu0 0.0
    %3166 = vmatpush1.msra.mxu0 0.0
    %3167 = vmatprep.subr.mxu0 0.0
    %3168 = vmatpush1.msra.mxu0 0.0
    %3169 = vmatprep.subr.mxu0 0.0
    %3170 = vmatpush1.msra.mxu0 0.0
    %3171 = vmatprep.subr.mxu0 0.0
    %3172 = vmatpush1.msra.mxu0 0.0
    %3173 = vmatprep.subr.mxu0 0.0
    %3174 = vmatpush1.msra.mxu0 0.0
    %3175 = vmatprep.subr.mxu0 0.0
    %3176 = vmatpush1.msra.mxu0 0.0
    %3177 = vmatprep.subr.mxu0 0.0
    %3178 = vmatpush1.msra.mxu0 0.0
    %3179 = vmatprep.subr.mxu0 0.0
    %3180 = vmatpush1.msra.mxu0 0.0
    %3181 = vmatprep.subr.mxu0 0.0
    %3182 = vmatpush1.msra.mxu0 0.0
    %3183 = vmatprep.subr.mxu0 0.0
    %3184 = vmatpush1.msra.mxu0 0.0
    %3185 = vmatprep.subr.mxu0 0.0
    %3186 = vmatpush1.msra.mxu0 0.0
    %3187 = vmatprep.subr.mxu0 0.0
    %3188 = vmatpush1.msra.mxu0 0.0
    %3189 = vmatprep.subr.mxu0 0.0
    %3190 = vmatpush1.msra.mxu0 0.0
    %3191 = vmatprep.subr.mxu0 0.0
    %3192 = vmatpush1.msra.mxu0 0.0
    %3193 = vmatprep.mubr.f32.mxu0 0.0
    %3194 = vmatmul.mubr.f32.gmra.mrb[0].mxu0 %v3047
    %v3195 = vpop.f32.mrb[0].mxu0
    %v3196 = vadd.f32 %v3037, %v3195
    %v3197 = vpop.f32.mrb[0].mxu0
    %v3198 = vadd.f32 %v3041, %v3197
    %3199 = vmatprep.mubr.f32.mxu0 0.0
    %3200 = vmatmul.mubr.f32.gmra.mrb[0].mxu0 %v3050
    %v3201 = vpop.f32.mrb[0].mxu0
    %v3202 = vadd.f32 %v3037, %v3201
    %v3203 = vpop.f32.mrb[0].mxu0
    %v3204 = vadd.f32 %v3041, %v3203
    %3205 = vdwg.mxu0
    %v3214 = vcombine.low %v3119, %v3121
    %v3215 = vcombine.high %v3119, %v3121
    %v3216 = vcombine.low %v3196, %v3198
    %v3217 = vcombine.high %v3196, %v3198
    %v3219 = vunpack.c.l.s4 1983009808
    %v3220 = vunpack.c.0.s8 %v3219
    %v3221 = vlaneseq
    %v3222 = vshrl.u32 %v3221, 7
    %v3223 = vsub.s32 %v3220, %v3222
    %v3224 = vrot.slane %v3214, %v3223
    %v3226 = vunpack.c.l.s4 1983009808
    %v3227 = vunpack.c.0.s8 %v3226
    %v3228 = vlaneseq
    %v3229 = vshrl.u32 %v3228, 7
    %v3230 = vsub.s32 %v3227, %v3229
    %v3231 = vrot.slane %v3215, %v3230
    %v3233 = vunpack.c.l.s4 1983009808
    %v3234 = vunpack.c.0.s8 %v3233
    %v3235 = vlaneseq
    %v3236 = vshrl.u32 %v3235, 7
    %v3237 = vsub.s32 %v3234, %v3236
    %v3238 = vrot.slane %v3216, %v3237
    %v3240 = vunpack.c.l.s4 1983009808
    %v3241 = vunpack.c.0.s8 %v3240
    %v3242 = vlaneseq
    %v3243 = vshrl.u32 %v3242, 7
    %v3244 = vsub.s32 %v3241, %v3243
    %v3245 = vrot.slane %v3217, %v3244
    %v3246 = vcombine.low %v3224, %v3238
    %v3247 = vcombine.high %v3224, %v3238
    %v3248 = vcombine.low %v3231, %v3245
    %v3249 = vcombine.high %v3231, %v3245
    %v3250 = vcombine.low %v3125, %v3127
    %v3251 = vcombine.high %v3125, %v3127
    %v3252 = vcombine.low %v3202, %v3204
    %v3253 = vcombine.high %v3202, %v3204
    %v3255 = vunpack.c.l.s4 1983009808
    %v3256 = vunpack.c.0.s8 %v3255
    %v3257 = vlaneseq
    %v3258 = vshrl.u32 %v3257, 7
    %v3259 = vsub.s32 %v3256, %v3258
    %v3260 = vrot.slane %v3250, %v3259
    %v3262 = vunpack.c.l.s4 1983009808
    %v3263 = vunpack.c.0.s8 %v3262
    %v3264 = vlaneseq
    %v3265 = vshrl.u32 %v3264, 7
    %v3266 = vsub.s32 %v3263, %v3265
    %v3267 = vrot.slane %v3251, %v3266
    %v3269 = vunpack.c.l.s4 1983009808
    %v3270 = vunpack.c.0.s8 %v3269
    %v3271 = vlaneseq
    %v3272 = vshrl.u32 %v3271, 7
    %v3273 = vsub.s32 %v3270, %v3272
    %v3274 = vrot.slane %v3252, %v3273
    %v3276 = vunpack.c.l.s4 1983009808
    %v3277 = vunpack.c.0.s8 %v3276
    %v3278 = vlaneseq
    %v3279 = vshrl.u32 %v3278, 7
    %v3280 = vsub.s32 %v3277, %v3279
    %v3281 = vrot.slane %v3253, %v3280
    %v3282 = vcombine.low %v3260, %v3274
    %v3283 = vcombine.high %v3260, %v3274
    %v3284 = vcombine.low %v3267, %v3281
    %v3285 = vcombine.high %v3267, %v3281
    %3294 = vmatprep.subr.mxu0 %v2975
    %3295 = vmatpush1.msra.mxu0 %v2974
    %3296 = vmatprep.subr.mxu0 %v2979
    %3297 = vmatpush1.msra.mxu0 %v2978
    %3298 = vmatprep.subr.mxu0 %v2983
    %3299 = vmatpush1.msra.mxu0 %v2982
    %3300 = vmatprep.subr.mxu0 %v2987
    %3301 = vmatpush1.msra.mxu0 %v2986
    %3302 = vmatprep.subr.mxu0 %v2991
    %3303 = vmatpush1.msra.mxu0 %v2990
    %3304 = vmatprep.subr.mxu0 %v2995
    %3305 = vmatpush1.msra.mxu0 %v2994
    %3306 = vmatprep.subr.mxu0 0.0
    %3307 = vmatpush1.msra.mxu0 0.0
    %3308 = vmatprep.subr.mxu0 0.0
    %3309 = vmatpush1.msra.mxu0 0.0
    %3310 = vmatprep.subr.mxu0 0.0
    %3311 = vmatpush1.msra.mxu0 0.0
    %3312 = vmatprep.subr.mxu0 0.0
    %3313 = vmatpush1.msra.mxu0 0.0
    %3314 = vmatprep.subr.mxu0 0.0
    %3315 = vmatpush1.msra.mxu0 0.0
    %3316 = vmatprep.subr.mxu0 0.0
    %3317 = vmatpush1.msra.mxu0 0.0
    %3318 = vmatprep.subr.mxu0 0.0
    %3319 = vmatpush1.msra.mxu0 0.0
    %3320 = vmatprep.subr.mxu0 0.0
    %3321 = vmatpush1.msra.mxu0 0.0
    %3322 = vmatprep.subr.mxu0 0.0
    %3323 = vmatpush1.msra.mxu0 0.0
    %3324 = vmatprep.subr.mxu0 0.0
    %3325 = vmatpush1.msra.mxu0 0.0
    %3326 = vmatprep.subr.mxu0 0.0
    %3327 = vmatpush1.msra.mxu0 0.0
    %3328 = vmatprep.subr.mxu0 0.0
    %3329 = vmatpush1.msra.mxu0 0.0
    %3330 = vmatprep.subr.mxu0 0.0
    %3331 = vmatpush1.msra.mxu0 0.0
    %3332 = vmatprep.subr.mxu0 0.0
    %3333 = vmatpush1.msra.mxu0 0.0
    %3334 = vmatprep.subr.mxu0 0.0
    %3335 = vmatpush1.msra.mxu0 0.0
    %3336 = vmatprep.subr.mxu0 0.0
    %3337 = vmatpush1.msra.mxu0 0.0
    %3338 = vmatprep.subr.mxu0 0.0
    %3339 = vmatpush1.msra.mxu0 0.0
    %3340 = vmatprep.subr.mxu0 0.0
    %3341 = vmatpush1.msra.mxu0 0.0
    %3342 = vmatprep.subr.mxu0 0.0
    %3343 = vmatpush1.msra.mxu0 0.0
    %3344 = vmatprep.subr.mxu0 0.0
    %3345 = vmatpush1.msra.mxu0 0.0
    %3346 = vmatprep.subr.mxu0 0.0
    %3347 = vmatpush1.msra.mxu0 0.0
    %3348 = vmatprep.subr.mxu0 0.0
    %3349 = vmatpush1.msra.mxu0 0.0
    %3350 = vmatprep.subr.mxu0 0.0
    %3351 = vmatpush1.msra.mxu0 0.0
    %3352 = vmatprep.subr.mxu0 0.0
    %3353 = vmatpush1.msra.mxu0 0.0
    %3354 = vmatprep.subr.mxu0 0.0
    %3355 = vmatpush1.msra.mxu0 0.0
    %3356 = vmatprep.subr.mxu0 0.0
    %3357 = vmatpush1.msra.mxu0 0.0
    %3358 = vmatprep.mubr.f32.mxu0 0.0
    %3359 = vmatmul.mubr.f32.gmra.mrb[0].mxu0 %v1316
    %v3360 = vpop.f32.mrb[0].mxu0
    %v3361 = vadd.f32 0.0, %v3360
    %v3362 = vpop.f32.mrb[0].mxu0
    %v3363 = vadd.f32 0.0, %v3362
    %3364 = vdwg.mxu0
    %3365 = vmatprep.subr.mxu0 %v2977
    %3366 = vmatpush1.msra.mxu0 %v2976
    %3367 = vmatprep.subr.mxu0 %v2981
    %3368 = vmatpush1.msra.mxu0 %v2980
    %3369 = vmatprep.subr.mxu0 %v2985
    %3370 = vmatpush1.msra.mxu0 %v2984
    %3371 = vmatprep.subr.mxu0 %v2989
    %3372 = vmatpush1.msra.mxu0 %v2988
    %3373 = vmatprep.subr.mxu0 %v2993
    %3374 = vmatpush1.msra.mxu0 %v2992
    %3375 = vmatprep.subr.mxu0 %v2997
    %3376 = vmatpush1.msra.mxu0 %v2996
    %3377 = vmatprep.subr.mxu0 0.0
    %3378 = vmatpush1.msra.mxu0 0.0
    %3379 = vmatprep.subr.mxu0 0.0
    %3380 = vmatpush1.msra.mxu0 0.0
    %3381 = vmatprep.subr.mxu0 0.0
    %3382 = vmatpush1.msra.mxu0 0.0
    %3383 = vmatprep.subr.mxu0 0.0
    %3384 = vmatpush1.msra.mxu0 0.0
    %3385 = vmatprep.subr.mxu0 0.0
    %3386 = vmatpush1.msra.mxu0 0.0
    %3387 = vmatprep.subr.mxu0 0.0
    %3388 = vmatpush1.msra.mxu0 0.0
    %3389 = vmatprep.subr.mxu0 0.0
    %3390 = vmatpush1.msra.mxu0 0.0
    %3391 = vmatprep.subr.mxu0 0.0
    %3392 = vmatpush1.msra.mxu0 0.0
    %3393 = vmatprep.subr.mxu0 0.0
    %3394 = vmatpush1.msra.mxu0 0.0
    %3395 = vmatprep.subr.mxu0 0.0
    %3396 = vmatpush1.msra.mxu0 0.0
    %3397 = vmatprep.subr.mxu0 0.0
    %3398 = vmatpush1.msra.mxu0 0.0
    %3399 = vmatprep.subr.mxu0 0.0
    %3400 = vmatpush1.msra.mxu0 0.0
    %3401 = vmatprep.subr.mxu0 0.0
    %3402 = vmatpush1.msra.mxu0 0.0
    %3403 = vmatprep.subr.mxu0 0.0
    %3404 = vmatpush1.msra.mxu0 0.0
    %3405 = vmatprep.subr.mxu0 0.0
    %3406 = vmatpush1.msra.mxu0 0.0
    %3407 = vmatprep.subr.mxu0 0.0
    %3408 = vmatpush1.msra.mxu0 0.0
    %3409 = vmatprep.subr.mxu0 0.0
    %3410 = vmatpush1.msra.mxu0 0.0
    %3411 = vmatprep.subr.mxu0 0.0
    %3412 = vmatpush1.msra.mxu0 0.0
    %3413 = vmatprep.subr.mxu0 0.0
    %3414 = vmatpush1.msra.mxu0 0.0
    %3415 = vmatprep.subr.mxu0 0.0
    %3416 = vmatpush1.msra.mxu0 0.0
    %3417 = vmatprep.subr.mxu0 0.0
    %3418 = vmatpush1.msra.mxu0 0.0
    %3419 = vmatprep.subr.mxu0 0.0
    %3420 = vmatpush1.msra.mxu0 0.0
    %3421 = vmatprep.subr.mxu0 0.0
    %3422 = vmatpush1.msra.mxu0 0.0
    %3423 = vmatprep.subr.mxu0 0.0
    %3424 = vmatpush1.msra.mxu0 0.0
    %3425 = vmatprep.subr.mxu0 0.0
    %3426 = vmatpush1.msra.mxu0 0.0
    %3427 = vmatprep.subr.mxu0 0.0
    %3428 = vmatpush1.msra.mxu0 0.0
    %3429 = vmatprep.mubr.f32.mxu0 0.0
    %3430 = vmatmul.mubr.f32.gmra.mrb[0].mxu0 %v1316
    %v3431 = vpop.f32.mrb[0].mxu0
    %v3432 = vadd.f32 0.0, %v3431
    %v3433 = vpop.f32.mrb[0].mxu0
    %v3434 = vadd.f32 0.0, %v3433
    %3435 = vdwg.mxu0
    %v3440 = vcombine.low %v3361, %v3363
    %v3441 = vcombine.low %v3432, %v3434
    %v3443 = vunpack.c.l.s4 1983009808
    %v3444 = vunpack.c.0.s8 %v3443
    %v3445 = vlaneseq
    %v3446 = vshrl.u32 %v3445, 7
    %v3447 = vsub.s32 %v3444, %v3446
    %v3448 = vrot.slane %v3440, %v3447
    %v3450 = vunpack.c.l.s4 1983009808
    %v3451 = vunpack.c.0.s8 %v3450
    %v3452 = vlaneseq
    %v3453 = vshrl.u32 %v3452, 7
    %v3454 = vsub.s32 %v3451, %v3453
    %v3455 = vrot.slane %v3441, %v3454
    %v3456 = vcombine.low %v3448, %v3455
    %v3458 = vadd.f32 %v3246, %v3456
    %v3459 = vxor.u32 %v3458, 2147483648
    %v3460 = vmul.f32 %v3459, 1.442695
    %v3461 = vpow.pop %v3460
    %v3462 = vadd.f32 %v3461, 1.0
    %v3463 = vrcp.pop %v3462
    %v3464 = vmul.f32 1.0, %v3463
    %v3466 = vrot.slane %v3458, 2
    %v3468 = vxor.u32 %v3466, 2147483648
    %v3469 = vmul.f32 %v3468, 1.442695
    %v3470 = vpow.pop %v3469
    %v3471 = vadd.f32 %v3470, 1.0
    %v3472 = vrcp.pop %v3471
    %v3473 = vmul.f32 1.0, %v3472
    %v3474 = vrot.slane %v3458, 4
    %v3476 = vtanh.pop %v3474
    %v3477 = vrot.slane %v3458, 6
    %v3479 = vxor.u32 %v3477, 2147483648
    %v3480 = vmul.f32 %v3479, 1.442695
    %v3481 = vpow.pop %v3480
    %v3482 = vadd.f32 %v3481, 1.0
    %v3483 = vrcp.pop %v3482
    %v3484 = vmul.f32 1.0, %v3483
    %v3485 = vmul.f32 %v3473, 0.0
    %v3486 = vmul.f32 %v3464, %v3476
    %v3487 = vadd.f32 %v3485, %v3486
    %v3488 = vtanh.pop %v3487
    %v3489 = vmul.f32 %v3484, %v3488
    %v3491 = vsel %vm1066, %v3489, 0
    %3493 = vmatprep.subr.mxu0 %v2975
    %3494 = vmatpush1.msra.mxu0 %v2974
    %3495 = vmatprep.subr.mxu0 %v2979
    %3496 = vmatpush1.msra.mxu0 %v2978
    %3497 = vmatprep.subr.mxu0 %v2983
    %3498 = vmatpush1.msra.mxu0 %v2982
    %3499 = vmatprep.subr.mxu0 %v2987
    %3500 = vmatpush1.msra.mxu0 %v2986
    %3501 = vmatprep.subr.mxu0 %v2991
    %3502 = vmatpush1.msra.mxu0 %v2990
    %3503 = vmatprep.subr.mxu0 %v2995
    %3504 = vmatpush1.msra.mxu0 %v2994
    %3505 = vmatprep.subr.mxu0 0.0
    %3506 = vmatpush1.msra.mxu0 0.0
    %3507 = vmatprep.subr.mxu0 0.0
    %3508 = vmatpush1.msra.mxu0 0.0
    %3509 = vmatprep.subr.mxu0 0.0
    %3510 = vmatpush1.msra.mxu0 0.0
    %3511 = vmatprep.subr.mxu0 0.0
    %3512 = vmatpush1.msra.mxu0 0.0
    %3513 = vmatprep.subr.mxu0 0.0
    %3514 = vmatpush1.msra.mxu0 0.0
    %3515 = vmatprep.subr.mxu0 0.0
    %3516 = vmatpush1.msra.mxu0 0.0
    %3517 = vmatprep.subr.mxu0 0.0
    %3518 = vmatpush1.msra.mxu0 0.0
    %3519 = vmatprep.subr.mxu0 0.0
    %3520 = vmatpush1.msra.mxu0 0.0
    %3521 = vmatprep.subr.mxu0 0.0
    %3522 = vmatpush1.msra.mxu0 0.0
    %3523 = vmatprep.subr.mxu0 0.0
    %3524 = vmatpush1.msra.mxu0 0.0
    %3525 = vmatprep.subr.mxu0 0.0
    %3526 = vmatpush1.msra.mxu0 0.0
    %3527 = vmatprep.subr.mxu0 0.0
    %3528 = vmatpush1.msra.mxu0 0.0
    %3529 = vmatprep.subr.mxu0 0.0
    %3530 = vmatpush1.msra.mxu0 0.0
    %3531 = vmatprep.subr.mxu0 0.0
    %3532 = vmatpush1.msra.mxu0 0.0
    %3533 = vmatprep.subr.mxu0 0.0
    %3534 = vmatpush1.msra.mxu0 0.0
    %3535 = vmatprep.subr.mxu0 0.0
    %3536 = vmatpush1.msra.mxu0 0.0
    %3537 = vmatprep.subr.mxu0 0.0
    %3538 = vmatpush1.msra.mxu0 0.0
    %3539 = vmatprep.subr.mxu0 0.0
    %3540 = vmatpush1.msra.mxu0 0.0
    %3541 = vmatprep.subr.mxu0 0.0
    %3542 = vmatpush1.msra.mxu0 0.0
    %3543 = vmatprep.subr.mxu0 0.0
    %3544 = vmatpush1.msra.mxu0 0.0
    %3545 = vmatprep.subr.mxu0 0.0
    %3546 = vmatpush1.msra.mxu0 0.0
    %3547 = vmatprep.subr.mxu0 0.0
    %3548 = vmatpush1.msra.mxu0 0.0
    %3549 = vmatprep.subr.mxu0 0.0
    %3550 = vmatpush1.msra.mxu0 0.0
    %3551 = vmatprep.subr.mxu0 0.0
    %3552 = vmatpush1.msra.mxu0 0.0
    %3553 = vmatprep.subr.mxu0 0.0
    %3554 = vmatpush1.msra.mxu0 0.0
    %3555 = vmatprep.subr.mxu0 0.0
    %3556 = vmatpush1.msra.mxu0 0.0
    %3557 = vmatprep.mubr.f32.mxu0 0.0
    %3558 = vmatmul.mubr.f32.gmra.mrb[0].mxu0 %v3491
    %v3559 = vpop.f32.mrb[0].mxu0
    %v3560 = vadd.f32 0.0, %v3559
    %v3561 = vpop.f32.mrb[0].mxu0
    %v3562 = vadd.f32 0.0, %v3561
    %3563 = vdwg.mxu0
    %3564 = vmatprep.subr.mxu0 %v2977
    %3565 = vmatpush1.msra.mxu0 %v2976
    %3566 = vmatprep.subr.mxu0 %v2981
    %3567 = vmatpush1.msra.mxu0 %v2980
    %3568 = vmatprep.subr.mxu0 %v2985
    %3569 = vmatpush1.msra.mxu0 %v2984
    %3570 = vmatprep.subr.mxu0 %v2989
    %3571 = vmatpush1.msra.mxu0 %v2988
    %3572 = vmatprep.subr.mxu0 %v2993
    %3573 = vmatpush1.msra.mxu0 %v2992
    %3574 = vmatprep.subr.mxu0 %v2997
    %3575 = vmatpush1.msra.mxu0 %v2996
    %3576 = vmatprep.subr.mxu0 0.0
    %3577 = vmatpush1.msra.mxu0 0.0
    %3578 = vmatprep.subr.mxu0 0.0
    %3579 = vmatpush1.msra.mxu0 0.0
    %3580 = vmatprep.subr.mxu0 0.0
    %3581 = vmatpush1.msra.mxu0 0.0
    %3582 = vmatprep.subr.mxu0 0.0
    %3583 = vmatpush1.msra.mxu0 0.0
    %3584 = vmatprep.subr.mxu0 0.0
    %3585 = vmatpush1.msra.mxu0 0.0
    %3586 = vmatprep.subr.mxu0 0.0
    %3587 = vmatpush1.msra.mxu0 0.0
    %3588 = vmatprep.subr.mxu0 0.0
    %3589 = vmatpush1.msra.mxu0 0.0
    %3590 = vmatprep.subr.mxu0 0.0
    %3591 = vmatpush1.msra.mxu0 0.0
    %3592 = vmatprep.subr.mxu0 0.0
    %3593 = vmatpush1.msra.mxu0 0.0
    %3594 = vmatprep.subr.mxu0 0.0
    %3595 = vmatpush1.msra.mxu0 0.0
    %3596 = vmatprep.subr.mxu0 0.0
    %3597 = vmatpush1.msra.mxu0 0.0
    %3598 = vmatprep.subr.mxu0 0.0
    %3599 = vmatpush1.msra.mxu0 0.0
    %3600 = vmatprep.subr.mxu0 0.0
    %3601 = vmatpush1.msra.mxu0 0.0
    %3602 = vmatprep.subr.mxu0 0.0
    %3603 = vmatpush1.msra.mxu0 0.0
    %3604 = vmatprep.subr.mxu0 0.0
    %3605 = vmatpush1.msra.mxu0 0.0
    %3606 = vmatprep.subr.mxu0 0.0
    %3607 = vmatpush1.msra.mxu0 0.0
    %3608 = vmatprep.subr.mxu0 0.0
    %3609 = vmatpush1.msra.mxu0 0.0
    %3610 = vmatprep.subr.mxu0 0.0
    %3611 = vmatpush1.msra.mxu0 0.0
    %3612 = vmatprep.subr.mxu0 0.0
    %3613 = vmatpush1.msra.mxu0 0.0
    %3614 = vmatprep.subr.mxu0 0.0
    %3615 = vmatpush1.msra.mxu0 0.0
    %3616 = vmatprep.subr.mxu0 0.0
    %3617 = vmatpush1.msra.mxu0 0.0
    %3618 = vmatprep.subr.mxu0 0.0
    %3619 = vmatpush1.msra.mxu0 0.0
    %3620 = vmatprep.subr.mxu0 0.0
    %3621 = vmatpush1.msra.mxu0 0.0
    %3622 = vmatprep.subr.mxu0 0.0
    %3623 = vmatpush1.msra.mxu0 0.0
    %3624 = vmatprep.subr.mxu0 0.0
    %3625 = vmatpush1.msra.mxu0 0.0
    %3626 = vmatprep.subr.mxu0 0.0
    %3627 = vmatpush1.msra.mxu0 0.0
    %3628 = vmatprep.mubr.f32.mxu0 0.0
    %3629 = vmatmul.mubr.f32.gmra.mrb[0].mxu0 %v3491
    %v3630 = vpop.f32.mrb[0].mxu0
    %v3631 = vadd.f32 0.0, %v3630
    %v3632 = vpop.f32.mrb[0].mxu0
    %v3633 = vadd.f32 0.0, %v3632
    %3634 = vdwg.mxu0
    %v3639 = vcombine.low %v3560, %v3562
    %v3640 = vcombine.low %v3631, %v3633
    %v3642 = vunpack.c.l.s4 1983009808
    %v3643 = vunpack.c.0.s8 %v3642
    %v3644 = vlaneseq
    %v3645 = vshrl.u32 %v3644, 7
    %v3646 = vsub.s32 %v3643, %v3645
    %v3647 = vrot.slane %v3639, %v3646
    %v3649 = vunpack.c.l.s4 1983009808
    %v3650 = vunpack.c.0.s8 %v3649
    %v3651 = vlaneseq
    %v3652 = vshrl.u32 %v3651, 7
    %v3653 = vsub.s32 %v3650, %v3652
    %v3654 = vrot.slane %v3640, %v3653
    %v3655 = vcombine.low %v3647, %v3654
    %v3657 = vadd.f32 %v3247, %v3655
    %v3658 = vxor.u32 %v3657, 2147483648
    %v3659 = vmul.f32 %v3658, 1.442695
    %v3660 = vpow.pop %v3659
    %v3661 = vadd.f32 %v3660, 1.0
    %v3662 = vrcp.pop %v3661
    %v3663 = vmul.f32 1.0, %v3662
    %v3665 = vrot.slane %v3657, 2
    %v3667 = vxor.u32 %v3665, 2147483648
    %v3668 = vmul.f32 %v3667, 1.442695
    %v3669 = vpow.pop %v3668
    %v3670 = vadd.f32 %v3669, 1.0
    %v3671 = vrcp.pop %v3670
    %v3672 = vmul.f32 1.0, %v3671
    %v3673 = vrot.slane %v3657, 4
    %v3675 = vtanh.pop %v3673
    %v3676 = vrot.slane %v3657, 6
    %v3678 = vxor.u32 %v3676, 2147483648
    %v3679 = vmul.f32 %v3678, 1.442695
    %v3680 = vpow.pop %v3679
    %v3681 = vadd.f32 %v3680, 1.0
    %v3682 = vrcp.pop %v3681
    %v3683 = vmul.f32 1.0, %v3682
    %v3684 = vmul.f32 %v3672, %v3487
    %v3685 = vmul.f32 %v3663, %v3675
    %v3686 = vadd.f32 %v3684, %v3685
    %v3687 = vtanh.pop %v3686
    %v3688 = vmul.f32 %v3683, %v3687
    %v3690 = vsel %vm1066, %v3688, 0
    %3692 = vmatprep.subr.mxu0 %v2975
    %3693 = vmatpush1.msra.mxu0 %v2974
    %3694 = vmatprep.subr.mxu0 %v2979
    %3695 = vmatpush1.msra.mxu0 %v2978
    %3696 = vmatprep.subr.mxu0 %v2983
    %3697 = vmatpush1.msra.mxu0 %v2982
    %3698 = vmatprep.subr.mxu0 %v2987
    %3699 = vmatpush1.msra.mxu0 %v2986
    %3700 = vmatprep.subr.mxu0 %v2991
    %3701 = vmatpush1.msra.mxu0 %v2990
    %3702 = vmatprep.subr.mxu0 %v2995
    %3703 = vmatpush1.msra.mxu0 %v2994
    %3704 = vmatprep.subr.mxu0 0.0
    %3705 = vmatpush1.msra.mxu0 0.0
    %3706 = vmatprep.subr.mxu0 0.0
    %3707 = vmatpush1.msra.mxu0 0.0
    %3708 = vmatprep.subr.mxu0 0.0
    %3709 = vmatpush1.msra.mxu0 0.0
    %3710 = vmatprep.subr.mxu0 0.0
    %3711 = vmatpush1.msra.mxu0 0.0
    %3712 = vmatprep.subr.mxu0 0.0
    %3713 = vmatpush1.msra.mxu0 0.0
    %3714 = vmatprep.subr.mxu0 0.0
    %3715 = vmatpush1.msra.mxu0 0.0
    %3716 = vmatprep.subr.mxu0 0.0
    %3717 = vmatpush1.msra.mxu0 0.0
    %3718 = vmatprep.subr.mxu0 0.0
    %3719 = vmatpush1.msra.mxu0 0.0
    %3720 = vmatprep.subr.mxu0 0.0
    %3721 = vmatpush1.msra.mxu0 0.0
    %3722 = vmatprep.subr.mxu0 0.0
    %3723 = vmatpush1.msra.mxu0 0.0
    %3724 = vmatprep.subr.mxu0 0.0
    %3725 = vmatpush1.msra.mxu0 0.0
    %3726 = vmatprep.subr.mxu0 0.0
    %3727 = vmatpush1.msra.mxu0 0.0
    %3728 = vmatprep.subr.mxu0 0.0
    %3729 = vmatpush1.msra.mxu0 0.0
    %3730 = vmatprep.subr.mxu0 0.0
    %3731 = vmatpush1.msra.mxu0 0.0
    %3732 = vmatprep.subr.mxu0 0.0
    %3733 = vmatpush1.msra.mxu0 0.0
    %3734 = vmatprep.subr.mxu0 0.0
    %3735 = vmatpush1.msra.mxu0 0.0
    %3736 = vmatprep.subr.mxu0 0.0
    %3737 = vmatpush1.msra.mxu0 0.0
    %3738 = vmatprep.subr.mxu0 0.0
    %3739 = vmatpush1.msra.mxu0 0.0
    %3740 = vmatprep.subr.mxu0 0.0
    %3741 = vmatpush1.msra.mxu0 0.0
    %3742 = vmatprep.subr.mxu0 0.0
    %3743 = vmatpush1.msra.mxu0 0.0
    %3744 = vmatprep.subr.mxu0 0.0
    %3745 = vmatpush1.msra.mxu0 0.0
    %3746 = vmatprep.subr.mxu0 0.0
    %3747 = vmatpush1.msra.mxu0 0.0
    %3748 = vmatprep.subr.mxu0 0.0
    %3749 = vmatpush1.msra.mxu0 0.0
    %3750 = vmatprep.subr.mxu0 0.0
    %3751 = vmatpush1.msra.mxu0 0.0
    %3752 = vmatprep.subr.mxu0 0.0
    %3753 = vmatpush1.msra.mxu0 0.0
    %3754 = vmatprep.subr.mxu0 0.0
    %3755 = vmatpush1.msra.mxu0 0.0
    %3756 = vmatprep.mubr.f32.mxu0 0.0
    %3757 = vmatmul.mubr.f32.gmra.mrb[0].mxu0 %v3690
    %v3758 = vpop.f32.mrb[0].mxu0
    %v3759 = vadd.f32 0.0, %v3758
    %v3760 = vpop.f32.mrb[0].mxu0
    %v3761 = vadd.f32 0.0, %v3760
    %3762 = vdwg.mxu0
    %3763 = vmatprep.subr.mxu0 %v2977
    %3764 = vmatpush1.msra.mxu0 %v2976
    %3765 = vmatprep.subr.mxu0 %v2981
    %3766 = vmatpush1.msra.mxu0 %v2980
    %3767 = vmatprep.subr.mxu0 %v2985
    %3768 = vmatpush1.msra.mxu0 %v2984
    %3769 = vmatprep.subr.mxu0 %v2989
    %3770 = vmatpush1.msra.mxu0 %v2988
    %3771 = vmatprep.subr.mxu0 %v2993
    %3772 = vmatpush1.msra.mxu0 %v2992
    %3773 = vmatprep.subr.mxu0 %v2997
    %3774 = vmatpush1.msra.mxu0 %v2996
    %3775 = vmatprep.subr.mxu0 0.0
    %3776 = vmatpush1.msra.mxu0 0.0
    %3777 = vmatprep.subr.mxu0 0.0
    %3778 = vmatpush1.msra.mxu0 0.0
    %3779 = vmatprep.subr.mxu0 0.0
    %3780 = vmatpush1.msra.mxu0 0.0
    %3781 = vmatprep.subr.mxu0 0.0
    %3782 = vmatpush1.msra.mxu0 0.0
    %3783 = vmatprep.subr.mxu0 0.0
    %3784 = vmatpush1.msra.mxu0 0.0
    %3785 = vmatprep.subr.mxu0 0.0
    %3786 = vmatpush1.msra.mxu0 0.0
    %3787 = vmatprep.subr.mxu0 0.0
    %3788 = vmatpush1.msra.mxu0 0.0
    %3789 = vmatprep.subr.mxu0 0.0
    %3790 = vmatpush1.msra.mxu0 0.0
    %3791 = vmatprep.subr.mxu0 0.0
    %3792 = vmatpush1.msra.mxu0 0.0
    %3793 = vmatprep.subr.mxu0 0.0
    %3794 = vmatpush1.msra.mxu0 0.0
    %3795 = vmatprep.subr.mxu0 0.0
    %3796 = vmatpush1.msra.mxu0 0.0
    %3797 = vmatprep.subr.mxu0 0.0
    %3798 = vmatpush1.msra.mxu0 0.0
    %3799 = vmatprep.subr.mxu0 0.0
    %3800 = vmatpush1.msra.mxu0 0.0
    %3801 = vmatprep.subr.mxu0 0.0
    %3802 = vmatpush1.msra.mxu0 0.0
    %3803 = vmatprep.subr.mxu0 0.0
    %3804 = vmatpush1.msra.mxu0 0.0
    %3805 = vmatprep.subr.mxu0 0.0
    %3806 = vmatpush1.msra.mxu0 0.0
    %3807 = vmatprep.subr.mxu0 0.0
    %3808 = vmatpush1.msra.mxu0 0.0
    %3809 = vmatprep.subr.mxu0 0.0
    %3810 = vmatpush1.msra.mxu0 0.0
    %3811 = vmatprep.subr.mxu0 0.0
    %3812 = vmatpush1.msra.mxu0 0.0
    %3813 = vmatprep.subr.mxu0 0.0
    %3814 = vmatpush1.msra.mxu0 0.0
    %3815 = vmatprep.subr.mxu0 0.0
    %3816 = vmatpush1.msra.mxu0 0.0
    %3817 = vmatprep.subr.mxu0 0.0
    %3818 = vmatpush1.msra.mxu0 0.0
    %3819 = vmatprep.subr.mxu0 0.0
    %3820 = vmatpush1.msra.mxu0 0.0
    %3821 = vmatprep.subr.mxu0 0.0
    %3822 = vmatpush1.msra.mxu0 0.0
    %3823 = vmatprep.subr.mxu0 0.0
    %3824 = vmatpush1.msra.mxu0 0.0
    %3825 = vmatprep.subr.mxu0 0.0
    %3826 = vmatpush1.msra.mxu0 0.0
    %3827 = vmatprep.mubr.f32.mxu0 0.0
    %3828 = vmatmul.mubr.f32.gmra.mrb[0].mxu0 %v3690
    %v3829 = vpop.f32.mrb[0].mxu0
    %v3830 = vadd.f32 0.0, %v3829
    %v3831 = vpop.f32.mrb[0].mxu0
    %v3832 = vadd.f32 0.0, %v3831
    %3833 = vdwg.mxu0
    %v3838 = vcombine.low %v3759, %v3761
    %v3839 = vcombine.low %v3830, %v3832
    %v3841 = vunpack.c.l.s4 1983009808
    %v3842 = vunpack.c.0.s8 %v3841
    %v3843 = vlaneseq
    %v3844 = vshrl.u32 %v3843, 7
    %v3845 = vsub.s32 %v3842, %v3844
    %v3846 = vrot.slane %v3838, %v3845
    %v3848 = vunpack.c.l.s4 1983009808
    %v3849 = vunpack.c.0.s8 %v3848
    %v3850 = vlaneseq
    %v3851 = vshrl.u32 %v3850, 7
    %v3852 = vsub.s32 %v3849, %v3851
    %v3853 = vrot.slane %v3839, %v3852
    %v3854 = vcombine.low %v3846, %v3853
    %v3856 = vadd.f32 %v3248, %v3854
    %v3857 = vxor.u32 %v3856, 2147483648
    %v3858 = vmul.f32 %v3857, 1.442695
    %v3859 = vpow.pop %v3858
    %v3860 = vadd.f32 %v3859, 1.0
    %v3861 = vrcp.pop %v3860
    %v3862 = vmul.f32 1.0, %v3861
    %v3864 = vrot.slane %v3856, 2
    %v3866 = vxor.u32 %v3864, 2147483648
    %v3867 = vmul.f32 %v3866, 1.442695
    %v3868 = vpow.pop %v3867
    %v3869 = vadd.f32 %v3868, 1.0
    %v3870 = vrcp.pop %v3869
    %v3871 = vmul.f32 1.0, %v3870
    %v3872 = vrot.slane %v3856, 4
    %v3874 = vtanh.pop %v3872
    %v3875 = vrot.slane %v3856, 6
    %v3877 = vxor.u32 %v3875, 2147483648
    %v3878 = vmul.f32 %v3877, 1.442695
    %v3879 = vpow.pop %v3878
    %v3880 = vadd.f32 %v3879, 1.0
    %v3881 = vrcp.pop %v3880
    %v3882 = vmul.f32 1.0, %v3881
    %v3883 = vmul.f32 %v3871, %v3686
    %v3884 = vmul.f32 %v3862, %v3874
    %v3885 = vadd.f32 %v3883, %v3884
    %v3886 = vtanh.pop %v3885
    %v3887 = vmul.f32 %v3882, %v3886
    %v3889 = vsel %vm1066, %v3887, 0
    %3891 = vmatprep.subr.mxu0 %v2975
    %3892 = vmatpush1.msra.mxu0 %v2974
    %3893 = vmatprep.subr.mxu0 %v2979
    %3894 = vmatpush1.msra.mxu0 %v2978
    %3895 = vmatprep.subr.mxu0 %v2983
    %3896 = vmatpush1.msra.mxu0 %v2982
    %3897 = vmatprep.subr.mxu0 %v2987
    %3898 = vmatpush1.msra.mxu0 %v2986
    %3899 = vmatprep.subr.mxu0 %v2991
    %3900 = vmatpush1.msra.mxu0 %v2990
    %3901 = vmatprep.subr.mxu0 %v2995
    %3902 = vmatpush1.msra.mxu0 %v2994
    %3903 = vmatprep.subr.mxu0 0.0
    %3904 = vmatpush1.msra.mxu0 0.0
    %3905 = vmatprep.subr.mxu0 0.0
    %3906 = vmatpush1.msra.mxu0 0.0
    %3907 = vmatprep.subr.mxu0 0.0
    %3908 = vmatpush1.msra.mxu0 0.0
    %3909 = vmatprep.subr.mxu0 0.0
    %3910 = vmatpush1.msra.mxu0 0.0
    %3911 = vmatprep.subr.mxu0 0.0
    %3912 = vmatpush1.msra.mxu0 0.0
    %3913 = vmatprep.subr.mxu0 0.0
    %3914 = vmatpush1.msra.mxu0 0.0
    %3915 = vmatprep.subr.mxu0 0.0
    %3916 = vmatpush1.msra.mxu0 0.0
    %3917 = vmatprep.subr.mxu0 0.0
    %3918 = vmatpush1.msra.mxu0 0.0
    %3919 = vmatprep.subr.mxu0 0.0
    %3920 = vmatpush1.msra.mxu0 0.0
    %3921 = vmatprep.subr.mxu0 0.0
    %3922 = vmatpush1.msra.mxu0 0.0
    %3923 = vmatprep.subr.mxu0 0.0
    %3924 = vmatpush1.msra.mxu0 0.0
    %3925 = vmatprep.subr.mxu0 0.0
    %3926 = vmatpush1.msra.mxu0 0.0
    %3927 = vmatprep.subr.mxu0 0.0
    %3928 = vmatpush1.msra.mxu0 0.0
    %3929 = vmatprep.subr.mxu0 0.0
    %3930 = vmatpush1.msra.mxu0 0.0
    %3931 = vmatprep.subr.mxu0 0.0
    %3932 = vmatpush1.msra.mxu0 0.0
    %3933 = vmatprep.subr.mxu0 0.0
    %3934 = vmatpush1.msra.mxu0 0.0
    %3935 = vmatprep.subr.mxu0 0.0
    %3936 = vmatpush1.msra.mxu0 0.0
    %3937 = vmatprep.subr.mxu0 0.0
    %3938 = vmatpush1.msra.mxu0 0.0
    %3939 = vmatprep.subr.mxu0 0.0
    %3940 = vmatpush1.msra.mxu0 0.0
    %3941 = vmatprep.subr.mxu0 0.0
    %3942 = vmatpush1.msra.mxu0 0.0
    %3943 = vmatprep.subr.mxu0 0.0
    %3944 = vmatpush1.msra.mxu0 0.0
    %3945 = vmatprep.subr.mxu0 0.0
    %3946 = vmatpush1.msra.mxu0 0.0
    %3947 = vmatprep.subr.mxu0 0.0
    %3948 = vmatpush1.msra.mxu0 0.0
    %3949 = vmatprep.subr.mxu0 0.0
    %3950 = vmatpush1.msra.mxu0 0.0
    %3951 = vmatprep.subr.mxu0 0.0
    %3952 = vmatpush1.msra.mxu0 0.0
    %3953 = vmatprep.subr.mxu0 0.0
    %3954 = vmatpush1.msra.mxu0 0.0
    %3955 = vmatprep.mubr.f32.mxu0 0.0
    %3956 = vmatmul.mubr.f32.gmra.mrb[0].mxu0 %v3889
    %v3957 = vpop.f32.mrb[0].mxu0
    %v3958 = vadd.f32 0.0, %v3957
    %v3959 = vpop.f32.mrb[0].mxu0
    %v3960 = vadd.f32 0.0, %v3959
    %3961 = vdwg.mxu0
    %3962 = vmatprep.subr.mxu0 %v2977
    %3963 = vmatpush1.msra.mxu0 %v2976
    %3964 = vmatprep.subr.mxu0 %v2981
    %3965 = vmatpush1.msra.mxu0 %v2980
    %3966 = vmatprep.subr.mxu0 %v2985
    %3967 = vmatpush1.msra.mxu0 %v2984
    %3968 = vmatprep.subr.mxu0 %v2989
    %3969 = vmatpush1.msra.mxu0 %v2988
    %3970 = vmatprep.subr.mxu0 %v2993
    %3971 = vmatpush1.msra.mxu0 %v2992
    %3972 = vmatprep.subr.mxu0 %v2997
    %3973 = vmatpush1.msra.mxu0 %v2996
    %3974 = vmatprep.subr.mxu0 0.0
    %3975 = vmatpush1.msra.mxu0 0.0
    %3976 = vmatprep.subr.mxu0 0.0
    %3977 = vmatpush1.msra.mxu0 0.0
    %3978 = vmatprep.subr.mxu0 0.0
    %3979 = vmatpush1.msra.mxu0 0.0
    %3980 = vmatprep.subr.mxu0 0.0
    %3981 = vmatpush1.msra.mxu0 0.0
    %3982 = vmatprep.subr.mxu0 0.0
    %3983 = vmatpush1.msra.mxu0 0.0
    %3984 = vmatprep.subr.mxu0 0.0
    %3985 = vmatpush1.msra.mxu0 0.0
    %3986 = vmatprep.subr.mxu0 0.0
    %3987 = vmatpush1.msra.mxu0 0.0
    %3988 = vmatprep.subr.mxu0 0.0
    %3989 = vmatpush1.msra.mxu0 0.0
    %3990 = vmatprep.subr.mxu0 0.0
    %3991 = vmatpush1.msra.mxu0 0.0
    %3992 = vmatprep.subr.mxu0 0.0
    %3993 = vmatpush1.msra.mxu0 0.0
    %3994 = vmatprep.subr.mxu0 0.0
    %3995 = vmatpush1.msra.mxu0 0.0
    %3996 = vmatprep.subr.mxu0 0.0
    %3997 = vmatpush1.msra.mxu0 0.0
    %3998 = vmatprep.subr.mxu0 0.0
    %3999 = vmatpush1.msra.mxu0 0.0
    %4000 = vmatprep.subr.mxu0 0.0
    %4001 = vmatpush1.msra.mxu0 0.0
    %4002 = vmatprep.subr.mxu0 0.0
    %4003 = vmatpush1.msra.mxu0 0.0
    %4004 = vmatprep.subr.mxu0 0.0
    %4005 = vmatpush1.msra.mxu0 0.0
    %4006 = vmatprep.subr.mxu0 0.0
    %4007 = vmatpush1.msra.mxu0 0.0
    %4008 = vmatprep.subr.mxu0 0.0
    %4009 = vmatpush1.msra.mxu0 0.0
    %4010 = vmatprep.subr.mxu0 0.0
    %4011 = vmatpush1.msra.mxu0 0.0
    %4012 = vmatprep.subr.mxu0 0.0
    %4013 = vmatpush1.msra.mxu0 0.0
    %4014 = vmatprep.subr.mxu0 0.0
    %4015 = vmatpush1.msra.mxu0 0.0
    %4016 = vmatprep.subr.mxu0 0.0
    %4017 = vmatpush1.msra.mxu0 0.0
    %4018 = vmatprep.subr.mxu0 0.0
    %4019 = vmatpush1.msra.mxu0 0.0
    %4020 = vmatprep.subr.mxu0 0.0
    %4021 = vmatpush1.msra.mxu0 0.0
    %4022 = vmatprep.subr.mxu0 0.0
    %4023 = vmatpush1.msra.mxu0 0.0
    %4024 = vmatprep.subr.mxu0 0.0
    %4025 = vmatpush1.msra.mxu0 0.0
    %4026 = vmatprep.mubr.f32.mxu0 0.0
    %4027 = vmatmul.mubr.f32.gmra.mrb[0].mxu0 %v3889
    %v4028 = vpop.f32.mrb[0].mxu0
    %v4029 = vadd.f32 0.0, %v4028
    %v4030 = vpop.f32.mrb[0].mxu0
    %v4031 = vadd.f32 0.0, %v4030
    %4032 = vdwg.mxu0
    %v4037 = vcombine.low %v3958, %v3960
    %v4038 = vcombine.low %v4029, %v4031
    %v4040 = vunpack.c.l.s4 1983009808
    %v4041 = vunpack.c.0.s8 %v4040
    %v4042 = vlaneseq
    %v4043 = vshrl.u32 %v4042, 7
    %v4044 = vsub.s32 %v4041, %v4043
    %v4045 = vrot.slane %v4037, %v4044
    %v4047 = vunpack.c.l.s4 1983009808
    %v4048 = vunpack.c.0.s8 %v4047
    %v4049 = vlaneseq
    %v4050 = vshrl.u32 %v4049, 7
    %v4051 = vsub.s32 %v4048, %v4050
    %v4052 = vrot.slane %v4038, %v4051
    %v4053 = vcombine.low %v4045, %v4052
    %v4055 = vadd.f32 %v3249, %v4053
    %v4056 = vxor.u32 %v4055, 2147483648
    %v4057 = vmul.f32 %v4056, 1.442695
    %v4058 = vpow.pop %v4057
    %v4059 = vadd.f32 %v4058, 1.0
    %v4060 = vrcp.pop %v4059
    %v4061 = vmul.f32 1.0, %v4060
    %v4063 = vrot.slane %v4055, 2
    %v4065 = vxor.u32 %v4063, 2147483648
    %v4066 = vmul.f32 %v4065, 1.442695
    %v4067 = vpow.pop %v4066
    %v4068 = vadd.f32 %v4067, 1.0
    %v4069 = vrcp.pop %v4068
    %v4070 = vmul.f32 1.0, %v4069
    %v4071 = vrot.slane %v4055, 4
    %v4073 = vtanh.pop %v4071
    %v4074 = vrot.slane %v4055, 6
    %v4076 = vxor.u32 %v4074, 2147483648
    %v4077 = vmul.f32 %v4076, 1.442695
    %v4078 = vpow.pop %v4077
    %v4079 = vadd.f32 %v4078, 1.0
    %v4080 = vrcp.pop %v4079
    %v4081 = vmul.f32 1.0, %v4080
    %v4082 = vmul.f32 %v4070, %v3885
    %v4083 = vmul.f32 %v4061, %v4073
    %v4084 = vadd.f32 %v4082, %v4083
    %v4085 = vtanh.pop %v4084
    %v4086 = vmul.f32 %v4081, %v4085
    %v4088 = vsel %vm1066, %v4086, 0
    %4090 = vmatprep.subr.mxu0 %v2975
    %4091 = vmatpush1.msra.mxu0 %v2974
    %4092 = vmatprep.subr.mxu0 %v2979
    %4093 = vmatpush1.msra.mxu0 %v2978
    %4094 = vmatprep.subr.mxu0 %v2983
    %4095 = vmatpush1.msra.mxu0 %v2982
    %4096 = vmatprep.subr.mxu0 %v2987
    %4097 = vmatpush1.msra.mxu0 %v2986
    %4098 = vmatprep.subr.mxu0 %v2991
    %4099 = vmatpush1.msra.mxu0 %v2990
    %4100 = vmatprep.subr.mxu0 %v2995
    %4101 = vmatpush1.msra.mxu0 %v2994
    %4102 = vmatprep.subr.mxu0 0.0
    %4103 = vmatpush1.msra.mxu0 0.0
    %4104 = vmatprep.subr.mxu0 0.0
    %4105 = vmatpush1.msra.mxu0 0.0
    %4106 = vmatprep.subr.mxu0 0.0
    %4107 = vmatpush1.msra.mxu0 0.0
    %4108 = vmatprep.subr.mxu0 0.0
    %4109 = vmatpush1.msra.mxu0 0.0
    %4110 = vmatprep.subr.mxu0 0.0
    %4111 = vmatpush1.msra.mxu0 0.0
    %4112 = vmatprep.subr.mxu0 0.0
    %4113 = vmatpush1.msra.mxu0 0.0
    %4114 = vmatprep.subr.mxu0 0.0
    %4115 = vmatpush1.msra.mxu0 0.0
    %4116 = vmatprep.subr.mxu0 0.0
    %4117 = vmatpush1.msra.mxu0 0.0
    %4118 = vmatprep.subr.mxu0 0.0
    %4119 = vmatpush1.msra.mxu0 0.0
    %4120 = vmatprep.subr.mxu0 0.0
    %4121 = vmatpush1.msra.mxu0 0.0
    %4122 = vmatprep.subr.mxu0 0.0
    %4123 = vmatpush1.msra.mxu0 0.0
    %4124 = vmatprep.subr.mxu0 0.0
    %4125 = vmatpush1.msra.mxu0 0.0
    %4126 = vmatprep.subr.mxu0 0.0
    %4127 = vmatpush1.msra.mxu0 0.0
    %4128 = vmatprep.subr.mxu0 0.0
    %4129 = vmatpush1.msra.mxu0 0.0
    %4130 = vmatprep.subr.mxu0 0.0
    %4131 = vmatpush1.msra.mxu0 0.0
    %4132 = vmatprep.subr.mxu0 0.0
    %4133 = vmatpush1.msra.mxu0 0.0
    %4134 = vmatprep.subr.mxu0 0.0
    %4135 = vmatpush1.msra.mxu0 0.0
    %4136 = vmatprep.subr.mxu0 0.0
    %4137 = vmatpush1.msra.mxu0 0.0
    %4138 = vmatprep.subr.mxu0 0.0
    %4139 = vmatpush1.msra.mxu0 0.0
    %4140 = vmatprep.subr.mxu0 0.0
    %4141 = vmatpush1.msra.mxu0 0.0
    %4142 = vmatprep.subr.mxu0 0.0
    %4143 = vmatpush1.msra.mxu0 0.0
    %4144 = vmatprep.subr.mxu0 0.0
    %4145 = vmatpush1.msra.mxu0 0.0
    %4146 = vmatprep.subr.mxu0 0.0
    %4147 = vmatpush1.msra.mxu0 0.0
    %4148 = vmatprep.subr.mxu0 0.0
    %4149 = vmatpush1.msra.mxu0 0.0
    %4150 = vmatprep.subr.mxu0 0.0
    %4151 = vmatpush1.msra.mxu0 0.0
    %4152 = vmatprep.subr.mxu0 0.0
    %4153 = vmatpush1.msra.mxu0 0.0
    %4154 = vmatprep.mubr.f32.mxu0 0.0
    %4155 = vmatmul.mubr.f32.gmra.mrb[0].mxu0 %v4088
    %v4156 = vpop.f32.mrb[0].mxu0
    %v4157 = vadd.f32 0.0, %v4156
    %v4158 = vpop.f32.mrb[0].mxu0
    %v4159 = vadd.f32 0.0, %v4158
    %4160 = vdwg.mxu0
    %4161 = vmatprep.subr.mxu0 %v2977
    %4162 = vmatpush1.msra.mxu0 %v2976
    %4163 = vmatprep.subr.mxu0 %v2981
    %4164 = vmatpush1.msra.mxu0 %v2980
    %4165 = vmatprep.subr.mxu0 %v2985
    %4166 = vmatpush1.msra.mxu0 %v2984
    %4167 = vmatprep.subr.mxu0 %v2989
    %4168 = vmatpush1.msra.mxu0 %v2988
    %4169 = vmatprep.subr.mxu0 %v2993
    %4170 = vmatpush1.msra.mxu0 %v2992
    %4171 = vmatprep.subr.mxu0 %v2997
    %4172 = vmatpush1.msra.mxu0 %v2996
    %4173 = vmatprep.subr.mxu0 0.0
    %4174 = vmatpush1.msra.mxu0 0.0
    %4175 = vmatprep.subr.mxu0 0.0
    %4176 = vmatpush1.msra.mxu0 0.0
    %4177 = vmatprep.subr.mxu0 0.0
    %4178 = vmatpush1.msra.mxu0 0.0
    %4179 = vmatprep.subr.mxu0 0.0
    %4180 = vmatpush1.msra.mxu0 0.0
    %4181 = vmatprep.subr.mxu0 0.0
    %4182 = vmatpush1.msra.mxu0 0.0
    %4183 = vmatprep.subr.mxu0 0.0
    %4184 = vmatpush1.msra.mxu0 0.0
    %4185 = vmatprep.subr.mxu0 0.0
    %4186 = vmatpush1.msra.mxu0 0.0
    %4187 = vmatprep.subr.mxu0 0.0
    %4188 = vmatpush1.msra.mxu0 0.0
    %4189 = vmatprep.subr.mxu0 0.0
    %4190 = vmatpush1.msra.mxu0 0.0
    %4191 = vmatprep.subr.mxu0 0.0
    %4192 = vmatpush1.msra.mxu0 0.0
    %4193 = vmatprep.subr.mxu0 0.0
    %4194 = vmatpush1.msra.mxu0 0.0
    %4195 = vmatprep.subr.mxu0 0.0
    %4196 = vmatpush1.msra.mxu0 0.0
    %4197 = vmatprep.subr.mxu0 0.0
    %4198 = vmatpush1.msra.mxu0 0.0
    %4199 = vmatprep.subr.mxu0 0.0
    %4200 = vmatpush1.msra.mxu0 0.0
    %4201 = vmatprep.subr.mxu0 0.0
    %4202 = vmatpush1.msra.mxu0 0.0
    %4203 = vmatprep.subr.mxu0 0.0
    %4204 = vmatpush1.msra.mxu0 0.0
    %4205 = vmatprep.subr.mxu0 0.0
    %4206 = vmatpush1.msra.mxu0 0.0
    %4207 = vmatprep.subr.mxu0 0.0
    %4208 = vmatpush1.msra.mxu0 0.0
    %4209 = vmatprep.subr.mxu0 0.0
    %4210 = vmatpush1.msra.mxu0 0.0
    %4211 = vmatprep.subr.mxu0 0.0
    %4212 = vmatpush1.msra.mxu0 0.0
    %4213 = vmatprep.subr.mxu0 0.0
    %4214 = vmatpush1.msra.mxu0 0.0
    %4215 = vmatprep.subr.mxu0 0.0
    %4216 = vmatpush1.msra.mxu0 0.0
    %4217 = vmatprep.subr.mxu0 0.0
    %4218 = vmatpush1.msra.mxu0 0.0
    %4219 = vmatprep.subr.mxu0 0.0
    %4220 = vmatpush1.msra.mxu0 0.0
    %4221 = vmatprep.subr.mxu0 0.0
    %4222 = vmatpush1.msra.mxu0 0.0
    %4223 = vmatprep.subr.mxu0 0.0
    %4224 = vmatpush1.msra.mxu0 0.0
    %4225 = vmatprep.mubr.f32.mxu0 0.0
    %4226 = vmatmul.mubr.f32.gmra.mrb[0].mxu0 %v4088
    %v4227 = vpop.f32.mrb[0].mxu0
    %v4228 = vadd.f32 0.0, %v4227
    %v4229 = vpop.f32.mrb[0].mxu0
    %v4230 = vadd.f32 0.0, %v4229
    %4231 = vdwg.mxu0
    %v4236 = vcombine.low %v4157, %v4159
    %v4237 = vcombine.low %v4228, %v4230
    %v4239 = vunpack.c.l.s4 1983009808
    %v4240 = vunpack.c.0.s8 %v4239
    %v4241 = vlaneseq
    %v4242 = vshrl.u32 %v4241, 7
    %v4243 = vsub.s32 %v4240, %v4242
    %v4244 = vrot.slane %v4236, %v4243
    %v4246 = vunpack.c.l.s4 1983009808
    %v4247 = vunpack.c.0.s8 %v4246
    %v4248 = vlaneseq
    %v4249 = vshrl.u32 %v4248, 7
    %v4250 = vsub.s32 %v4247, %v4249
    %v4251 = vrot.slane %v4237, %v4250
    %v4252 = vcombine.low %v4244, %v4251
    %v4254 = vadd.f32 %v3282, %v4252
    %v4255 = vxor.u32 %v4254, 2147483648
    %v4256 = vmul.f32 %v4255, 1.442695
    %v4257 = vpow.pop %v4256
    %v4258 = vadd.f32 %v4257, 1.0
    %v4259 = vrcp.pop %v4258
    %v4260 = vmul.f32 1.0, %v4259
    %v4262 = vrot.slane %v4254, 2
    %v4264 = vxor.u32 %v4262, 2147483648
    %v4265 = vmul.f32 %v4264, 1.442695
    %v4266 = vpow.pop %v4265
    %v4267 = vadd.f32 %v4266, 1.0
    %v4268 = vrcp.pop %v4267
    %v4269 = vmul.f32 1.0, %v4268
    %v4270 = vrot.slane %v4254, 4
    %v4272 = vtanh.pop %v4270
    %v4273 = vrot.slane %v4254, 6
    %v4275 = vxor.u32 %v4273, 2147483648
    %v4276 = vmul.f32 %v4275, 1.442695
    %v4277 = vpow.pop %v4276
    %v4278 = vadd.f32 %v4277, 1.0
    %v4279 = vrcp.pop %v4278
    %v4280 = vmul.f32 1.0, %v4279
    %v4281 = vmul.f32 %v4269, %v4084
    %v4282 = vmul.f32 %v4260, %v4272
    %v4283 = vadd.f32 %v4281, %v4282
    %v4284 = vtanh.pop %v4283
    %v4285 = vmul.f32 %v4280, %v4284
    %v4287 = vsel %vm1066, %v4285, 0
    %4289 = vmatprep.subr.mxu0 %v2975
    %4290 = vmatpush1.msra.mxu0 %v2974
    %4291 = vmatprep.subr.mxu0 %v2979
    %4292 = vmatpush1.msra.mxu0 %v2978
    %4293 = vmatprep.subr.mxu0 %v2983
    %4294 = vmatpush1.msra.mxu0 %v2982
    %4295 = vmatprep.subr.mxu0 %v2987
    %4296 = vmatpush1.msra.mxu0 %v2986
    %4297 = vmatprep.subr.mxu0 %v2991
    %4298 = vmatpush1.msra.mxu0 %v2990
    %4299 = vmatprep.subr.mxu0 %v2995
    %4300 = vmatpush1.msra.mxu0 %v2994
    %4301 = vmatprep.subr.mxu0 0.0
    %4302 = vmatpush1.msra.mxu0 0.0
    %4303 = vmatprep.subr.mxu0 0.0
    %4304 = vmatpush1.msra.mxu0 0.0
    %4305 = vmatprep.subr.mxu0 0.0
    %4306 = vmatpush1.msra.mxu0 0.0
    %4307 = vmatprep.subr.mxu0 0.0
    %4308 = vmatpush1.msra.mxu0 0.0
    %4309 = vmatprep.subr.mxu0 0.0
    %4310 = vmatpush1.msra.mxu0 0.0
    %4311 = vmatprep.subr.mxu0 0.0
    %4312 = vmatpush1.msra.mxu0 0.0
    %4313 = vmatprep.subr.mxu0 0.0
    %4314 = vmatpush1.msra.mxu0 0.0
    %4315 = vmatprep.subr.mxu0 0.0
    %4316 = vmatpush1.msra.mxu0 0.0
    %4317 = vmatprep.subr.mxu0 0.0
    %4318 = vmatpush1.msra.mxu0 0.0
    %4319 = vmatprep.subr.mxu0 0.0
    %4320 = vmatpush1.msra.mxu0 0.0
    %4321 = vmatprep.subr.mxu0 0.0
    %4322 = vmatpush1.msra.mxu0 0.0
    %4323 = vmatprep.subr.mxu0 0.0
    %4324 = vmatpush1.msra.mxu0 0.0
    %4325 = vmatprep.subr.mxu0 0.0
    %4326 = vmatpush1.msra.mxu0 0.0
    %4327 = vmatprep.subr.mxu0 0.0
    %4328 = vmatpush1.msra.mxu0 0.0
    %4329 = vmatprep.subr.mxu0 0.0
    %4330 = vmatpush1.msra.mxu0 0.0
    %4331 = vmatprep.subr.mxu0 0.0
    %4332 = vmatpush1.msra.mxu0 0.0
    %4333 = vmatprep.subr.mxu0 0.0
    %4334 = vmatpush1.msra.mxu0 0.0
    %4335 = vmatprep.subr.mxu0 0.0
    %4336 = vmatpush1.msra.mxu0 0.0
    %4337 = vmatprep.subr.mxu0 0.0
    %4338 = vmatpush1.msra.mxu0 0.0
    %4339 = vmatprep.subr.mxu0 0.0
    %4340 = vmatpush1.msra.mxu0 0.0
    %4341 = vmatprep.subr.mxu0 0.0
    %4342 = vmatpush1.msra.mxu0 0.0
    %4343 = vmatprep.subr.mxu0 0.0
    %4344 = vmatpush1.msra.mxu0 0.0
    %4345 = vmatprep.subr.mxu0 0.0
    %4346 = vmatpush1.msra.mxu0 0.0
    %4347 = vmatprep.subr.mxu0 0.0
    %4348 = vmatpush1.msra.mxu0 0.0
    %4349 = vmatprep.subr.mxu0 0.0
    %4350 = vmatpush1.msra.mxu0 0.0
    %4351 = vmatprep.subr.mxu0 0.0
    %4352 = vmatpush1.msra.mxu0 0.0
    %4353 = vmatprep.mubr.f32.mxu0 0.0
    %4354 = vmatmul.mubr.f32.gmra.mrb[0].mxu0 %v4287
    %v4355 = vpop.f32.mrb[0].mxu0
    %v4356 = vadd.f32 0.0, %v4355
    %v4357 = vpop.f32.mrb[0].mxu0
    %v4358 = vadd.f32 0.0, %v4357
    %4359 = vdwg.mxu0
    %4360 = vmatprep.subr.mxu0 %v2977
    %4361 = vmatpush1.msra.mxu0 %v2976
    %4362 = vmatprep.subr.mxu0 %v2981
    %4363 = vmatpush1.msra.mxu0 %v2980
    %4364 = vmatprep.subr.mxu0 %v2985
    %4365 = vmatpush1.msra.mxu0 %v2984
    %4366 = vmatprep.subr.mxu0 %v2989
    %4367 = vmatpush1.msra.mxu0 %v2988
    %4368 = vmatprep.subr.mxu0 %v2993
    %4369 = vmatpush1.msra.mxu0 %v2992
    %4370 = vmatprep.subr.mxu0 %v2997
    %4371 = vmatpush1.msra.mxu0 %v2996
    %4372 = vmatprep.subr.mxu0 0.0
    %4373 = vmatpush1.msra.mxu0 0.0
    %4374 = vmatprep.subr.mxu0 0.0
    %4375 = vmatpush1.msra.mxu0 0.0
    %4376 = vmatprep.subr.mxu0 0.0
    %4377 = vmatpush1.msra.mxu0 0.0
    %4378 = vmatprep.subr.mxu0 0.0
    %4379 = vmatpush1.msra.mxu0 0.0
    %4380 = vmatprep.subr.mxu0 0.0
    %4381 = vmatpush1.msra.mxu0 0.0
    %4382 = vmatprep.subr.mxu0 0.0
    %4383 = vmatpush1.msra.mxu0 0.0
    %4384 = vmatprep.subr.mxu0 0.0
    %4385 = vmatpush1.msra.mxu0 0.0
    %4386 = vmatprep.subr.mxu0 0.0
    %4387 = vmatpush1.msra.mxu0 0.0
    %4388 = vmatprep.subr.mxu0 0.0
    %4389 = vmatpush1.msra.mxu0 0.0
    %4390 = vmatprep.subr.mxu0 0.0
    %4391 = vmatpush1.msra.mxu0 0.0
    %4392 = vmatprep.subr.mxu0 0.0
    %4393 = vmatpush1.msra.mxu0 0.0
    %4394 = vmatprep.subr.mxu0 0.0
    %4395 = vmatpush1.msra.mxu0 0.0
    %4396 = vmatprep.subr.mxu0 0.0
    %4397 = vmatpush1.msra.mxu0 0.0
    %4398 = vmatprep.subr.mxu0 0.0
    %4399 = vmatpush1.msra.mxu0 0.0
    %4400 = vmatprep.subr.mxu0 0.0
    %4401 = vmatpush1.msra.mxu0 0.0
    %4402 = vmatprep.subr.mxu0 0.0
    %4403 = vmatpush1.msra.mxu0 0.0
    %4404 = vmatprep.subr.mxu0 0.0
    %4405 = vmatpush1.msra.mxu0 0.0
    %4406 = vmatprep.subr.mxu0 0.0
    %4407 = vmatpush1.msra.mxu0 0.0
    %4408 = vmatprep.subr.mxu0 0.0
    %4409 = vmatpush1.msra.mxu0 0.0
    %4410 = vmatprep.subr.mxu0 0.0
    %4411 = vmatpush1.msra.mxu0 0.0
    %4412 = vmatprep.subr.mxu0 0.0
    %4413 = vmatpush1.msra.mxu0 0.0
    %4414 = vmatprep.subr.mxu0 0.0
    %4415 = vmatpush1.msra.mxu0 0.0
    %4416 = vmatprep.subr.mxu0 0.0
    %4417 = vmatpush1.msra.mxu0 0.0
    %4418 = vmatprep.subr.mxu0 0.0
    %4419 = vmatpush1.msra.mxu0 0.0
    %4420 = vmatprep.subr.mxu0 0.0
    %4421 = vmatpush1.msra.mxu0 0.0
    %4422 = vmatprep.subr.mxu0 0.0
    %4423 = vmatpush1.msra.mxu0 0.0
    %4424 = vmatprep.mubr.f32.mxu0 0.0
    %4425 = vmatmul.mubr.f32.gmra.mrb[0].mxu0 %v4287
    %v4426 = vpop.f32.mrb[0].mxu0
    %v4427 = vadd.f32 0.0, %v4426
    %v4428 = vpop.f32.mrb[0].mxu0
    %v4429 = vadd.f32 0.0, %v4428
    %4430 = vdwg.mxu0
    %v4435 = vcombine.low %v4356, %v4358
    %v4436 = vcombine.low %v4427, %v4429
    %v4438 = vunpack.c.l.s4 1983009808
    %v4439 = vunpack.c.0.s8 %v4438
    %v4440 = vlaneseq
    %v4441 = vshrl.u32 %v4440, 7
    %v4442 = vsub.s32 %v4439, %v4441
    %v4443 = vrot.slane %v4435, %v4442
    %v4445 = vunpack.c.l.s4 1983009808
    %v4446 = vunpack.c.0.s8 %v4445
    %v4447 = vlaneseq
    %v4448 = vshrl.u32 %v4447, 7
    %v4449 = vsub.s32 %v4446, %v4448
    %v4450 = vrot.slane %v4436, %v4449
    %v4451 = vcombine.low %v4443, %v4450
    %v4453 = vadd.f32 %v3283, %v4451
    %v4454 = vxor.u32 %v4453, 2147483648
    %v4455 = vmul.f32 %v4454, 1.442695
    %v4456 = vpow.pop %v4455
    %v4457 = vadd.f32 %v4456, 1.0
    %v4458 = vrcp.pop %v4457
    %v4459 = vmul.f32 1.0, %v4458
    %v4461 = vrot.slane %v4453, 2
    %v4463 = vxor.u32 %v4461, 2147483648
    %v4464 = vmul.f32 %v4463, 1.442695
    %v4465 = vpow.pop %v4464
    %v4466 = vadd.f32 %v4465, 1.0
    %v4467 = vrcp.pop %v4466
    %v4468 = vmul.f32 1.0, %v4467
    %v4469 = vrot.slane %v4453, 4
    %v4471 = vtanh.pop %v4469
    %v4472 = vrot.slane %v4453, 6
    %v4474 = vxor.u32 %v4472, 2147483648
    %v4475 = vmul.f32 %v4474, 1.442695
    %v4476 = vpow.pop %v4475
    %v4477 = vadd.f32 %v4476, 1.0
    %v4478 = vrcp.pop %v4477
    %v4479 = vmul.f32 1.0, %v4478
    %v4480 = vmul.f32 %v4468, %v4283
    %v4481 = vmul.f32 %v4459, %v4471
    %v4482 = vadd.f32 %v4480, %v4481
    %v4483 = vtanh.pop %v4482
    %v4484 = vmul.f32 %v4479, %v4483
    %v4486 = vsel %vm1066, %v4484, 0
    %4488 = vmatprep.subr.mxu0 %v2975
    %4489 = vmatpush1.msra.mxu0 %v2974
    %4490 = vmatprep.subr.mxu0 %v2979
    %4491 = vmatpush1.msra.mxu0 %v2978
    %4492 = vmatprep.subr.mxu0 %v2983
    %4493 = vmatpush1.msra.mxu0 %v2982
    %4494 = vmatprep.subr.mxu0 %v2987
    %4495 = vmatpush1.msra.mxu0 %v2986
    %4496 = vmatprep.subr.mxu0 %v2991
    %4497 = vmatpush1.msra.mxu0 %v2990
    %4498 = vmatprep.subr.mxu0 %v2995
    %4499 = vmatpush1.msra.mxu0 %v2994
    %4500 = vmatprep.subr.mxu0 0.0
    %4501 = vmatpush1.msra.mxu0 0.0
    %4502 = vmatprep.subr.mxu0 0.0
    %4503 = vmatpush1.msra.mxu0 0.0
    %4504 = vmatprep.subr.mxu0 0.0
    %4505 = vmatpush1.msra.mxu0 0.0
    %4506 = vmatprep.subr.mxu0 0.0
    %4507 = vmatpush1.msra.mxu0 0.0
    %4508 = vmatprep.subr.mxu0 0.0
    %4509 = vmatpush1.msra.mxu0 0.0
    %4510 = vmatprep.subr.mxu0 0.0
    %4511 = vmatpush1.msra.mxu0 0.0
    %4512 = vmatprep.subr.mxu0 0.0
    %4513 = vmatpush1.msra.mxu0 0.0
    %4514 = vmatprep.subr.mxu0 0.0
    %4515 = vmatpush1.msra.mxu0 0.0
    %4516 = vmatprep.subr.mxu0 0.0
    %4517 = vmatpush1.msra.mxu0 0.0
    %4518 = vmatprep.subr.mxu0 0.0
    %4519 = vmatpush1.msra.mxu0 0.0
    %4520 = vmatprep.subr.mxu0 0.0
    %4521 = vmatpush1.msra.mxu0 0.0
    %4522 = vmatprep.subr.mxu0 0.0
    %4523 = vmatpush1.msra.mxu0 0.0
    %4524 = vmatprep.subr.mxu0 0.0
    %4525 = vmatpush1.msra.mxu0 0.0
    %4526 = vmatprep.subr.mxu0 0.0
    %4527 = vmatpush1.msra.mxu0 0.0
    %4528 = vmatprep.subr.mxu0 0.0
    %4529 = vmatpush1.msra.mxu0 0.0
    %4530 = vmatprep.subr.mxu0 0.0
    %4531 = vmatpush1.msra.mxu0 0.0
    %4532 = vmatprep.subr.mxu0 0.0
    %4533 = vmatpush1.msra.mxu0 0.0
    %4534 = vmatprep.subr.mxu0 0.0
    %4535 = vmatpush1.msra.mxu0 0.0
    %4536 = vmatprep.subr.mxu0 0.0
    %4537 = vmatpush1.msra.mxu0 0.0
    %4538 = vmatprep.subr.mxu0 0.0
    %4539 = vmatpush1.msra.mxu0 0.0
    %4540 = vmatprep.subr.mxu0 0.0
    %4541 = vmatpush1.msra.mxu0 0.0
    %4542 = vmatprep.subr.mxu0 0.0
    %4543 = vmatpush1.msra.mxu0 0.0
    %4544 = vmatprep.subr.mxu0 0.0
    %4545 = vmatpush1.msra.mxu0 0.0
    %4546 = vmatprep.subr.mxu0 0.0
    %4547 = vmatpush1.msra.mxu0 0.0
    %4548 = vmatprep.subr.mxu0 0.0
    %4549 = vmatpush1.msra.mxu0 0.0
    %4550 = vmatprep.subr.mxu0 0.0
    %4551 = vmatpush1.msra.mxu0 0.0
    %4552 = vmatprep.mubr.f32.mxu0 0.0
    %4553 = vmatmul.mubr.f32.gmra.mrb[0].mxu0 %v4486
    %v4554 = vpop.f32.mrb[0].mxu0
    %v4555 = vadd.f32 0.0, %v4554
    %v4556 = vpop.f32.mrb[0].mxu0
    %v4557 = vadd.f32 0.0, %v4556
    %4558 = vdwg.mxu0
    %4559 = vmatprep.subr.mxu0 %v2977
    %4560 = vmatpush1.msra.mxu0 %v2976
    %4561 = vmatprep.subr.mxu0 %v2981
    %4562 = vmatpush1.msra.mxu0 %v2980
    %4563 = vmatprep.subr.mxu0 %v2985
    %4564 = vmatpush1.msra.mxu0 %v2984
    %4565 = vmatprep.subr.mxu0 %v2989
    %4566 = vmatpush1.msra.mxu0 %v2988
    %4567 = vmatprep.subr.mxu0 %v2993
    %4568 = vmatpush1.msra.mxu0 %v2992
    %4569 = vmatprep.subr.mxu0 %v2997
    %4570 = vmatpush1.msra.mxu0 %v2996
    %4571 = vmatprep.subr.mxu0 0.0
    %4572 = vmatpush1.msra.mxu0 0.0
    %4573 = vmatprep.subr.mxu0 0.0
    %4574 = vmatpush1.msra.mxu0 0.0
    %4575 = vmatprep.subr.mxu0 0.0
    %4576 = vmatpush1.msra.mxu0 0.0
    %4577 = vmatprep.subr.mxu0 0.0
    %4578 = vmatpush1.msra.mxu0 0.0
    %4579 = vmatprep.subr.mxu0 0.0
    %4580 = vmatpush1.msra.mxu0 0.0
    %4581 = vmatprep.subr.mxu0 0.0
    %4582 = vmatpush1.msra.mxu0 0.0
    %4583 = vmatprep.subr.mxu0 0.0
    %4584 = vmatpush1.msra.mxu0 0.0
    %4585 = vmatprep.subr.mxu0 0.0
    %4586 = vmatpush1.msra.mxu0 0.0
    %4587 = vmatprep.subr.mxu0 0.0
    %4588 = vmatpush1.msra.mxu0 0.0
    %4589 = vmatprep.subr.mxu0 0.0
    %4590 = vmatpush1.msra.mxu0 0.0
    %4591 = vmatprep.subr.mxu0 0.0
    %4592 = vmatpush1.msra.mxu0 0.0
    %4593 = vmatprep.subr.mxu0 0.0
    %4594 = vmatpush1.msra.mxu0 0.0
    %4595 = vmatprep.subr.mxu0 0.0
    %4596 = vmatpush1.msra.mxu0 0.0
    %4597 = vmatprep.subr.mxu0 0.0
    %4598 = vmatpush1.msra.mxu0 0.0
    %4599 = vmatprep.subr.mxu0 0.0
    %4600 = vmatpush1.msra.mxu0 0.0
    %4601 = vmatprep.subr.mxu0 0.0
    %4602 = vmatpush1.msra.mxu0 0.0
    %4603 = vmatprep.subr.mxu0 0.0
    %4604 = vmatpush1.msra.mxu0 0.0
    %4605 = vmatprep.subr.mxu0 0.0
    %4606 = vmatpush1.msra.mxu0 0.0
    %4607 = vmatprep.subr.mxu0 0.0
    %4608 = vmatpush1.msra.mxu0 0.0
    %4609 = vmatprep.subr.mxu0 0.0
    %4610 = vmatpush1.msra.mxu0 0.0
    %4611 = vmatprep.subr.mxu0 0.0
    %4612 = vmatpush1.msra.mxu0 0.0
    %4613 = vmatprep.subr.mxu0 0.0
    %4614 = vmatpush1.msra.mxu0 0.0
    %4615 = vmatprep.subr.mxu0 0.0
    %4616 = vmatpush1.msra.mxu0 0.0
    %4617 = vmatprep.subr.mxu0 0.0
    %4618 = vmatpush1.msra.mxu0 0.0
    %4619 = vmatprep.subr.mxu0 0.0
    %4620 = vmatpush1.msra.mxu0 0.0
    %4621 = vmatprep.subr.mxu0 0.0
    %4622 = vmatpush1.msra.mxu0 0.0
    %4623 = vmatprep.mubr.f32.mxu0 0.0
    %4624 = vmatmul.mubr.f32.gmra.mrb[0].mxu0 %v4486
    %v4625 = vpop.f32.mrb[0].mxu0
    %v4626 = vadd.f32 0.0, %v4625
    %v4627 = vpop.f32.mrb[0].mxu0
    %v4628 = vadd.f32 0.0, %v4627
    %4629 = vdwg.mxu0
    %v4634 = vcombine.low %v4555, %v4557
    %v4635 = vcombine.low %v4626, %v4628
    %v4637 = vunpack.c.l.s4 1983009808
    %v4638 = vunpack.c.0.s8 %v4637
    %v4639 = vlaneseq
    %v4640 = vshrl.u32 %v4639, 7
    %v4641 = vsub.s32 %v4638, %v4640
    %v4642 = vrot.slane %v4634, %v4641
    %v4644 = vunpack.c.l.s4 1983009808
    %v4645 = vunpack.c.0.s8 %v4644
    %v4646 = vlaneseq
    %v4647 = vshrl.u32 %v4646, 7
    %v4648 = vsub.s32 %v4645, %v4647
    %v4649 = vrot.slane %v4635, %v4648
    %v4650 = vcombine.low %v4642, %v4649
    %v4652 = vadd.f32 %v3284, %v4650
    %v4653 = vxor.u32 %v4652, 2147483648
    %v4654 = vmul.f32 %v4653, 1.442695
    %v4655 = vpow.pop %v4654
    %v4656 = vadd.f32 %v4655, 1.0
    %v4657 = vrcp.pop %v4656
    %v4658 = vmul.f32 1.0, %v4657
    %v4660 = vrot.slane %v4652, 2
    %v4662 = vxor.u32 %v4660, 2147483648
    %v4663 = vmul.f32 %v4662, 1.442695
    %v4664 = vpow.pop %v4663
    %v4665 = vadd.f32 %v4664, 1.0
    %v4666 = vrcp.pop %v4665
    %v4667 = vmul.f32 1.0, %v4666
    %v4668 = vrot.slane %v4652, 4
    %v4670 = vtanh.pop %v4668
    %v4671 = vrot.slane %v4652, 6
    %v4673 = vxor.u32 %v4671, 2147483648
    %v4674 = vmul.f32 %v4673, 1.442695
    %v4675 = vpow.pop %v4674
    %v4676 = vadd.f32 %v4675, 1.0
    %v4677 = vrcp.pop %v4676
    %v4678 = vmul.f32 1.0, %v4677
    %v4679 = vmul.f32 %v4667, %v4482
    %v4680 = vmul.f32 %v4658, %v4670
    %v4681 = vadd.f32 %v4679, %v4680
    %v4682 = vtanh.pop %v4681
    %v4683 = vmul.f32 %v4678, %v4682
    %v4685 = vsel %vm1066, %v4683, 0
    %4687 = vmatprep.subr.mxu0 %v2975
    %4688 = vmatpush1.msra.mxu0 %v2974
    %4689 = vmatprep.subr.mxu0 %v2979
    %4690 = vmatpush1.msra.mxu0 %v2978
    %4691 = vmatprep.subr.mxu0 %v2983
    %4692 = vmatpush1.msra.mxu0 %v2982
    %4693 = vmatprep.subr.mxu0 %v2987
    %4694 = vmatpush1.msra.mxu0 %v2986
    %4695 = vmatprep.subr.mxu0 %v2991
    %4696 = vmatpush1.msra.mxu0 %v2990
    %4697 = vmatprep.subr.mxu0 %v2995
    %4698 = vmatpush1.msra.mxu0 %v2994
    %4699 = vmatprep.subr.mxu0 0.0
    %4700 = vmatpush1.msra.mxu0 0.0
    %4701 = vmatprep.subr.mxu0 0.0
    %4702 = vmatpush1.msra.mxu0 0.0
    %4703 = vmatprep.subr.mxu0 0.0
    %4704 = vmatpush1.msra.mxu0 0.0
    %4705 = vmatprep.subr.mxu0 0.0
    %4706 = vmatpush1.msra.mxu0 0.0
    %4707 = vmatprep.subr.mxu0 0.0
    %4708 = vmatpush1.msra.mxu0 0.0
    %4709 = vmatprep.subr.mxu0 0.0
    %4710 = vmatpush1.msra.mxu0 0.0
    %4711 = vmatprep.subr.mxu0 0.0
    %4712 = vmatpush1.msra.mxu0 0.0
    %4713 = vmatprep.subr.mxu0 0.0
    %4714 = vmatpush1.msra.mxu0 0.0
    %4715 = vmatprep.subr.mxu0 0.0
    %4716 = vmatpush1.msra.mxu0 0.0
    %4717 = vmatprep.subr.mxu0 0.0
    %4718 = vmatpush1.msra.mxu0 0.0
    %4719 = vmatprep.subr.mxu0 0.0
    %4720 = vmatpush1.msra.mxu0 0.0
    %4721 = vmatprep.subr.mxu0 0.0
    %4722 = vmatpush1.msra.mxu0 0.0
    %4723 = vmatprep.subr.mxu0 0.0
    %4724 = vmatpush1.msra.mxu0 0.0
    %4725 = vmatprep.subr.mxu0 0.0
    %4726 = vmatpush1.msra.mxu0 0.0
    %4727 = vmatprep.subr.mxu0 0.0
    %4728 = vmatpush1.msra.mxu0 0.0
    %4729 = vmatprep.subr.mxu0 0.0
    %4730 = vmatpush1.msra.mxu0 0.0
    %4731 = vmatprep.subr.mxu0 0.0
    %4732 = vmatpush1.msra.mxu0 0.0
    %4733 = vmatprep.subr.mxu0 0.0
    %4734 = vmatpush1.msra.mxu0 0.0
    %4735 = vmatprep.subr.mxu0 0.0
    %4736 = vmatpush1.msra.mxu0 0.0
    %4737 = vmatprep.subr.mxu0 0.0
    %4738 = vmatpush1.msra.mxu0 0.0
    %4739 = vmatprep.subr.mxu0 0.0
    %4740 = vmatpush1.msra.mxu0 0.0
    %4741 = vmatprep.subr.mxu0 0.0
    %4742 = vmatpush1.msra.mxu0 0.0
    %4743 = vmatprep.subr.mxu0 0.0
    %4744 = vmatpush1.msra.mxu0 0.0
    %4745 = vmatprep.subr.mxu0 0.0
    %4746 = vmatpush1.msra.mxu0 0.0
    %4747 = vmatprep.subr.mxu0 0.0
    %4748 = vmatpush1.msra.mxu0 0.0
    %4749 = vmatprep.subr.mxu0 0.0
    %4750 = vmatpush1.msra.mxu0 0.0
    %4751 = vmatprep.mubr.f32.mxu0 0.0
    %4752 = vmatmul.mubr.f32.gmra.mrb[0].mxu0 %v4685
    %v4753 = vpop.f32.mrb[0].mxu0
    %v4754 = vadd.f32 0.0, %v4753
    %v4755 = vpop.f32.mrb[0].mxu0
    %v4756 = vadd.f32 0.0, %v4755
    %4757 = vdwg.mxu0
    %4758 = vmatprep.subr.mxu0 %v2977
    %4759 = vmatpush1.msra.mxu0 %v2976
    %4760 = vmatprep.subr.mxu0 %v2981
    %4761 = vmatpush1.msra.mxu0 %v2980
    %4762 = vmatprep.subr.mxu0 %v2985
    %4763 = vmatpush1.msra.mxu0 %v2984
    %4764 = vmatprep.subr.mxu0 %v2989
    %4765 = vmatpush1.msra.mxu0 %v2988
    %4766 = vmatprep.subr.mxu0 %v2993
    %4767 = vmatpush1.msra.mxu0 %v2992
    %4768 = vmatprep.subr.mxu0 %v2997
    %4769 = vmatpush1.msra.mxu0 %v2996
    %4770 = vmatprep.subr.mxu0 0.0
    %4771 = vmatpush1.msra.mxu0 0.0
    %4772 = vmatprep.subr.mxu0 0.0
    %4773 = vmatpush1.msra.mxu0 0.0
    %4774 = vmatprep.subr.mxu0 0.0
    %4775 = vmatpush1.msra.mxu0 0.0
    %4776 = vmatprep.subr.mxu0 0.0
    %4777 = vmatpush1.msra.mxu0 0.0
    %4778 = vmatprep.subr.mxu0 0.0
    %4779 = vmatpush1.msra.mxu0 0.0
    %4780 = vmatprep.subr.mxu0 0.0
    %4781 = vmatpush1.msra.mxu0 0.0
    %4782 = vmatprep.subr.mxu0 0.0
    %4783 = vmatpush1.msra.mxu0 0.0
    %4784 = vmatprep.subr.mxu0 0.0
    %4785 = vmatpush1.msra.mxu0 0.0
    %4786 = vmatprep.subr.mxu0 0.0
    %4787 = vmatpush1.msra.mxu0 0.0
    %4788 = vmatprep.subr.mxu0 0.0
    %4789 = vmatpush1.msra.mxu0 0.0
    %4790 = vmatprep.subr.mxu0 0.0
    %4791 = vmatpush1.msra.mxu0 0.0
    %4792 = vmatprep.subr.mxu0 0.0
    %4793 = vmatpush1.msra.mxu0 0.0
    %4794 = vmatprep.subr.mxu0 0.0
    %4795 = vmatpush1.msra.mxu0 0.0
    %4796 = vmatprep.subr.mxu0 0.0
    %4797 = vmatpush1.msra.mxu0 0.0
    %4798 = vmatprep.subr.mxu0 0.0
    %4799 = vmatpush1.msra.mxu0 0.0
    %4800 = vmatprep.subr.mxu0 0.0
    %4801 = vmatpush1.msra.mxu0 0.0
    %4802 = vmatprep.subr.mxu0 0.0
    %4803 = vmatpush1.msra.mxu0 0.0
    %4804 = vmatprep.subr.mxu0 0.0
    %4805 = vmatpush1.msra.mxu0 0.0
    %4806 = vmatprep.subr.mxu0 0.0
    %4807 = vmatpush1.msra.mxu0 0.0
    %4808 = vmatprep.subr.mxu0 0.0
    %4809 = vmatpush1.msra.mxu0 0.0
    %4810 = vmatprep.subr.mxu0 0.0
    %4811 = vmatpush1.msra.mxu0 0.0
    %4812 = vmatprep.subr.mxu0 0.0
    %4813 = vmatpush1.msra.mxu0 0.0
    %4814 = vmatprep.subr.mxu0 0.0
    %4815 = vmatpush1.msra.mxu0 0.0
    %4816 = vmatprep.subr.mxu0 0.0
    %4817 = vmatpush1.msra.mxu0 0.0
    %4818 = vmatprep.subr.mxu0 0.0
    %4819 = vmatpush1.msra.mxu0 0.0
    %4820 = vmatprep.subr.mxu0 0.0
    %4821 = vmatpush1.msra.mxu0 0.0
    %4822 = vmatprep.mubr.f32.mxu0 0.0
    %4823 = vmatmul.mubr.f32.gmra.mrb[0].mxu0 %v4685
    %v4824 = vpop.f32.mrb[0].mxu0
    %v4825 = vadd.f32 0.0, %v4824
    %v4826 = vpop.f32.mrb[0].mxu0
    %v4827 = vadd.f32 0.0, %v4826
    %4828 = vdwg.mxu0
    %v4833 = vcombine.low %v4754, %v4756
    %v4834 = vcombine.low %v4825, %v4827
    %v4836 = vunpack.c.l.s4 1983009808
    %v4837 = vunpack.c.0.s8 %v4836
    %v4838 = vlaneseq
    %v4839 = vshrl.u32 %v4838, 7
    %v4840 = vsub.s32 %v4837, %v4839
    %v4841 = vrot.slane %v4833, %v4840
    %v4843 = vunpack.c.l.s4 1983009808
    %v4844 = vunpack.c.0.s8 %v4843
    %v4845 = vlaneseq
    %v4846 = vshrl.u32 %v4845, 7
    %v4847 = vsub.s32 %v4844, %v4846
    %v4848 = vrot.slane %v4834, %v4847
    %v4849 = vcombine.low %v4841, %v4848
    %v4851 = vadd.f32 %v3285, %v4849
    %v4852 = vxor.u32 %v4851, 2147483648
    %v4853 = vmul.f32 %v4852, 1.442695
    %v4854 = vpow.pop %v4853
    %v4855 = vadd.f32 %v4854, 1.0
    %v4856 = vrcp.pop %v4855
    %v4857 = vmul.f32 1.0, %v4856
    %v4859 = vrot.slane %v4851, 2
    %v4861 = vxor.u32 %v4859, 2147483648
    %v4862 = vmul.f32 %v4861, 1.442695
    %v4863 = vpow.pop %v4862
    %v4864 = vadd.f32 %v4863, 1.0
    %v4865 = vrcp.pop %v4864
    %v4866 = vmul.f32 1.0, %v4865
    %v4867 = vrot.slane %v4851, 4
    %v4869 = vtanh.pop %v4867
    %v4870 = vrot.slane %v4851, 6
    %v4872 = vxor.u32 %v4870, 2147483648
    %v4873 = vmul.f32 %v4872, 1.442695
    %v4874 = vpow.pop %v4873
    %v4875 = vadd.f32 %v4874, 1.0
    %v4876 = vrcp.pop %v4875
    %v4877 = vmul.f32 1.0, %v4876
    %v4878 = vmul.f32 %v4866, %v4681
    %v4879 = vmul.f32 %v4857, %v4869
    %v4880 = vadd.f32 %v4878, %v4879
    %v4881 = vtanh.pop %v4880
    %v4882 = vmul.f32 %v4877, %v4881
    %v4884 = vunpack.c.l.s4 1966171168
    %v4885 = vunpack.c.0.s8 %v4884
    %v4886 = vlaneseq
    %v4887 = vshrl.u32 %v4886, 7
    %v4888 = vsub.s32 %v4885, %v4887
    %v4889 = vrot.slane %v3489, %v4888
    %v4890 = vcombine.high %v4889, %v4889
    %v4894 = vunpack.c.l.s4 1966171168
    %v4895 = vunpack.c.0.s8 %v4894
    %v4896 = vlaneseq
    %v4897 = vshrl.u32 %v4896, 7
    %v4898 = vsub.s32 %v4895, %v4897
    %v4899 = vrot.slane %v3688, %v4898
    %v4900 = vcombine.high %v4899, %v4899
    %v4902 = vunpack.c.l.s4 1966171168
    %v4903 = vunpack.c.0.s8 %v4902
    %v4904 = vlaneseq
    %v4905 = vshrl.u32 %v4904, 7
    %v4906 = vsub.s32 %v4903, %v4905
    %v4907 = vrot.slane %v3887, %v4906
    %v4908 = vcombine.high %v4907, %v4907
    %v4910 = vunpack.c.l.s4 1966171168
    %v4911 = vunpack.c.0.s8 %v4910
    %v4912 = vlaneseq
    %v4913 = vshrl.u32 %v4912, 7
    %v4914 = vsub.s32 %v4911, %v4913
    %v4915 = vrot.slane %v4086, %v4914
    %v4916 = vcombine.high %v4915, %v4915
    %v4918 = vunpack.c.l.s4 1966171168
    %v4919 = vunpack.c.0.s8 %v4918
    %v4920 = vlaneseq
    %v4921 = vshrl.u32 %v4920, 7
    %v4922 = vsub.s32 %v4919, %v4921
    %v4923 = vrot.slane %v4285, %v4922
    %v4924 = vcombine.high %v4923, %v4923
    %v4926 = vunpack.c.l.s4 1966171168
    %v4927 = vunpack.c.0.s8 %v4926
    %v4928 = vlaneseq
    %v4929 = vshrl.u32 %v4928, 7
    %v4930 = vsub.s32 %v4927, %v4929
    %v4931 = vrot.slane %v4484, %v4930
    %v4932 = vcombine.high %v4931, %v4931
    %v4934 = vunpack.c.l.s4 1966171168
    %v4935 = vunpack.c.0.s8 %v4934
    %v4936 = vlaneseq
    %v4937 = vshrl.u32 %v4936, 7
    %v4938 = vsub.s32 %v4935, %v4937
    %v4939 = vrot.slane %v4683, %v4938
    %v4940 = vcombine.high %v4939, %v4939
    %v4943 = vunpack.c.l.s4 1966171168
    %v4944 = vunpack.c.0.s8 %v4943
    %v4945 = vlaneseq
    %v4946 = vshrl.u32 %v4945, 7
    %v4947 = vsub.s32 %v4944, %v4946
    %v4948 = vrot.slane %v4882, %v4947
    %v4949 = vcombine.high %v4948, %v4948
    %v4950 = vlaneseq
    %v4951 = vshrl.u32 %v4950, 7
    %v4952 = vsub.s32 0, %v4951
    %v4953 = vrot.slane %v4899, %v4952
    %v4954 = vlaneseq
    %v4955 = vshrl.u32 %v4954, 7
    %v4956 = vsub.s32 0, %v4955
    %v4957 = vrot.slane %v4900, %v4956
    %v4960 = vlaneseq
    %v4961 = vshrl.u32 %v4960, 7
    %v4962 = vsub.s32 0, %v4961
    %v4963 = vrot.slane %v4907, %v4962
    %v4964 = vlaneseq
    %v4965 = vshrl.u32 %v4964, 7
    %v4966 = vsub.s32 0, %v4965
    %v4967 = vrot.slane %v4908, %v4966
    %v4970 = vlaneseq
    %v4971 = vshrl.u32 %v4970, 7
    %v4972 = vsub.s32 0, %v4971
    %v4973 = vrot.slane %v4915, %v4972
    %v4974 = vlaneseq
    %v4975 = vshrl.u32 %v4974, 7
    %v4976 = vsub.s32 0, %v4975
    %v4977 = vrot.slane %v4916, %v4976
    %v4980 = vlaneseq
    %v4981 = vshrl.u32 %v4980, 7
    %v4982 = vsub.s32 0, %v4981
    %v4983 = vrot.slane %v4923, %v4982
    %v4984 = vlaneseq
    %v4985 = vshrl.u32 %v4984, 7
    %v4986 = vsub.s32 0, %v4985
    %v4987 = vrot.slane %v4924, %v4986
    %v4990 = vlaneseq
    %v4991 = vshrl.u32 %v4990, 7
    %v4992 = vsub.s32 0, %v4991
    %v4993 = vrot.slane %v4931, %v4992
    %v4994 = vlaneseq
    %v4995 = vshrl.u32 %v4994, 7
    %v4996 = vsub.s32 0, %v4995
    %v4997 = vrot.slane %v4932, %v4996
    %v5000 = vlaneseq
    %v5001 = vshrl.u32 %v5000, 7
    %v5002 = vsub.s32 0, %v5001
    %v5003 = vrot.slane %v4939, %v5002
    %v5004 = vlaneseq
    %v5005 = vshrl.u32 %v5004, 7
    %v5006 = vsub.s32 0, %v5005
    %v5007 = vrot.slane %v4940, %v5006
    %v5010 = vlaneseq
    %v5011 = vshrl.u32 %v5010, 7
    %v5012 = vsub.s32 0, %v5011
    %v5013 = vrot.slane %v4948, %v5012
    %v5014 = vlaneseq
    %v5015 = vshrl.u32 %v5014, 7
    %v5016 = vsub.s32 0, %v5015
    %v5017 = vrot.slane %v4949, %v5016
    %vm5020 = vcmask 1040384
    %v5021 = vsel %vm5020, %v4889, %v4953
    %v5022 = vsel %vm5020, %v4890, %v4957
    %v5023 = vsel %vm2964, %v5021, %v4963
    %v5024 = vsel %vm2964, %v5022, %v4967
    %vm5025 = vcmask 1042432
    %v5026 = vsel %vm5025, %v5023, %v4973
    %v5027 = vsel %vm5025, %v5024, %v4977
    %v5028 = vsel %vm2966, %v5026, %v4983
    %v5029 = vsel %vm2966, %v5027, %v4987
    %vm5030 = vcmask 1044480
    %v5031 = vsel %vm5030, %v5028, %v4993
    %v5032 = vsel %vm5030, %v5029, %v4997
    %v5033 = vsel %vm2968, %v5031, %v5003
    %v5034 = vsel %vm2968, %v5032, %v5007
    %vm5035 = vcmask 1046528
    %v5036 = vsel %vm5035, %v5033, %v5013
    %v5037 = vsel %vm5035, %v5034, %v5017
    %v5038 = vld [vmem:[%s13] sm:$0x1]
    %v5040 = vlaneseq
    %v5041 = vshrl.u32 %v5040, 7
    %v5042 = vsub.s32 0, %v5041
    %v5043 = vrot.slane %v5038, %v5042
    %v5045 = vmul.f32 %v5036, %v5043
    %v5046 = vmul.f32 %v5037, %v5043
    %v5047 = vsel %vm1066, %v5045, 0.0
    %5048 = vadd.xlane.f32.xlu0 %v5047
    %v5049 = vpop.xlane.xlu0 %5048
    %v5050 = vsel %vm1066, %v5046, 0.0
    %5051 = vadd.xlane.f32.xlu0 %v5050
    %v5052 = vpop.xlane.xlu0 %5051
    %v5053 = vld [vmem:[#allocation2] sm:$0x1]
    %v5055 = vlaneseq
    %v5056 = vshrl.u32 %v5055, 7
    %v5057 = vsub.s32 0, %v5056
    %v5058 = vrot.slane %v5053, %v5057
    %5059 = vset.pattern.permute.xlu0 0
    %5060 = vperm.xlu0 %5059, %v5058
    %v5061 = vpop.permute.xlu0 %5060
    %v5063 = vadd.f32 %v5049, %v5061
    %v5064 = vadd.f32 %v5052, %v5061
    %v5065 = vxor.u32 %v5063, 2147483648
    %v5066 = vxor.u32 %v5064, 2147483648
    %v5067 = vmul.f32 %v5065, 1.442695
    %v5068 = vpow.pop %v5067
    %v5069 = vmul.f32 %v5066, 1.442695
    %v5070 = vpow.pop %v5069
    %v5071 = vadd.f32 %v5068, 1.0
    %v5072 = vadd.f32 %v5070, 1.0
    %v5073 = vrcp.pop %v5071
    %v5074 = vmul.f32 1.0, %v5073
    %v5075 = vrcp.pop %v5072
    %v5076 = vmul.f32 1.0, %v5075
    %v5079 = vlaneseq
    %v5080 = vand.u32 %v5079, 127
    %v5081 = vlaneseq
    %v5082 = vshrl.u32 %v5081, 7
    %v5083 = vsub.s32 %v5080, %v5082
    %v5084 = vrot.slane %v5074, %v5083
    %v5085 = vlaneseq
    %v5086 = vshrl.u32 %v5085, 7
    %v5087 = vsub.s32 %v5080, %v5086
    %v5088 = vrot.slane %v5076, %v5087
    %vm5089 = vcmask 1041409
    %v5090 = vsel %vm5089, %v5088, %v5084
    %vm5092 = vcmask 58368
    %5093 = vst.msk [vmem:[#allocation3] sm:$0x3] %vm5092, %v5090
    // Predicated region
    $region62: #{custom_lstm_forward.1} parent=1 // pred_check
      _
    $region63: #{custom_lstm_forward.1} parent=1 // pred_check_branch
      %5095 = sbr.rel (0) target = $region65
    $region64: #{custom_lstm_forward.1} parent=1 // pred_region
      %s5097 = ssub.s32 32, 32
      %5098 = vsyncadd [#allocation4], %s5097
      %s5100 = sshll.u32 [#allocation3], 4
      %s5101 = int_to_ptr.vmem [resolvable:$true] %s5100
      %5103 = dma.vmem_to_hbm [thread:$0]  %s5101, 32, %s15, [#allocation4]
    $region65: #{custom_lstm_forward.1} parent=1 // pred_fallthru
      _
    // Predicated region
    $region66: #{custom_lstm_forward.1} parent=1 // pred_check
      _
    $region67: #{custom_lstm_forward.1} parent=1 // pred_check_branch
      %5105 = sbr.rel (0) target = $region69
    $region68: #{custom_lstm_forward.1} parent=1 // pred_region
      %5106 = dma.done [#allocation4], 32
    $region69: #{custom_lstm_forward.1} parent=1 // pred_fallthru
      _
    %5107 = vsyncpa [#allocation4], 1

</llo_original>
